<compile_context>
chip_gen: v5e
topology: v5e:2x2
jax: 0.10.0
libtpu: 0.0.40
codegen_flags: <defaults>
</compile_context>

<pallas_src>
import functools

import jax
import jax.numpy as jnp
from jax import lax
from jax.experimental import pallas as pl
from jax.experimental.pallas import tpu as pltpu


def _round_up(x, m):
    return (x + m - 1) // m * m


def _lstm_fc_kernel(L, latent_size, Tc, B_pad, Hp, *refs):
    # refs = (x, [w_ih_t, w_hh_t, b] * L, w_fc_t, b_fc,      # inputs
    #         out,                                           # output
    #         gates_pre, h_seq, h_state, c_state)            # scratch
    x_ref = refs[0]
    layer_refs = refs[1:1 + 3 * L]
    w_fc_ref = refs[1 + 3 * L]
    b_fc_ref = refs[2 + 3 * L]
    out_ref = refs[3 + 3 * L]
    gates_pre = refs[4 + 3 * L]   # (Tc*B_pad, 4*Hp) f32 : hoisted input projections
    h_seq = refs[5 + 3 * L]       # (Tc*B_pad, Hp)   f32 : current layer's outputs
    h_state = refs[6 + 3 * L]     # (L*B_pad, Hp)    f32 : carried across chunks
    c_state = refs[7 + 3 * L]     # (L*B_pad, Hp)    f32 : carried across chunks

    # initialize_hidden(): zero h/c once, on the first time chunk.
    @pl.when(pl.program_id(0) == 0)
    def _():
        h_state[...] = jnp.zeros_like(h_state)
        c_state[...] = jnp.zeros_like(c_state)

    for l in range(L):
        w_ih = layer_refs[3 * l][...]       # (D_in_l_pad, 4Hp), mxu dtype
        w_hh = layer_refs[3 * l + 1][...]   # (Hp, 4Hp),        mxu dtype
        b = layer_refs[3 * l + 2][...]      # (1, 4Hp), f32  (== b_ih + b_hh)

        # Layer input sequence: raw x for layer 0, previous layer's h otherwise.
        inp = x_ref[...] if l == 0 else h_seq[...].astype(w_ih.dtype)

        # Hoisted input projection for the whole chunk: one MXU-efficient
        # matmul with the bias folded in; off the serial recurrence path.
        gates_pre[...] = (
            jnp.dot(inp, w_ih, preferred_element_type=jnp.float32) + b)

        h0 = h_state[pl.ds(l * B_pad, B_pad), :]
        c0 = c_state[pl.ds(l * B_pad, B_pad), :]

        def step(t, carry, w_hh=w_hh):
            h_prev, c_prev = carry                         # (B_pad, Hp) f32 in vregs
            row = pl.multiple_of(t * B_pad, B_pad)         # sublane-tile aligned
            gates = (gates_pre[pl.ds(row, B_pad), :]
                     + jnp.dot(h_prev.astype(w_hh.dtype), w_hh,
                               preferred_element_type=jnp.float32))    # (B_pad, 4Hp)
            # Hp is a multiple of 128 -> 128-lane-aligned gate slices.
            i_g = jax.nn.sigmoid(gates[:, 0 * Hp:1 * Hp])
            f_g = jax.nn.sigmoid(gates[:, 1 * Hp:2 * Hp])
            g_g = jnp.tanh(gates[:, 2 * Hp:3 * Hp])
            o_g = jax.nn.sigmoid(gates[:, 3 * Hp:4 * Hp])
            c_new = f_g * c_prev + i_g * g_g
            h_new = o_g * jnp.tanh(c_new)
            h_seq[pl.ds(row, B_pad), :] = h_new
            return (h_new, c_new)

        h_fin, c_fin = lax.fori_loop(0, Tc, step, (h0, c0), unroll=min(Tc, 8))
        h_state[pl.ds(l * B_pad, B_pad), :] = h_fin
        c_state[pl.ds(l * B_pad, B_pad), :] = c_fin

    # FC head over the whole chunk's top-layer outputs in one matmul; reward
    # sigmoid fused on columns >= latent_size; single lane-dense output store.
    w_fc = w_fc_ref[...]
    pred = (jnp.dot(h_seq[...].astype(w_fc.dtype), w_fc,
                    preferred_element_type=jnp.float32) + b_fc_ref[...])
    col = lax.broadcasted_iota(jnp.int32, pred.shape, 1)
    out_ref[...] = jnp.where(col >= latent_size, jax.nn.sigmoid(pred), pred)


def _pad_gate_cols(w, H, Hp):
    """(rows, 4H) -> (rows, 4Hp), each gate block q placed at columns [q*Hp, q*Hp+H)."""
    rows = w.shape[0]
    out = jnp.zeros((rows, 4 * Hp), w.dtype)
    for q in range(4):
        out = out.at[:, q * Hp:q * Hp + H].set(w[:, q * H:(q + 1) * H])
    return out


def _pad_rows(w, rows_pad):
    return jnp.zeros((rows_pad, w.shape[1]), w.dtype).at[:w.shape[0], :].set(w)


def simple_rnn_forward(latents, actions, layer_params, w_fc, b_fc, latent_size,
                       *, mxu_dtype=jnp.bfloat16, time_chunk=None):
    """latents: (T, B, latent_size), actions: (T, B, action_size).

    layer_params: list of (w_ih (4H, D_in_l), w_hh (4H, H), b (1, 4H)) in
    PyTorch layout with b == b_ih + b_hh already folded.  Weights are
    transposed / zero-padded / cast once here (host-side layout change).
    Returns (predicted_latent (T,B,latent_size), predicted_reward (T,B,1)).
    """
    x = jnp.concatenate([latents, actions], axis=-1)      # torch.cat(dim=-1)
    T, B, D_in = x.shape
    L = len(layer_params)
    H = layer_params[0][1].shape[-1]
    out_dim = w_fc.shape[0]
    assert out_dim == latent_size + 1

    B_pad = _round_up(B, 8)           # sublane tile
    Hp = _round_up(H, 128)            # lane tile
    D0_pad = _round_up(D_in, 128)
    out_pad = _round_up(out_dim, 128)  # lane-dense output slab
    itemsize = jnp.dtype(mxu_dtype).itemsize

    # Pad + flatten the input sequence; MXU operand dtype (bf16 by default).
    x_pad = jnp.zeros((T, B_pad, D0_pad), jnp.float32)
    x_pad = x_pad.at[:, :B, :D_in].set(x.astype(jnp.float32))
    x_flat = x_pad.reshape(T * B_pad, D0_pad).astype(mxu_dtype)

    # Pre-transpose, gate-pad and cast weights once. Biases stay f32 (VPU add).
    flat_weights = []
    for l, (w_ih, w_hh, b) in enumerate(layer_params):
        d_l_pad = D0_pad if l == 0 else Hp
        w_ih_t = _pad_rows(_pad_gate_cols(w_ih.T.astype(jnp.float32), H, Hp), d_l_pad)
        w_hh_t = _pad_rows(_pad_gate_cols(w_hh.T.astype(jnp.float32), H, Hp), Hp)
        b_p = _pad_gate_cols(b.astype(jnp.float32), H, Hp)
        flat_weights += [w_ih_t.astype(mxu_dtype), w_hh_t.astype(mxu_dtype), b_p]
    w_fc_t = _pad_rows(
        jnp.zeros((H, out_pad), jnp.float32).at[:, :out_dim].set(
            w_fc.T.astype(jnp.float32)), Hp).astype(mxu_dtype)
    b_fc_p = jnp.zeros((1, out_pad), jnp.float32).at[:, :out_dim].set(
        b_fc.astype(jnp.float32))
    flat_weights += [w_fc_t, b_fc_p]

    # Time-chunk size: largest divisor of T whose chunk footprint fits a modest
    # VMEM budget (safe on v7x's 64 MiB as well as v5e/v6e's 128 MiB).
    if time_chunk is None:
        budget = 12 * 1024 * 1024
        time_chunk = 1
        for d in range(1, T + 1):
            if T % d:
                continue
            rows_d = d * B_pad
            est_d = rows_d * (2 * D0_pad * itemsize + 2 * out_pad * 4
                              + 4 * Hp * 4 + Hp * 4)
            if est_d <= budget:
                time_chunk = d
    assert T % time_chunk == 0, "time_chunk must divide the sequence length"
    Tc = time_chunk
    n_chunks = T // Tc
    rows = Tc * B_pad

    weight_bytes = sum(int(w.size) * w.dtype.itemsize for w in flat_weights)
    est = (2 * rows * D0_pad * itemsize          # x block (double-buffered)
           + 2 * rows * out_pad * 4              # out block (double-buffered)
           + 2 * weight_bytes                    # weights (default 2 buffers)
           + rows * 4 * Hp * 4 + rows * Hp * 4   # gates_pre + h_seq scratch
           + 2 * L * B_pad * Hp * 4)             # carried h/c state
    vmem_limit = int(min(64 * 1024 * 1024, max(32 * 1024 * 1024, 2 * est)))

    def const2d(shape):
        return pl.BlockSpec(shape, lambda c: (0, 0))

    in_specs = [pl.BlockSpec((rows, D0_pad), lambda c: (c, 0))]
    for w in flat_weights:
        in_specs.append(const2d(w.shape))
    out_specs = pl.BlockSpec((rows, out_pad), lambda c: (c, 0))
    out_shape = jax.ShapeDtypeStruct((T * B_pad, out_pad), jnp.float32)

    kernel = functools.partial(_lstm_fc_kernel, L, latent_size, Tc, B_pad, Hp)

    pred = pl.pallas_call(
        kernel,
        out_shape=out_shape,
        grid_spec=pltpu.PrefetchScalarGridSpec(
            num_scalar_prefetch=0,
            grid=(n_chunks,),
            in_specs=in_specs,
            out_specs=out_specs,
            scratch_shapes=[
                pltpu.VMEM((rows, 4 * Hp), jnp.float32),   # hoisted gate pre-acts
                pltpu.VMEM((rows, Hp), jnp.float32),       # layer output sequence
                pltpu.VMEM((L * B_pad, Hp), jnp.float32),  # h carry (per layer)
                pltpu.VMEM((L * B_pad, Hp), jnp.float32),  # c carry (per layer)
            ],
        ),
        compiler_params=pltpu.CompilerParams(
            dimension_semantics=("arbitrary",),   # sequential: chunk-carried state
            vmem_limit_bytes=vmem_limit,
        ),
    )(x_flat, *flat_weights)

    pred = pred.reshape(T, B_pad, out_pad)[:, :B, :]
    predicted_latent = pred[..., :latent_size]
    predicted_reward = pred[..., latent_size:latent_size + 1]  # sigmoid in-kernel
    return predicted_latent, predicted_reward


def _reference_forward(latents, actions, layer_params, w_fc, b_fc, latent_size):
    """Pure-JAX f32 reference (PyTorch LSTM semantics, gate order i,f,g,o)."""
    x = jnp.concatenate([latents, actions], axis=-1)
    T, B, _ = x.shape
    L = len(layer_params)
    H = layer_params[0][1].shape[-1]
    h = [jnp.zeros((B, H), jnp.float32) for _ in range(L)]
    c = [jnp.zeros((B, H), jnp.float32) for _ in range(L)]
    lat_out, rew_out = [], []
    for t in range(T):
        inp = x[t]
        for l, (w_ih, w_hh, b) in enumerate(layer_params):
            gates = inp @ w_ih.T + h[l] @ w_hh.T + b
            i_g = jax.nn.sigmoid(gates[:, 0 * H:1 * H])
            f_g = jax.nn.sigmoid(gates[:, 1 * H:2 * H])
            g_g = jnp.tanh(gates[:, 2 * H:3 * H])
            o_g = jax.nn.sigmoid(gates[:, 3 * H:4 * H])
            c[l] = f_g * c[l] + i_g * g_g
            h[l] = o_g * jnp.tanh(c[l])
            inp = h[l]
        pred = inp @ w_fc.T + b_fc
        lat_out.append(pred[:, :latent_size])
        rew_out.append(jax.nn.sigmoid(pred[:, latent_size:]))
    return jnp.stack(lat_out), jnp.stack(rew_out)


if __name__ == "__main__":
    # Small shapes consistent with the module's forward:
    T, B = 8, 2               # sequence length, batch_size
    latent_size = 16          # latent_size
    action_size = 4           # model_parameters['action_size']
    hidden_size = 32          # model_parameters['hidden_size']
    num_layers = 2            # model_parameters['hidden_layers']
    d_in = latent_size + action_size

    key = jax.random.PRNGKey(0)
    keys = jax.random.split(key, 4 + 3 * num_layers)

    latents = jax.random.normal(keys[0], (T, B, latent_size), jnp.float32)
    actions = jax.random.normal(keys[1], (T, B, action_size), jnp.float32)

    # Deterministic parameter init (uniform, same scale as PyTorch LSTM default).
    scale = 1.0 / (hidden_size ** 0.5)
    layer_params = []
    for l in range(num_layers):
        in_l = d_in if l == 0 else hidden_size
        w_ih = jax.random.uniform(keys[2 + 3 * l], (4 * hidden_size, in_l),
                                  minval=-scale, maxval=scale)
        w_hh = jax.random.uniform(keys[3 + 3 * l], (4 * hidden_size, hidden_size),
                                  minval=-scale, maxval=scale)
        b = jax.random.uniform(keys[4 + 3 * l], (1, 4 * hidden_size),
                               minval=-scale, maxval=scale)  # b_ih + b_hh folded
        layer_params.append((w_ih, w_hh, b))

    w_fc = jax.random.uniform(keys[-2], (latent_size + 1, hidden_size),
                              minval=-scale, maxval=scale)
    b_fc = jax.random.uniform(keys[-1], (1, latent_size + 1),
                              minval=-scale, maxval=scale)

    ref_latent, ref_reward = _reference_forward(
        latents, actions, layer_params, w_fc, b_fc, latent_size)

    # 1) f32 MXU path with an explicit time-chunked grid (exercises the
    #    chunk-carried h/c state) — must match the f32 reference tightly.
    lat32, rew32 = simple_rnn_forward(
        latents, actions, layer_params, w_fc, b_fc, latent_size,
        mxu_dtype=jnp.float32, time_chunk=4)
    jax.block_until_ready((lat32, rew32))
    assert lat32.shape == (T, B, latent_size)
    assert rew32.shape == (T, B, 1)
    assert jnp.allclose(lat32, ref_latent, atol=1e-5, rtol=1e-5)
    assert jnp.allclose(rew32, ref_reward, atol=1e-5, rtol=1e-5)

    # 2) Default bf16-fed MXU path (f32 accumulate + f32 gate math): looser check.
    lat_bf, rew_bf = simple_rnn_forward(
        latents, actions, layer_params, w_fc, b_fc, latent_size)
    jax.block_until_ready((lat_bf, rew_bf))
    assert lat_bf.shape == (T, B, latent_size)
    assert rew_bf.shape == (T, B, 1)
    assert float(jnp.max(jnp.abs(lat_bf - ref_latent))) < 0.1
    assert float(jnp.max(jnp.abs(rew_bf - ref_reward))) < 0.1

    print("KERNEL_OK")
</pallas_src>

<mosaic_0001>
module attributes {stable_mosaic.version = 11 : i64} {
  func.func @_lstm_fc_kernel(%arg0: i32, %arg1: memref<32x128xf32, #tpu.memory_space<vmem>>, %arg2: memref<128x512xf32, #tpu.memory_space<vmem>>, %arg3: memref<128x512xf32, #tpu.memory_space<vmem>>, %arg4: memref<1x512xf32, #tpu.memory_space<vmem>>, %arg5: memref<128x512xf32, #tpu.memory_space<vmem>>, %arg6: memref<128x512xf32, #tpu.memory_space<vmem>>, %arg7: memref<1x512xf32, #tpu.memory_space<vmem>>, %arg8: memref<128x128xf32, #tpu.memory_space<vmem>>, %arg9: memref<1x128xf32, #tpu.memory_space<vmem>>, %arg10: memref<32x128xf32, #tpu.memory_space<vmem>>, %arg11: memref<32x512xf32, #tpu.memory_space<vmem>>, %arg12: memref<32x128xf32, #tpu.memory_space<vmem>>, %arg13: memref<16x128xf32, #tpu.memory_space<vmem>>, %arg14: memref<16x128xf32, #tpu.memory_space<vmem>>) attributes {dimension_semantics = [#tpu.dimension_semantics<arbitrary>], iteration_bounds = array<i64: 2>, scalar_prefetch = 0 : i64, scratch_operands = 4 : i64, tpu.core_type = #tpu.core_type<tc>, window_params = [{transform_indices = @transform_0, window_bounds = array<i64: 32, 128>}, {pipeline_mode = #tpu.pipeline_mode<synchronous>, transform_indices = @transform_1, window_bounds = array<i64: 128, 512>}, {pipeline_mode = #tpu.pipeline_mode<synchronous>, transform_indices = @transform_2, window_bounds = array<i64: 128, 512>}, {pipeline_mode = #tpu.pipeline_mode<synchronous>, transform_indices = @transform_3, window_bounds = array<i64: 1, 512>}, {pipeline_mode = #tpu.pipeline_mode<synchronous>, transform_indices = @transform_4, window_bounds = array<i64: 128, 512>}, {pipeline_mode = #tpu.pipeline_mode<synchronous>, transform_indices = @transform_5, window_bounds = array<i64: 128, 512>}, {pipeline_mode = #tpu.pipeline_mode<synchronous>, transform_indices = @transform_6, window_bounds = array<i64: 1, 512>}, {pipeline_mode = #tpu.pipeline_mode<synchronous>, transform_indices = @transform_7, window_bounds = array<i64: 128, 128>}, {pipeline_mode = #tpu.pipeline_mode<synchronous>, transform_indices = @transform_8, window_bounds = array<i64: 1, 128>}, {transform_indices = @transform_9, window_bounds = array<i64: 32, 128>}]} {
    %c0_i32 = arith.constant 0 : i32
    %0 = arith.cmpi eq, %arg0, %c0_i32 : i32
    %1 = arith.extui %0 : i1 to i32
    %c0_i32_0 = arith.constant 0 : i32
    %2 = arith.cmpi ne, %1, %c0_i32_0 : i32
    scf.if %2 {
      %cst_107 = arith.constant 0.000000e+00 : f32
      %307 = vector.broadcast %cst_107 : f32 to vector<16x128xf32>
      %c0_108 = arith.constant 0 : index
      %c0_109 = arith.constant 0 : index
      %308 = vector.load %arg13[%c0_108, %c0_109] : memref<16x128xf32, #tpu.memory_space<vmem>>, vector<16x128xf32>
      tpu.vector_store %arg13[%c0_108, %c0_109], %307 {strides = array<i32>} : memref<16x128xf32, #tpu.memory_space<vmem>>, vector<16x128xf32>,
      %cst_110 = arith.constant 0.000000e+00 : f32
      %309 = vector.broadcast %cst_110 : f32 to vector<16x128xf32>
      %c0_111 = arith.constant 0 : index
      %c0_112 = arith.constant 0 : index
      %310 = vector.load %arg14[%c0_111, %c0_112] : memref<16x128xf32, #tpu.memory_space<vmem>>, vector<16x128xf32>
      tpu.vector_store %arg14[%c0_111, %c0_112], %309 {strides = array<i32>} : memref<16x128xf32, #tpu.memory_space<vmem>>, vector<16x128xf32>,
    } else {
    }
    %c0 = arith.constant 0 : index
    %c0_1 = arith.constant 0 : index
    %3 = vector.load %arg2[%c0, %c0_1] : memref<128x512xf32, #tpu.memory_space<vmem>>, vector<128x512xf32>
    %c0_2 = arith.constant 0 : index
    %c0_3 = arith.constant 0 : index
    %4 = vector.load %arg3[%c0_2, %c0_3] : memref<128x512xf32, #tpu.memory_space<vmem>>, vector<128x512xf32>
    %c0_4 = arith.constant 0 : index
    %c0_5 = arith.constant 0 : index
    %5 = vector.load %arg4[%c0_4, %c0_5] : memref<1x512xf32, #tpu.memory_space<vmem>>, vector<1x512xf32>
    %c0_6 = arith.constant 0 : index
    %c0_7 = arith.constant 0 : index
    %6 = vector.load %arg1[%c0_6, %c0_7] : memref<32x128xf32, #tpu.memory_space<vmem>>, vector<32x128xf32>
    %cst = arith.constant dense<0.000000e+00> : vector<32x512xf32>
    %7 = tpu.matmul %6, %3, %cst {dimension_numbers = #tpu.dot_dimension_numbers<[1], [0], [0], [1], [0, 0, 1, 1], [], []>} : vector<32x128xf32>, vector<128x512xf32>, vector<32x512xf32> -> vector<32x512xf32>
    %8 = vector.broadcast %5 : vector<1x512xf32> to vector<32x512xf32>
    %9 = arith.addf %7, %8 : vector<32x512xf32>
    %c0_8 = arith.constant 0 : index
    %c0_9 = arith.constant 0 : index
    %10 = vector.load %arg11[%c0_8, %c0_9] : memref<32x512xf32, #tpu.memory_space<vmem>>, vector<32x512xf32>
    tpu.vector_store %arg11[%c0_8, %c0_9], %9 {strides = array<i32>} : memref<32x512xf32, #tpu.memory_space<vmem>>, vector<32x512xf32>,
    %c0_10 = arith.constant 0 : index
    %c0_11 = arith.constant 0 : index
    %11 = vector.load %arg13[%c0_10, %c0_11] : memref<16x128xf32, #tpu.memory_space<vmem>>, vector<8x128xf32>
    %c0_12 = arith.constant 0 : index
    %c0_13 = arith.constant 0 : index
    %12 = vector.load %arg14[%c0_12, %c0_13] : memref<16x128xf32, #tpu.memory_space<vmem>>, vector<8x128xf32>
    %c0_i32_14 = arith.constant 0 : i32
    %c8_i32 = arith.constant 8 : i32
    %13 = arith.muli %c0_i32_14, %c8_i32 : i32
    %14 = tpu.assume_multiple %13, 8 : i32
    %15 = arith.index_cast %14 : i32 to index
    %c0_15 = arith.constant 0 : index
    %16 = vector.load %arg11[%15, %c0_15] : memref<32x512xf32, #tpu.memory_space<vmem>>, vector<8x512xf32>
    %cst_16 = arith.constant dense<0.000000e+00> : vector<8x512xf32>
    %17 = tpu.matmul %11, %4, %cst_16 {dimension_numbers = #tpu.dot_dimension_numbers<[1], [0], [0], [1], [0, 0, 1, 1], [], []>} : vector<8x128xf32>, vector<128x512xf32>, vector<8x512xf32> -> vector<8x512xf32>
    %18 = arith.addf %16, %17 : vector<8x512xf32>
    %19 = vector.extract_strided_slice %18 {offsets = [0, 0], sizes = [8, 128], strides = [1, 1]} : vector<8x512xf32> to vector<8x128xf32>
    %20 = arith.negf %19 : vector<8x128xf32>
    %21 = math.exp %20 : vector<8x128xf32>
    %cst_17 = arith.constant 1.000000e+00 : f32
    %22 = vector.broadcast %cst_17 : f32 to vector<8x128xf32>
    %23 = arith.addf %22, %21 : vector<8x128xf32>
    %24 = arith.divf %22, %23 : vector<8x128xf32>
    %25 = vector.extract_strided_slice %18 {offsets = [0, 128], sizes = [8, 128], strides = [1, 1]} : vector<8x512xf32> to vector<8x128xf32>
    %26 = arith.negf %25 : vector<8x128xf32>
    %27 = math.exp %26 : vector<8x128xf32>
    %cst_18 = arith.constant 1.000000e+00 : f32
    %28 = vector.broadcast %cst_18 : f32 to vector<8x128xf32>
    %29 = arith.addf %28, %27 : vector<8x128xf32>
    %30 = arith.divf %28, %29 : vector<8x128xf32>
    %31 = vector.extract_strided_slice %18 {offsets = [0, 256], sizes = [8, 128], strides = [1, 1]} : vector<8x512xf32> to vector<8x128xf32>
    %32 = math.tanh %31 : vector<8x128xf32>
    %33 = vector.extract_strided_slice %18 {offsets = [0, 384], sizes = [8, 128], strides = [1, 1]} : vector<8x512xf32> to vector<8x128xf32>
    %34 = arith.negf %33 : vector<8x128xf32>
    %35 = math.exp %34 : vector<8x128xf32>
    %cst_19 = arith.constant 1.000000e+00 : f32
    %36 = vector.broadcast %cst_19 : f32 to vector<8x128xf32>
    %37 = arith.addf %36, %35 : vector<8x128xf32>
    %38 = arith.divf %36, %37 : vector<8x128xf32>
    %39 = arith.mulf %30, %12 : vector<8x128xf32>
    %40 = arith.mulf %24, %32 : vector<8x128xf32>
    %41 = arith.addf %39, %40 : vector<8x128xf32>
    %42 = math.tanh %41 : vector<8x128xf32>
    %43 = arith.mulf %38, %42 : vector<8x128xf32>
    %44 = arith.index_cast %14 : i32 to index
    %c0_20 = arith.constant 0 : index
    %45 = vector.load %arg12[%44, %c0_20] : memref<32x128xf32, #tpu.memory_space<vmem>>, vector<8x128xf32>
    tpu.vector_store %arg12[%44, %c0_20], %43 {strides = array<i32>} : memref<32x128xf32, #tpu.memory_space<vmem>>, vector<8x128xf32>,
    %c1_i32 = arith.constant 1 : i32
    %c8_i32_21 = arith.constant 8 : i32
    %46 = arith.muli %c1_i32, %c8_i32_21 : i32
    %47 = tpu.assume_multiple %46, 8 : i32
    %48 = arith.index_cast %47 : i32 to index
    %c0_22 = arith.constant 0 : index
    %49 = vector.load %arg11[%48, %c0_22] : memref<32x512xf32, #tpu.memory_space<vmem>>, vector<8x512xf32>
    %cst_23 = arith.constant dense<0.000000e+00> : vector<8x512xf32>
    %50 = tpu.matmul %43, %4, %cst_23 {dimension_numbers = #tpu.dot_dimension_numbers<[1], [0], [0], [1], [0, 0, 1, 1], [], []>} : vector<8x128xf32>, vector<128x512xf32>, vector<8x512xf32> -> vector<8x512xf32>
    %51 = arith.addf %49, %50 : vector<8x512xf32>
    %52 = vector.extract_strided_slice %51 {offsets = [0, 0], sizes = [8, 128], strides = [1, 1]} : vector<8x512xf32> to vector<8x128xf32>
    %53 = arith.negf %52 : vector<8x128xf32>
    %54 = math.exp %53 : vector<8x128xf32>
    %cst_24 = arith.constant 1.000000e+00 : f32
    %55 = vector.broadcast %cst_24 : f32 to vector<8x128xf32>
    %56 = arith.addf %55, %54 : vector<8x128xf32>
    %57 = arith.divf %55, %56 : vector<8x128xf32>
    %58 = vector.extract_strided_slice %51 {offsets = [0, 128], sizes = [8, 128], strides = [1, 1]} : vector<8x512xf32> to vector<8x128xf32>
    %59 = arith.negf %58 : vector<8x128xf32>
    %60 = math.exp %59 : vector<8x128xf32>
    %cst_25 = arith.constant 1.000000e+00 : f32
    %61 = vector.broadcast %cst_25 : f32 to vector<8x128xf32>
    %62 = arith.addf %61, %60 : vector<8x128xf32>
    %63 = arith.divf %61, %62 : vector<8x128xf32>
    %64 = vector.extract_strided_slice %51 {offsets = [0, 256], sizes = [8, 128], strides = [1, 1]} : vector<8x512xf32> to vector<8x128xf32>
    %65 = math.tanh %64 : vector<8x128xf32>
    %66 = vector.extract_strided_slice %51 {offsets = [0, 384], sizes = [8, 128], strides = [1, 1]} : vector<8x512xf32> to vector<8x128xf32>
    %67 = arith.negf %66 : vector<8x128xf32>
    %68 = math.exp %67 : vector<8x128xf32>
    %cst_26 = arith.constant 1.000000e+00 : f32
    %69 = vector.broadcast %cst_26 : f32 to vector<8x128xf32>
    %70 = arith.addf %69, %68 : vector<8x128xf32>
    %71 = arith.divf %69, %70 : vector<8x128xf32>
    %72 = arith.mulf %63, %41 : vector<8x128xf32>
    %73 = arith.mulf %57, %65 : vector<8x128xf32>
    %74 = arith.addf %72, %73 : vector<8x128xf32>
    %75 = math.tanh %74 : vector<8x128xf32>
    %76 = arith.mulf %71, %75 : vector<8x128xf32>
    %77 = arith.index_cast %47 : i32 to index
    %c0_27 = arith.constant 0 : index
    %78 = vector.load %arg12[%77, %c0_27] : memref<32x128xf32, #tpu.memory_space<vmem>>, vector<8x128xf32>
    tpu.vector_store %arg12[%77, %c0_27], %76 {strides = array<i32>} : memref<32x128xf32, #tpu.memory_space<vmem>>, vector<8x128xf32>,
    %c2_i32 = arith.constant 2 : i32
    %c8_i32_28 = arith.constant 8 : i32
    %79 = arith.muli %c2_i32, %c8_i32_28 : i32
    %80 = tpu.assume_multiple %79, 8 : i32
    %81 = arith.index_cast %80 : i32 to index
    %c0_29 = arith.constant 0 : index
    %82 = vector.load %arg11[%81, %c0_29] : memref<32x512xf32, #tpu.memory_space<vmem>>, vector<8x512xf32>
    %cst_30 = arith.constant dense<0.000000e+00> : vector<8x512xf32>
    %83 = tpu.matmul %76, %4, %cst_30 {dimension_numbers = #tpu.dot_dimension_numbers<[1], [0], [0], [1], [0, 0, 1, 1], [], []>} : vector<8x128xf32>, vector<128x512xf32>, vector<8x512xf32> -> vector<8x512xf32>
    %84 = arith.addf %82, %83 : vector<8x512xf32>
    %85 = vector.extract_strided_slice %84 {offsets = [0, 0], sizes = [8, 128], strides = [1, 1]} : vector<8x512xf32> to vector<8x128xf32>
    %86 = arith.negf %85 : vector<8x128xf32>
    %87 = math.exp %86 : vector<8x128xf32>
    %cst_31 = arith.constant 1.000000e+00 : f32
    %88 = vector.broadcast %cst_31 : f32 to vector<8x128xf32>
    %89 = arith.addf %88, %87 : vector<8x128xf32>
    %90 = arith.divf %88, %89 : vector<8x128xf32>
    %91 = vector.extract_strided_slice %84 {offsets = [0, 128], sizes = [8, 128], strides = [1, 1]} : vector<8x512xf32> to vector<8x128xf32>
    %92 = arith.negf %91 : vector<8x128xf32>
    %93 = math.exp %92 : vector<8x128xf32>
    %cst_32 = arith.constant 1.000000e+00 : f32
    %94 = vector.broadcast %cst_32 : f32 to vector<8x128xf32>
    %95 = arith.addf %94, %93 : vector<8x128xf32>
    %96 = arith.divf %94, %95 : vector<8x128xf32>
    %97 = vector.extract_strided_slice %84 {offsets = [0, 256], sizes = [8, 128], strides = [1, 1]} : vector<8x512xf32> to vector<8x128xf32>
    %98 = math.tanh %97 : vector<8x128xf32>
    %99 = vector.extract_strided_slice %84 {offsets = [0, 384], sizes = [8, 128], strides = [1, 1]} : vector<8x512xf32> to vector<8x128xf32>
    %100 = arith.negf %99 : vector<8x128xf32>
    %101 = math.exp %100 : vector<8x128xf32>
    %cst_33 = arith.constant 1.000000e+00 : f32
    %102 = vector.broadcast %cst_33 : f32 to vector<8x128xf32>
    %103 = arith.addf %102, %101 : vector<8x128xf32>
    %104 = arith.divf %102, %103 : vector<8x128xf32>
    %105 = arith.mulf %96, %74 : vector<8x128xf32>
    %106 = arith.mulf %90, %98 : vector<8x128xf32>
    %107 = arith.addf %105, %106 : vector<8x128xf32>
    %108 = math.tanh %107 : vector<8x128xf32>
    %109 = arith.mulf %104, %108 : vector<8x128xf32>
    %110 = arith.index_cast %80 : i32 to index
    %c0_34 = arith.constant 0 : index
    %111 = vector.load %arg12[%110, %c0_34] : memref<32x128xf32, #tpu.memory_space<vmem>>, vector<8x128xf32>
    tpu.vector_store %arg12[%110, %c0_34], %109 {strides = array<i32>} : memref<32x128xf32, #tpu.memory_space<vmem>>, vector<8x128xf32>,
    %c3_i32 = arith.constant 3 : i32
    %c8_i32_35 = arith.constant 8 : i32
    %112 = arith.muli %c3_i32, %c8_i32_35 : i32
    %113 = tpu.assume_multiple %112, 8 : i32
    %114 = arith.index_cast %113 : i32 to index
    %c0_36 = arith.constant 0 : index
    %115 = vector.load %arg11[%114, %c0_36] : memref<32x512xf32, #tpu.memory_space<vmem>>, vector<8x512xf32>
    %cst_37 = arith.constant dense<0.000000e+00> : vector<8x512xf32>
    %116 = tpu.matmul %109, %4, %cst_37 {dimension_numbers = #tpu.dot_dimension_numbers<[1], [0], [0], [1], [0, 0, 1, 1], [], []>} : vector<8x128xf32>, vector<128x512xf32>, vector<8x512xf32> -> vector<8x512xf32>
    %117 = arith.addf %115, %116 : vector<8x512xf32>
    %118 = vector.extract_strided_slice %117 {offsets = [0, 0], sizes = [8, 128], strides = [1, 1]} : vector<8x512xf32> to vector<8x128xf32>
    %119 = arith.negf %118 : vector<8x128xf32>
    %120 = math.exp %119 : vector<8x128xf32>
    %cst_38 = arith.constant 1.000000e+00 : f32
    %121 = vector.broadcast %cst_38 : f32 to vector<8x128xf32>
    %122 = arith.addf %121, %120 : vector<8x128xf32>
    %123 = arith.divf %121, %122 : vector<8x128xf32>
    %124 = vector.extract_strided_slice %117 {offsets = [0, 128], sizes = [8, 128], strides = [1, 1]} : vector<8x512xf32> to vector<8x128xf32>
    %125 = arith.negf %124 : vector<8x128xf32>
    %126 = math.exp %125 : vector<8x128xf32>
    %cst_39 = arith.constant 1.000000e+00 : f32
    %127 = vector.broadcast %cst_39 : f32 to vector<8x128xf32>
    %128 = arith.addf %127, %126 : vector<8x128xf32>
    %129 = arith.divf %127, %128 : vector<8x128xf32>
    %130 = vector.extract_strided_slice %117 {offsets = [0, 256], sizes = [8, 128], strides = [1, 1]} : vector<8x512xf32> to vector<8x128xf32>
    %131 = math.tanh %130 : vector<8x128xf32>
    %132 = vector.extract_strided_slice %117 {offsets = [0, 384], sizes = [8, 128], strides = [1, 1]} : vector<8x512xf32> to vector<8x128xf32>
    %133 = arith.negf %132 : vector<8x128xf32>
    %134 = math.exp %133 : vector<8x128xf32>
    %cst_40 = arith.constant 1.000000e+00 : f32
    %135 = vector.broadcast %cst_40 : f32 to vector<8x128xf32>
    %136 = arith.addf %135, %134 : vector<8x128xf32>
    %137 = arith.divf %135, %136 : vector<8x128xf32>
    %138 = arith.mulf %129, %107 : vector<8x128xf32>
    %139 = arith.mulf %123, %131 : vector<8x128xf32>
    %140 = arith.addf %138, %139 : vector<8x128xf32>
    %141 = math.tanh %140 : vector<8x128xf32>
    %142 = arith.mulf %137, %141 : vector<8x128xf32>
    %143 = arith.index_cast %113 : i32 to index
    %c0_41 = arith.constant 0 : index
    %144 = vector.load %arg12[%143, %c0_41] : memref<32x128xf32, #tpu.memory_space<vmem>>, vector<8x128xf32>
    tpu.vector_store %arg12[%143, %c0_41], %142 {strides = array<i32>} : memref<32x128xf32, #tpu.memory_space<vmem>>, vector<8x128xf32>,
    %c4_i32 = arith.constant 4 : i32
    %c0_42 = arith.constant 0 : index
    %c0_43 = arith.constant 0 : index
    %145 = vector.load %arg13[%c0_42, %c0_43] : memref<16x128xf32, #tpu.memory_space<vmem>>, vector<8x128xf32>
    tpu.vector_store %arg13[%c0_42, %c0_43], %142 {strides = array<i32>} : memref<16x128xf32, #tpu.memory_space<vmem>>, vector<8x128xf32>,
    %c0_44 = arith.constant 0 : index
    %c0_45 = arith.constant 0 : index
    %146 = vector.load %arg14[%c0_44, %c0_45] : memref<16x128xf32, #tpu.memory_space<vmem>>, vector<8x128xf32>
    tpu.vector_store %arg14[%c0_44, %c0_45], %140 {strides = array<i32>} : memref<16x128xf32, #tpu.memory_space<vmem>>, vector<8x128xf32>,
    %c0_46 = arith.constant 0 : index
    %c0_47 = arith.constant 0 : index
    %147 = vector.load %arg5[%c0_46, %c0_47] : memref<128x512xf32, #tpu.memory_space<vmem>>, vector<128x512xf32>
    %c0_48 = arith.constant 0 : index
    %c0_49 = arith.constant 0 : index
    %148 = vector.load %arg6[%c0_48, %c0_49] : memref<128x512xf32, #tpu.memory_space<vmem>>, vector<128x512xf32>
    %c0_50 = arith.constant 0 : index
    %c0_51 = arith.constant 0 : index
    %149 = vector.load %arg7[%c0_50, %c0_51] : memref<1x512xf32, #tpu.memory_space<vmem>>, vector<1x512xf32>
    %c0_52 = arith.constant 0 : index
    %c0_53 = arith.constant 0 : index
    %150 = vector.load %arg12[%c0_52, %c0_53] : memref<32x128xf32, #tpu.memory_space<vmem>>, vector<32x128xf32>
    %cst_54 = arith.constant dense<0.000000e+00> : vector<32x512xf32>
    %151 = tpu.matmul %150, %147, %cst_54 {dimension_numbers = #tpu.dot_dimension_numbers<[1], [0], [0], [1], [0, 0, 1, 1], [], []>} : vector<32x128xf32>, vector<128x512xf32>, vector<32x512xf32> -> vector<32x512xf32>
    %152 = vector.broadcast %149 : vector<1x512xf32> to vector<32x512xf32>
    %153 = arith.addf %151, %152 : vector<32x512xf32>
    %c0_55 = arith.constant 0 : index
    %c0_56 = arith.constant 0 : index
    %154 = vector.load %arg11[%c0_55, %c0_56] : memref<32x512xf32, #tpu.memory_space<vmem>>, vector<32x512xf32>
    tpu.vector_store %arg11[%c0_55, %c0_56], %153 {strides = array<i32>} : memref<32x512xf32, #tpu.memory_space<vmem>>, vector<32x512xf32>,
    %c8 = arith.constant 8 : index
    %c0_57 = arith.constant 0 : index
    %155 = vector.load %arg13[%c8, %c0_57] : memref<16x128xf32, #tpu.memory_space<vmem>>, vector<8x128xf32>
    %c8_58 = arith.constant 8 : index
    %c0_59 = arith.constant 0 : index
    %156 = vector.load %arg14[%c8_58, %c0_59] : memref<16x128xf32, #tpu.memory_space<vmem>>, vector<8x128xf32>
    %c0_i32_60 = arith.constant 0 : i32
    %c8_i32_61 = arith.constant 8 : i32
    %157 = arith.muli %c0_i32_60, %c8_i32_61 : i32
    %158 = tpu.assume_multiple %157, 8 : i32
    %159 = arith.index_cast %158 : i32 to index
    %c0_62 = arith.constant 0 : index
    %160 = vector.load %arg11[%159, %c0_62] : memref<32x512xf32, #tpu.memory_space<vmem>>, vector<8x512xf32>
    %cst_63 = arith.constant dense<0.000000e+00> : vector<8x512xf32>
    %161 = tpu.matmul %155, %148, %cst_63 {dimension_numbers = #tpu.dot_dimension_numbers<[1], [0], [0], [1], [0, 0, 1, 1], [], []>} : vector<8x128xf32>, vector<128x512xf32>, vector<8x512xf32> -> vector<8x512xf32>
    %162 = arith.addf %160, %161 : vector<8x512xf32>
    %163 = vector.extract_strided_slice %162 {offsets = [0, 0], sizes = [8, 128], strides = [1, 1]} : vector<8x512xf32> to vector<8x128xf32>
    %164 = arith.negf %163 : vector<8x128xf32>
    %165 = math.exp %164 : vector<8x128xf32>
    %cst_64 = arith.constant 1.000000e+00 : f32
    %166 = vector.broadcast %cst_64 : f32 to vector<8x128xf32>
    %167 = arith.addf %166, %165 : vector<8x128xf32>
    %168 = arith.divf %166, %167 : vector<8x128xf32>
    %169 = vector.extract_strided_slice %162 {offsets = [0, 128], sizes = [8, 128], strides = [1, 1]} : vector<8x512xf32> to vector<8x128xf32>
    %170 = arith.negf %169 : vector<8x128xf32>
    %171 = math.exp %170 : vector<8x128xf32>
    %cst_65 = arith.constant 1.000000e+00 : f32
    %172 = vector.broadcast %cst_65 : f32 to vector<8x128xf32>
    %173 = arith.addf %172, %171 : vector<8x128xf32>
    %174 = arith.divf %172, %173 : vector<8x128xf32>
    %175 = vector.extract_strided_slice %162 {offsets = [0, 256], sizes = [8, 128], strides = [1, 1]} : vector<8x512xf32> to vector<8x128xf32>
    %176 = math.tanh %175 : vector<8x128xf32>
    %177 = vector.extract_strided_slice %162 {offsets = [0, 384], sizes = [8, 128], strides = [1, 1]} : vector<8x512xf32> to vector<8x128xf32>
    %178 = arith.negf %177 : vector<8x128xf32>
    %179 = math.exp %178 : vector<8x128xf32>
    %cst_66 = arith.constant 1.000000e+00 : f32
    %180 = vector.broadcast %cst_66 : f32 to vector<8x128xf32>
    %181 = arith.addf %180, %179 : vector<8x128xf32>
    %182 = arith.divf %180, %181 : vector<8x128xf32>
    %183 = arith.mulf %174, %156 : vector<8x128xf32>
    %184 = arith.mulf %168, %176 : vector<8x128xf32>
    %185 = arith.addf %183, %184 : vector<8x128xf32>
    %186 = math.tanh %185 : vector<8x128xf32>
    %187 = arith.mulf %182, %186 : vector<8x128xf32>
    %188 = arith.index_cast %158 : i32 to index
    %c0_67 = arith.constant 0 : index
    %189 = vector.load %arg12[%188, %c0_67] : memref<32x128xf32, #tpu.memory_space<vmem>>, vector<8x128xf32>
    tpu.vector_store %arg12[%188, %c0_67], %187 {strides = array<i32>} : memref<32x128xf32, #tpu.memory_space<vmem>>, vector<8x128xf32>,
    %c1_i32_68 = arith.constant 1 : i32
    %c8_i32_69 = arith.constant 8 : i32
    %190 = arith.muli %c1_i32_68, %c8_i32_69 : i32
    %191 = tpu.assume_multiple %190, 8 : i32
    %192 = arith.index_cast %191 : i32 to index
    %c0_70 = arith.constant 0 : index
    %193 = vector.load %arg11[%192, %c0_70] : memref<32x512xf32, #tpu.memory_space<vmem>>, vector<8x512xf32>
    %cst_71 = arith.constant dense<0.000000e+00> : vector<8x512xf32>
    %194 = tpu.matmul %187, %148, %cst_71 {dimension_numbers = #tpu.dot_dimension_numbers<[1], [0], [0], [1], [0, 0, 1, 1], [], []>} : vector<8x128xf32>, vector<128x512xf32>, vector<8x512xf32> -> vector<8x512xf32>
    %195 = arith.addf %193, %194 : vector<8x512xf32>
    %196 = vector.extract_strided_slice %195 {offsets = [0, 0], sizes = [8, 128], strides = [1, 1]} : vector<8x512xf32> to vector<8x128xf32>
    %197 = arith.negf %196 : vector<8x128xf32>
    %198 = math.exp %197 : vector<8x128xf32>
    %cst_72 = arith.constant 1.000000e+00 : f32
    %199 = vector.broadcast %cst_72 : f32 to vector<8x128xf32>
    %200 = arith.addf %199, %198 : vector<8x128xf32>
    %201 = arith.divf %199, %200 : vector<8x128xf32>
    %202 = vector.extract_strided_slice %195 {offsets = [0, 128], sizes = [8, 128], strides = [1, 1]} : vector<8x512xf32> to vector<8x128xf32>
    %203 = arith.negf %202 : vector<8x128xf32>
    %204 = math.exp %203 : vector<8x128xf32>
    %cst_73 = arith.constant 1.000000e+00 : f32
    %205 = vector.broadcast %cst_73 : f32 to vector<8x128xf32>
    %206 = arith.addf %205, %204 : vector<8x128xf32>
    %207 = arith.divf %205, %206 : vector<8x128xf32>
    %208 = vector.extract_strided_slice %195 {offsets = [0, 256], sizes = [8, 128], strides = [1, 1]} : vector<8x512xf32> to vector<8x128xf32>
    %209 = math.tanh %208 : vector<8x128xf32>
    %210 = vector.extract_strided_slice %195 {offsets = [0, 384], sizes = [8, 128], strides = [1, 1]} : vector<8x512xf32> to vector<8x128xf32>
    %211 = arith.negf %210 : vector<8x128xf32>
    %212 = math.exp %211 : vector<8x128xf32>
    %cst_74 = arith.constant 1.000000e+00 : f32
    %213 = vector.broadcast %cst_74 : f32 to vector<8x128xf32>
    %214 = arith.addf %213, %212 : vector<8x128xf32>
    %215 = arith.divf %213, %214 : vector<8x128xf32>
    %216 = arith.mulf %207, %185 : vector<8x128xf32>
    %217 = arith.mulf %201, %209 : vector<8x128xf32>
    %218 = arith.addf %216, %217 : vector<8x128xf32>
    %219 = math.tanh %218 : vector<8x128xf32>
    %220 = arith.mulf %215, %219 : vector<8x128xf32>
    %221 = arith.index_cast %191 : i32 to index
    %c0_75 = arith.constant 0 : index
    %222 = vector.load %arg12[%221, %c0_75] : memref<32x128xf32, #tpu.memory_space<vmem>>, vector<8x128xf32>
    tpu.vector_store %arg12[%221, %c0_75], %220 {strides = array<i32>} : memref<32x128xf32, #tpu.memory_space<vmem>>, vector<8x128xf32>,
    %c2_i32_76 = arith.constant 2 : i32
    %c8_i32_77 = arith.constant 8 : i32
    %223 = arith.muli %c2_i32_76, %c8_i32_77 : i32
    %224 = tpu.assume_multiple %223, 8 : i32
    %225 = arith.index_cast %224 : i32 to index
    %c0_78 = arith.constant 0 : index
    %226 = vector.load %arg11[%225, %c0_78] : memref<32x512xf32, #tpu.memory_space<vmem>>, vector<8x512xf32>
    %cst_79 = arith.constant dense<0.000000e+00> : vector<8x512xf32>
    %227 = tpu.matmul %220, %148, %cst_79 {dimension_numbers = #tpu.dot_dimension_numbers<[1], [0], [0], [1], [0, 0, 1, 1], [], []>} : vector<8x128xf32>, vector<128x512xf32>, vector<8x512xf32> -> vector<8x512xf32>
    %228 = arith.addf %226, %227 : vector<8x512xf32>
    %229 = vector.extract_strided_slice %228 {offsets = [0, 0], sizes = [8, 128], strides = [1, 1]} : vector<8x512xf32> to vector<8x128xf32>
    %230 = arith.negf %229 : vector<8x128xf32>
    %231 = math.exp %230 : vector<8x128xf32>
    %cst_80 = arith.constant 1.000000e+00 : f32
    %232 = vector.broadcast %cst_80 : f32 to vector<8x128xf32>
    %233 = arith.addf %232, %231 : vector<8x128xf32>
    %234 = arith.divf %232, %233 : vector<8x128xf32>
    %235 = vector.extract_strided_slice %228 {offsets = [0, 128], sizes = [8, 128], strides = [1, 1]} : vector<8x512xf32> to vector<8x128xf32>
    %236 = arith.negf %235 : vector<8x128xf32>
    %237 = math.exp %236 : vector<8x128xf32>
    %cst_81 = arith.constant 1.000000e+00 : f32
    %238 = vector.broadcast %cst_81 : f32 to vector<8x128xf32>
    %239 = arith.addf %238, %237 : vector<8x128xf32>
    %240 = arith.divf %238, %239 : vector<8x128xf32>
    %241 = vector.extract_strided_slice %228 {offsets = [0, 256], sizes = [8, 128], strides = [1, 1]} : vector<8x512xf32> to vector<8x128xf32>
    %242 = math.tanh %241 : vector<8x128xf32>
    %243 = vector.extract_strided_slice %228 {offsets = [0, 384], sizes = [8, 128], strides = [1, 1]} : vector<8x512xf32> to vector<8x128xf32>
    %244 = arith.negf %243 : vector<8x128xf32>
    %245 = math.exp %244 : vector<8x128xf32>
    %cst_82 = arith.constant 1.000000e+00 : f32
    %246 = vector.broadcast %cst_82 : f32 to vector<8x128xf32>
    %247 = arith.addf %246, %245 : vector<8x128xf32>
    %248 = arith.divf %246, %247 : vector<8x128xf32>
    %249 = arith.mulf %240, %218 : vector<8x128xf32>
    %250 = arith.mulf %234, %242 : vector<8x128xf32>
    %251 = arith.addf %249, %250 : vector<8x128xf32>
    %252 = math.tanh %251 : vector<8x128xf32>
    %253 = arith.mulf %248, %252 : vector<8x128xf32>
    %254 = arith.index_cast %224 : i32 to index
    %c0_83 = arith.constant 0 : index
    %255 = vector.load %arg12[%254, %c0_83] : memref<32x128xf32, #tpu.memory_space<vmem>>, vector<8x128xf32>
    tpu.vector_store %arg12[%254, %c0_83], %253 {strides = array<i32>} : memref<32x128xf32, #tpu.memory_space<vmem>>, vector<8x128xf32>,
    %c3_i32_84 = arith.constant 3 : i32
    %c8_i32_85 = arith.constant 8 : i32
    %256 = arith.muli %c3_i32_84, %c8_i32_85 : i32
    %257 = tpu.assume_multiple %256, 8 : i32
    %258 = arith.index_cast %257 : i32 to index
    %c0_86 = arith.constant 0 : index
    %259 = vector.load %arg11[%258, %c0_86] : memref<32x512xf32, #tpu.memory_space<vmem>>, vector<8x512xf32>
    %cst_87 = arith.constant dense<0.000000e+00> : vector<8x512xf32>
    %260 = tpu.matmul %253, %148, %cst_87 {dimension_numbers = #tpu.dot_dimension_numbers<[1], [0], [0], [1], [0, 0, 1, 1], [], []>} : vector<8x128xf32>, vector<128x512xf32>, vector<8x512xf32> -> vector<8x512xf32>
    %261 = arith.addf %259, %260 : vector<8x512xf32>
    %262 = vector.extract_strided_slice %261 {offsets = [0, 0], sizes = [8, 128], strides = [1, 1]} : vector<8x512xf32> to vector<8x128xf32>
    %263 = arith.negf %262 : vector<8x128xf32>
    %264 = math.exp %263 : vector<8x128xf32>
    %cst_88 = arith.constant 1.000000e+00 : f32
    %265 = vector.broadcast %cst_88 : f32 to vector<8x128xf32>
    %266 = arith.addf %265, %264 : vector<8x128xf32>
    %267 = arith.divf %265, %266 : vector<8x128xf32>
    %268 = vector.extract_strided_slice %261 {offsets = [0, 128], sizes = [8, 128], strides = [1, 1]} : vector<8x512xf32> to vector<8x128xf32>
    %269 = arith.negf %268 : vector<8x128xf32>
    %270 = math.exp %269 : vector<8x128xf32>
    %cst_89 = arith.constant 1.000000e+00 : f32
    %271 = vector.broadcast %cst_89 : f32 to vector<8x128xf32>
    %272 = arith.addf %271, %270 : vector<8x128xf32>
    %273 = arith.divf %271, %272 : vector<8x128xf32>
    %274 = vector.extract_strided_slice %261 {offsets = [0, 256], sizes = [8, 128], strides = [1, 1]} : vector<8x512xf32> to vector<8x128xf32>
    %275 = math.tanh %274 : vector<8x128xf32>
    %276 = vector.extract_strided_slice %261 {offsets = [0, 384], sizes = [8, 128], strides = [1, 1]} : vector<8x512xf32> to vector<8x128xf32>
    %277 = arith.negf %276 : vector<8x128xf32>
    %278 = math.exp %277 : vector<8x128xf32>
    %cst_90 = arith.constant 1.000000e+00 : f32
    %279 = vector.broadcast %cst_90 : f32 to vector<8x128xf32>
    %280 = arith.addf %279, %278 : vector<8x128xf32>
    %281 = arith.divf %279, %280 : vector<8x128xf32>
    %282 = arith.mulf %273, %251 : vector<8x128xf32>
    %283 = arith.mulf %267, %275 : vector<8x128xf32>
    %284 = arith.addf %282, %283 : vector<8x128xf32>
    %285 = math.tanh %284 : vector<8x128xf32>
    %286 = arith.mulf %281, %285 : vector<8x128xf32>
    %287 = arith.index_cast %257 : i32 to index
    %c0_91 = arith.constant 0 : index
    %288 = vector.load %arg12[%287, %c0_91] : memref<32x128xf32, #tpu.memory_space<vmem>>, vector<8x128xf32>
    tpu.vector_store %arg12[%287, %c0_91], %286 {strides = array<i32>} : memref<32x128xf32, #tpu.memory_space<vmem>>, vector<8x128xf32>,
    %c4_i32_92 = arith.constant 4 : i32
    %c8_93 = arith.constant 8 : index
    %c0_94 = arith.constant 0 : index
    %289 = vector.load %arg13[%c8_93, %c0_94] : memref<16x128xf32, #tpu.memory_space<vmem>>, vector<8x128xf32>
    tpu.vector_store %arg13[%c8_93, %c0_94], %286 {strides = array<i32>} : memref<16x128xf32, #tpu.memory_space<vmem>>, vector<8x128xf32>,
    %c8_95 = arith.constant 8 : index
    %c0_96 = arith.constant 0 : index
    %290 = vector.load %arg14[%c8_95, %c0_96] : memref<16x128xf32, #tpu.memory_space<vmem>>, vector<8x128xf32>
    tpu.vector_store %arg14[%c8_95, %c0_96], %284 {strides = array<i32>} : memref<16x128xf32, #tpu.memory_space<vmem>>, vector<8x128xf32>,
    %c0_97 = arith.constant 0 : index
    %c0_98 = arith.constant 0 : index
    %291 = vector.load %arg8[%c0_97, %c0_98] : memref<128x128xf32, #tpu.memory_space<vmem>>, vector<128x128xf32>
    %c0_99 = arith.constant 0 : index
    %c0_100 = arith.constant 0 : index
    %292 = vector.load %arg12[%c0_99, %c0_100] : memref<32x128xf32, #tpu.memory_space<vmem>>, vector<32x128xf32>
    %cst_101 = arith.constant dense<0.000000e+00> : vector<32x128xf32>
    %293 = tpu.matmul %292, %291, %cst_101 {dimension_numbers = #tpu.dot_dimension_numbers<[1], [0], [0], [1], [0, 0, 1, 1], [], []>} : vector<32x128xf32>, vector<128x128xf32>, vector<32x128xf32> -> vector<32x128xf32>
    %c0_102 = arith.constant 0 : index
    %c0_103 = arith.constant 0 : index
    %294 = vector.load %arg9[%c0_102, %c0_103] : memref<1x128xf32, #tpu.memory_space<vmem>>, vector<1x128xf32>
    %295 = vector.broadcast %294 : vector<1x128xf32> to vector<32x128xf32>
    %296 = arith.addf %293, %295 : vector<32x128xf32>
    %297 = tpu.iota {dimensions = array<i32: 1>} : vector<32x128xi32>
    %c16_i32 = arith.constant 16 : i32
    %298 = vector.broadcast %c16_i32 : i32 to vector<32x128xi32>
    %299 = arith.cmpi sge, %297, %298 : vector<32x128xi32>
    %300 = arith.negf %296 : vector<32x128xf32>
    %301 = math.exp %300 : vector<32x128xf32>
    %cst_104 = arith.constant 1.000000e+00 : f32
    %302 = vector.broadcast %cst_104 : f32 to vector<32x128xf32>
    %303 = arith.addf %302, %301 : vector<32x128xf32>
    %304 = arith.divf %302, %303 : vector<32x128xf32>
    %305 = arith.select %299, %304, %296 : vector<32x128xi1>, vector<32x128xf32>
    %c0_105 = arith.constant 0 : index
    %c0_106 = arith.constant 0 : index
    %306 = vector.load %arg10[%c0_105, %c0_106] : memref<32x128xf32, #tpu.memory_space<vmem>>, vector<32x128xf32>
    tpu.vector_store %arg10[%c0_105, %c0_106], %305 {strides = array<i32>} : memref<32x128xf32, #tpu.memory_space<vmem>>, vector<32x128xf32>,
    return
  }
  func.func @transform_0(%arg0: i32) -> (i32, i32) {
    %c0_i32 = arith.constant 0 : i32
    %c0_i32_0 = arith.constant 0 : i32
    return %arg0, %c0_i32 : i32, i32
  }
  func.func @transform_1(%arg0: i32) -> (i32, i32) {
    %c0_i32 = arith.constant 0 : i32
    %c0_i32_0 = arith.constant 0 : i32
    %c0_i32_1 = arith.constant 0 : i32
    return %c0_i32, %c0_i32_0 : i32, i32
  }
  func.func @transform_2(%arg0: i32) -> (i32, i32) {
    %c0_i32 = arith.constant 0 : i32
    %c0_i32_0 = arith.constant 0 : i32
    %c0_i32_1 = arith.constant 0 : i32
    return %c0_i32, %c0_i32_0 : i32, i32
  }
  func.func @transform_3(%arg0: i32) -> (i32, i32) {
    %c0_i32 = arith.constant 0 : i32
    %c0_i32_0 = arith.constant 0 : i32
    %c0_i32_1 = arith.constant 0 : i32
    return %c0_i32, %c0_i32_0 : i32, i32
  }
  func.func @transform_4(%arg0: i32) -> (i32, i32) {
    %c0_i32 = arith.constant 0 : i32
    %c0_i32_0 = arith.constant 0 : i32
    %c0_i32_1 = arith.constant 0 : i32
    return %c0_i32, %c0_i32_0 : i32, i32
  }
  func.func @transform_5(%arg0: i32) -> (i32, i32) {
    %c0_i32 = arith.constant 0 : i32
    %c0_i32_0 = arith.constant 0 : i32
    %c0_i32_1 = arith.constant 0 : i32
    return %c0_i32, %c0_i32_0 : i32, i32
  }
  func.func @transform_6(%arg0: i32) -> (i32, i32) {
    %c0_i32 = arith.constant 0 : i32
    %c0_i32_0 = arith.constant 0 : i32
    %c0_i32_1 = arith.constant 0 : i32
    return %c0_i32, %c0_i32_0 : i32, i32
  }
  func.func @transform_7(%arg0: i32) -> (i32, i32) {
    %c0_i32 = arith.constant 0 : i32
    %c0_i32_0 = arith.constant 0 : i32
    %c0_i32_1 = arith.constant 0 : i32
    return %c0_i32, %c0_i32_0 : i32, i32
  }
  func.func @transform_8(%arg0: i32) -> (i32, i32) {
    %c0_i32 = arith.constant 0 : i32
    %c0_i32_0 = arith.constant 0 : i32
    %c0_i32_1 = arith.constant 0 : i32
    return %c0_i32, %c0_i32_0 : i32, i32
  }
  func.func @transform_9(%arg0: i32) -> (i32, i32) {
    %c0_i32 = arith.constant 0 : i32
    %c0_i32_0 = arith.constant 0 : i32
    return %arg0, %c0_i32 : i32, i32
  }
}

</mosaic_0001>

<llo_original>
// kernel: tpu_custom_call.1
$region0: #{tpu_custom_call.1}
  #allocation0 [shape = 'u32[]', space=smem, size = 0x4, offset = 0x4, fixed_abs, tag = 'smem constant byte address 0x4 - core index']
  #allocation1 [shape = 'u32[72,128]{1,0:T(1,128)}', space=vmem, size = 0x9000, scoped, tag = 'internal scratch']
  #allocation2 [shape = 'f32[32,512]{1,0:T(8,128)}', space=vmem, size = 0x10000, scoped, tag = 'scratch operand']
  #allocation3 [shape = 'f32[32,128]{1,0:T(8,128)}', space=vmem, size = 0x4000, scoped, tag = 'scratch operand']
  #allocation4 [shape = 'f32[16,128]{1,0:T(8,128)}', space=vmem, size = 0x2000, scoped, tag = 'scratch operand']
  #allocation5 [shape = 'f32[16,128]{1,0:T(8,128)}', space=vmem, size = 0x2000, scoped, tag = 'scratch operand']
  %s0 = inlined_call_operand.hbm [shape: f32[64,128], index: 0, kind: input, shape index: {}]
  %s1 = inlined_call_operand.hbm [shape: f32[128,512], index: 1, kind: input, shape index: {}]
  %s2 = inlined_call_operand.hbm [shape: f32[128,512], index: 2, kind: input, shape index: {}]
  %s3 = inlined_call_operand.hbm [shape: f32[1,512], index: 3, kind: input, shape index: {}]
  %s4 = inlined_call_operand.hbm [shape: f32[128,512], index: 4, kind: input, shape index: {}]
  %s5 = inlined_call_operand.hbm [shape: f32[128,512], index: 5, kind: input, shape index: {}]
  %s6 = inlined_call_operand.vmem [shape: f32[1,512], index: 6, kind: input, shape index: {}]
  %s7 = inlined_call_operand.hbm [shape: f32[128,128], index: 7, kind: input, shape index: {}]
  %s8 = inlined_call_operand.vmem [shape: f32[1,128], index: 8, kind: input, shape index: {}]
  %s9 = inlined_call_operand.hbm [shape: f32[64,128], index: 9, kind: output, shape index: {}]
  %s10 = sld [smem:[#allocation0]]
  $region101: #{tpu_custom_call.1} parent=0
    _
  %s12 = ssub.s32 1, %s10
  %s13 = scalar_select 0, %s12, %s10
  $region1: #{tpu_custom_call.1} parent=0
    #allocation6 [shape = 'u8[32768]{0}', space=vmem, size = 0x8000, scoped, tag = 'input window, operand 0']
    #allocation7 [shape = 's32[2]{0}', space=sflag, size = 0x8, scoped, tag = 'scoped memory for tpu_custom_call.1']
    #allocation8 [shape = 's32[2]{0}', space=sflag, size = 0x8, scoped, tag = 'scoped memory for tpu_custom_call.1']
    #allocation9 [shape = 'u8[262144]{0}', space=vmem, size = 0x40000, scoped, tag = 'input window, operand 1, single buffered']
    #allocation10 [shape = 's32[1]{0}', space=sflag, size = 0x4, scoped, tag = 'scoped memory for tpu_custom_call.1']
    #allocation11 [shape = 'u8[262144]{0}', space=vmem, size = 0x40000, scoped, tag = 'input window, operand 2, single buffered']
    #allocation12 [shape = 'u8[2048]{0}', space=vmem, size = 0x800, scoped, tag = 'input window, operand 3, single buffered']
    #allocation13 [shape = 's32[1]{0}', space=sflag, size = 0x4, scoped, tag = 'scoped memory for tpu_custom_call.1']
    #allocation14 [shape = 'u8[262144]{0}', space=vmem, size = 0x40000, scoped, tag = 'input window, operand 4, single buffered']
    #allocation15 [shape = 'u8[262144]{0}', space=vmem, size = 0x40000, scoped, tag = 'input window, operand 5, single buffered']
    #allocation16 [shape = 's32[1]{0}', space=sflag, size = 0x4, scoped, tag = 'scoped memory for tpu_custom_call.1']
    #allocation17 [shape = 'u8[65536]{0}', space=vmem, size = 0x10000, scoped, tag = 'input window, operand 7, single buffered']
    #allocation18 [shape = 'u8[32768]{0}', space=vmem, size = 0x8000, scoped, tag = 'output window, operand 0']
    %14 = vsyncpa [#allocation7], 0
    %s15 = scalar_lea.sflag [#allocation7], 1
    %16 = vsyncpa %s15, 0
    %17 = vsyncpa [#allocation10], 0
    %18 = vsyncpa [#allocation13], 0
    %19 = vsyncpa [#allocation16], 0
    %20 = vsyncpa [#allocation8], 0
    %s21 = scalar_lea.sflag [#allocation8], 1
    %22 = vsyncpa %s21, 0
    loop: start=0, step=1, limit=4
    $region2: #{tpu_custom_call.1} parent=1 // loop_pre_header
      _
    $region3: #{tpu_custom_call.1} parent=1 // loop_header
      %s24 = sphi 0, %s28
      %p25 = scmp.ge.s32.totalorder %s24, 4
      %s34 = sphi 0, %s36
      %s37 = sphi 0, %s34
      %s38 = sphi 0, %s37
      %s54 = sphi 0, %s38
      %s58 = sphi 0, %s58
      %s60 = sphi 0, %s58
      %s61 = sphi 0, %s60
      %s75 = sphi 0, %s61
      %s79 = sphi 0, %s79
      %s81 = sphi 0, %s79
      %s82 = sphi 0, %s81
      %s96 = sphi 0, %s82
      %s100 = sphi 0, %s100
      %s102 = sphi 0, %s100
      %s103 = sphi 0, %s102
      %s117 = sphi 0, %s103
      %s121 = sphi 0, %s121
      %s123 = sphi 0, %s121
      %s124 = sphi 0, %s123
      %s138 = sphi 0, %s124
      %s142 = sphi 0, %s142
      %s144 = sphi 0, %s142
      %s145 = sphi 0, %s144
      %s159 = sphi 0, %s145
      %s163 = sphi 0, %s163
      %s165 = sphi 0, %s163
      %s166 = sphi 0, %s165
      %s180 = sphi 0, %s166
      %s184 = sphi 0, %s184
      %s186 = sphi 0, %s184
      %s187 = sphi 0, %s186
      %s201 = sphi 0, %s187
      %s205 = sphi 0, %s205
      %s207 = sphi 0, %s205
      %s208 = sphi 0, %s207
      %s222 = sphi 0, %s208
      %s228 = sphi 0, %s230
      %s231 = sphi 0, %s228
      %s232 = sphi 0, %s231
      %s248 = sphi 0, %s232
    $region4: #{tpu_custom_call.1} parent=1 // loop_header_branch
      %27 = sbr.rel (%p25) target = $region8
    $region5: #{tpu_custom_call.1} parent=1 // loop_body
      %s29 = ssub.s32 %s24, 1
      %s30 = ssub.s32 %s24, 2
      %s31 = sadd.s32 %s24, 1
      %s32 = ssub.s32 %s24, %s31
      %p33 = scmp.eq.s32.totalorder %s32, 0
      %s35 = sadd.s32 %s34, 1
      %s36 = scalar_select %p33, %s34, %s35
      %p39 = pneg %p33
      %p40 = scmp.eq.s32.totalorder %s24, 1
      %p41 = por %p39, %p40
      %p42 = scmp.ne.s32.totalorder %s34, %s37
      %p43 = scmp.eq.s32.totalorder %s24, 0
      %p44 = por %p42, %p43
      %p45 = scmp.ne.s32.totalorder %s34, %s37
      %p46 = scmp.eq.s32.totalorder %s29, 1
      %p47 = por %p45, %p46
      %p48 = scmp.ne.s32.totalorder %s37, %s38
      %p49 = scmp.eq.s32.totalorder %s29, 0
      %p50 = por %p48, %p49
      %p51 = scmp.ne.s32.totalorder %s37, %s38
      %p52 = scmp.eq.s32.totalorder %s30, 1
      %p53 = por %p51, %p52
      %p55 = scmp.ne.s32.totalorder %s38, %s54
      %p56 = scmp.eq.s32.totalorder %s30, 0
      %p57 = por %p55, %p56
      %s59 = sadd.s32 %s58, 1
      %p62 = scmp.eq.s32.totalorder %s24, 1
      %p63 = scmp.ne.s32.totalorder %s58, %s60
      %p64 = scmp.eq.s32.totalorder %s24, 0
      %p65 = por %p63, %p64
      %p66 = scmp.ne.s32.totalorder %s58, %s60
      %p67 = scmp.eq.s32.totalorder %s29, 1
      %p68 = por %p66, %p67
      %p69 = scmp.ne.s32.totalorder %s60, %s61
      %p70 = scmp.eq.s32.totalorder %s29, 0
      %p71 = por %p69, %p70
      %p72 = scmp.ne.s32.totalorder %s60, %s61
      %p73 = scmp.eq.s32.totalorder %s30, 1
      %p74 = por %p72, %p73
      %p76 = scmp.ne.s32.totalorder %s61, %s75
      %p77 = scmp.eq.s32.totalorder %s30, 0
      %p78 = por %p76, %p77
      %s80 = sadd.s32 %s79, 1
      %p83 = scmp.eq.s32.totalorder %s24, 1
      %p84 = scmp.ne.s32.totalorder %s79, %s81
      %p85 = scmp.eq.s32.totalorder %s24, 0
      %p86 = por %p84, %p85
      %p87 = scmp.ne.s32.totalorder %s79, %s81
      %p88 = scmp.eq.s32.totalorder %s29, 1
      %p89 = por %p87, %p88
      %p90 = scmp.ne.s32.totalorder %s81, %s82
      %p91 = scmp.eq.s32.totalorder %s29, 0
      %p92 = por %p90, %p91
      %p93 = scmp.ne.s32.totalorder %s81, %s82
      %p94 = scmp.eq.s32.totalorder %s30, 1
      %p95 = por %p93, %p94
      %p97 = scmp.ne.s32.totalorder %s82, %s96
      %p98 = scmp.eq.s32.totalorder %s30, 0
      %p99 = por %p97, %p98
      %s101 = sadd.s32 %s100, 1
      %p104 = scmp.eq.s32.totalorder %s24, 1
      %p105 = scmp.ne.s32.totalorder %s100, %s102
      %p106 = scmp.eq.s32.totalorder %s24, 0
      %p107 = por %p105, %p106
      %p108 = scmp.ne.s32.totalorder %s100, %s102
      %p109 = scmp.eq.s32.totalorder %s29, 1
      %p110 = por %p108, %p109
      %p111 = scmp.ne.s32.totalorder %s102, %s103
      %p112 = scmp.eq.s32.totalorder %s29, 0
      %p113 = por %p111, %p112
      %p114 = scmp.ne.s32.totalorder %s102, %s103
      %p115 = scmp.eq.s32.totalorder %s30, 1
      %p116 = por %p114, %p115
      %p118 = scmp.ne.s32.totalorder %s103, %s117
      %p119 = scmp.eq.s32.totalorder %s30, 0
      %p120 = por %p118, %p119
      %s122 = sadd.s32 %s121, 1
      %p125 = scmp.eq.s32.totalorder %s24, 1
      %p126 = scmp.ne.s32.totalorder %s121, %s123
      %p127 = scmp.eq.s32.totalorder %s24, 0
      %p128 = por %p126, %p127
      %p129 = scmp.ne.s32.totalorder %s121, %s123
      %p130 = scmp.eq.s32.totalorder %s29, 1
      %p131 = por %p129, %p130
      %p132 = scmp.ne.s32.totalorder %s123, %s124
      %p133 = scmp.eq.s32.totalorder %s29, 0
      %p134 = por %p132, %p133
      %p135 = scmp.ne.s32.totalorder %s123, %s124
      %p136 = scmp.eq.s32.totalorder %s30, 1
      %p137 = por %p135, %p136
      %p139 = scmp.ne.s32.totalorder %s124, %s138
      %p140 = scmp.eq.s32.totalorder %s30, 0
      %p141 = por %p139, %p140
      %s143 = sadd.s32 %s142, 1
      %p146 = scmp.eq.s32.totalorder %s24, 1
      %p147 = scmp.ne.s32.totalorder %s142, %s144
      %p148 = scmp.eq.s32.totalorder %s24, 0
      %p149 = por %p147, %p148
      %p150 = scmp.ne.s32.totalorder %s142, %s144
      %p151 = scmp.eq.s32.totalorder %s29, 1
      %p152 = por %p150, %p151
      %p153 = scmp.ne.s32.totalorder %s144, %s145
      %p154 = scmp.eq.s32.totalorder %s29, 0
      %p155 = por %p153, %p154
      %p156 = scmp.ne.s32.totalorder %s144, %s145
      %p157 = scmp.eq.s32.totalorder %s30, 1
      %p158 = por %p156, %p157
      %p160 = scmp.ne.s32.totalorder %s145, %s159
      %p161 = scmp.eq.s32.totalorder %s30, 0
      %p162 = por %p160, %p161
      %s164 = sadd.s32 %s163, 1
      %p167 = scmp.eq.s32.totalorder %s24, 1
      %p168 = scmp.ne.s32.totalorder %s163, %s165
      %p169 = scmp.eq.s32.totalorder %s24, 0
      %p170 = por %p168, %p169
      %p171 = scmp.ne.s32.totalorder %s163, %s165
      %p172 = scmp.eq.s32.totalorder %s29, 1
      %p173 = por %p171, %p172
      %p174 = scmp.ne.s32.totalorder %s165, %s166
      %p175 = scmp.eq.s32.totalorder %s29, 0
      %p176 = por %p174, %p175
      %p177 = scmp.ne.s32.totalorder %s165, %s166
      %p178 = scmp.eq.s32.totalorder %s30, 1
      %p179 = por %p177, %p178
      %p181 = scmp.ne.s32.totalorder %s166, %s180
      %p182 = scmp.eq.s32.totalorder %s30, 0
      %p183 = por %p181, %p182
      %s185 = sadd.s32 %s184, 1
      %p188 = scmp.eq.s32.totalorder %s24, 1
      %p189 = scmp.ne.s32.totalorder %s184, %s186
      %p190 = scmp.eq.s32.totalorder %s24, 0
      %p191 = por %p189, %p190
      %p192 = scmp.ne.s32.totalorder %s184, %s186
      %p193 = scmp.eq.s32.totalorder %s29, 1
      %p194 = por %p192, %p193
      %p195 = scmp.ne.s32.totalorder %s186, %s187
      %p196 = scmp.eq.s32.totalorder %s29, 0
      %p197 = por %p195, %p196
      %p198 = scmp.ne.s32.totalorder %s186, %s187
      %p199 = scmp.eq.s32.totalorder %s30, 1
      %p200 = por %p198, %p199
      %p202 = scmp.ne.s32.totalorder %s187, %s201
      %p203 = scmp.eq.s32.totalorder %s30, 0
      %p204 = por %p202, %p203
      %s206 = sadd.s32 %s205, 1
      %p209 = scmp.eq.s32.totalorder %s24, 1
      %p210 = scmp.ne.s32.totalorder %s205, %s207
      %p211 = scmp.eq.s32.totalorder %s24, 0
      %p212 = por %p210, %p211
      %p213 = scmp.ne.s32.totalorder %s205, %s207
      %p214 = scmp.eq.s32.totalorder %s29, 1
      %p215 = por %p213, %p214
      %p216 = scmp.ne.s32.totalorder %s207, %s208
      %p217 = scmp.eq.s32.totalorder %s29, 0
      %p218 = por %p216, %p217
      %p219 = scmp.ne.s32.totalorder %s207, %s208
      %p220 = scmp.eq.s32.totalorder %s30, 1
      %p221 = por %p219, %p220
      %p223 = scmp.ne.s32.totalorder %s208, %s222
      %p224 = scmp.eq.s32.totalorder %s30, 0
      %p225 = por %p223, %p224
      %s226 = ssub.s32 %s24, %s31
      %p227 = scmp.eq.s32.totalorder %s226, 0
      %s229 = sadd.s32 %s228, 1
      %s230 = scalar_select %p227, %s228, %s229
      %p233 = pneg %p227
      %p234 = scmp.eq.s32.totalorder %s24, 1
      %p235 = por %p233, %p234
      %p236 = scmp.ne.s32.totalorder %s228, %s231
      %p237 = scmp.eq.s32.totalorder %s24, 0
      %p238 = por %p236, %p237
      %p239 = scmp.ne.s32.totalorder %s228, %s231
      %p240 = scmp.eq.s32.totalorder %s29, 1
      %p241 = por %p239, %p240
      %p242 = scmp.ne.s32.totalorder %s231, %s232
      %p243 = scmp.eq.s32.totalorder %s29, 0
      %p244 = por %p242, %p243
      %p245 = scmp.ne.s32.totalorder %s231, %s232
      %p246 = scmp.eq.s32.totalorder %s30, 1
      %p247 = por %p245, %p246
      %p249 = scmp.ne.s32.totalorder %s232, %s248
      %p250 = scmp.eq.s32.totalorder %s30, 0
      %p251 = por %p249, %p250
      %p252 = scmp.le.s32.totalorder 1, %s24
      %p253 = scmp.lt.s32.totalorder %s24, 3
      %p254 = pnand %p252, %p253
      %p255 = pneg %p254
      // Predicated region
      $region9: #{tpu_custom_call.1} parent=5 // pred_check
        _
      $region10: #{tpu_custom_call.1} parent=5 // pred_check_branch
        %257 = sbr.rel (%p254) target = $region12
      $region11: #{tpu_custom_call.1} parent=5 // pred_region
        %s258 = ssub.s32 %s24, 1
        // Predicated region
        $region13: #{tpu_custom_call.1} parent=11 // pred_check
          %p259 = pneg %p71
        $region14: #{tpu_custom_call.1} parent=11 // pred_check_branch
          %261 = sbr.rel (%p259) target = $region16
        $region15: #{tpu_custom_call.1} parent=11 // pred_region
          %263 = vsyncadd [#allocation10], 0
          %s264 = sshll.u32 %s1, 4
          %s265 = int_to_ptr.hbm [resolvable:$true] %s264
          %s266 = sshll.u32 [#allocation9], 4
          %s267 = int_to_ptr.vmem [resolvable:$true] %s266
          %272 = dma.hbm_to_vmem [thread:$0]  %s265, 8192, %s267, [#allocation10], 512, 512, 32
        $region16: #{tpu_custom_call.1} parent=11 // pred_fallthru
          _
        // Predicated region
        $region17: #{tpu_custom_call.1} parent=11 // pred_check
          %p273 = pneg %p92
        $region18: #{tpu_custom_call.1} parent=11 // pred_check_branch
          %275 = sbr.rel (%p273) target = $region20
        $region19: #{tpu_custom_call.1} parent=11 // pred_region
          %277 = vsyncadd [#allocation10], 0
          %s278 = sshll.u32 %s2, 4
          %s279 = int_to_ptr.hbm [resolvable:$true] %s278
          %s280 = sshll.u32 [#allocation11], 4
          %s281 = int_to_ptr.vmem [resolvable:$true] %s280
          %286 = dma.hbm_to_vmem [thread:$0]  %s279, 8192, %s281, [#allocation10], 512, 512, 32
        $region20: #{tpu_custom_call.1} parent=11 // pred_fallthru
          _
        // Predicated region
        $region21: #{tpu_custom_call.1} parent=11 // pred_check
          %p287 = pneg %p113
        $region22: #{tpu_custom_call.1} parent=11 // pred_check_branch
          %289 = sbr.rel (%p287) target = $region24
        $region23: #{tpu_custom_call.1} parent=11 // pred_region
          %291 = vsyncadd [#allocation13], 0
          %s293 = sshll.u32 %s3, 4
          %s294 = int_to_ptr.hbm [resolvable:$true] %s293
          %s295 = sshll.u32 [#allocation12], 4
          %s296 = int_to_ptr.vmem [resolvable:$true] %s295
          %298 = dma.hbm_to_vmem [thread:$0]  %s294, 64, %s296, [#allocation13]
        $region24: #{tpu_custom_call.1} parent=11 // pred_fallthru
          _
        // Predicated region
        $region25: #{tpu_custom_call.1} parent=11 // pred_check
          %p299 = pneg %p134
        $region26: #{tpu_custom_call.1} parent=11 // pred_check_branch
          %301 = sbr.rel (%p299) target = $region28
        $region27: #{tpu_custom_call.1} parent=11 // pred_region
          %303 = vsyncadd [#allocation13], 0
          %s304 = sshll.u32 %s4, 4
          %s305 = int_to_ptr.hbm [resolvable:$true] %s304
          %s306 = sshll.u32 [#allocation14], 4
          %s307 = int_to_ptr.vmem [resolvable:$true] %s306
          %312 = dma.hbm_to_vmem [thread:$0]  %s305, 8192, %s307, [#allocation13], 512, 512, 32
        $region28: #{tpu_custom_call.1} parent=11 // pred_fallthru
          _
        // Predicated region
        $region29: #{tpu_custom_call.1} parent=11 // pred_check
          %p313 = pneg %p155
        $region30: #{tpu_custom_call.1} parent=11 // pred_check_branch
          %315 = sbr.rel (%p313) target = $region32
        $region31: #{tpu_custom_call.1} parent=11 // pred_region
          %317 = vsyncadd [#allocation16], 0
          %s318 = sshll.u32 %s5, 4
          %s319 = int_to_ptr.hbm [resolvable:$true] %s318
          %s320 = sshll.u32 [#allocation15], 4
          %s321 = int_to_ptr.vmem [resolvable:$true] %s320
          %326 = dma.hbm_to_vmem [thread:$0]  %s319, 8192, %s321, [#allocation16], 512, 512, 32
        $region32: #{tpu_custom_call.1} parent=11 // pred_fallthru
          _
        // Predicated region
        $region33: #{tpu_custom_call.1} parent=11 // pred_check
          %p327 = pneg %p176
        $region34: #{tpu_custom_call.1} parent=11 // pred_check_branch
          %329 = sbr.rel (%p327) target = $region36
        $region35: #{tpu_custom_call.1} parent=11 // pred_region
          _
        $region36: #{tpu_custom_call.1} parent=11 // pred_fallthru
          _
        // Predicated region
        $region37: #{tpu_custom_call.1} parent=11 // pred_check
          %p330 = pneg %p197
        $region38: #{tpu_custom_call.1} parent=11 // pred_check_branch
          %332 = sbr.rel (%p330) target = $region40
        $region39: #{tpu_custom_call.1} parent=11 // pred_region
          %334 = vsyncadd [#allocation16], 0
          %s335 = sshll.u32 %s7, 4
          %s336 = int_to_ptr.hbm [resolvable:$true] %s335
          %s337 = sshll.u32 [#allocation17], 4
          %s338 = int_to_ptr.vmem [resolvable:$true] %s337
          %343 = dma.hbm_to_vmem [thread:$0]  %s336, 2048, %s338, [#allocation16], 128, 128, 8
        $region40: #{tpu_custom_call.1} parent=11 // pred_fallthru
          _
        // Predicated region
        $region41: #{tpu_custom_call.1} parent=11 // pred_check
          %p344 = pneg %p218
        $region42: #{tpu_custom_call.1} parent=11 // pred_check_branch
          %346 = sbr.rel (%p344) target = $region44
        $region43: #{tpu_custom_call.1} parent=11 // pred_region
          _
        $region44: #{tpu_custom_call.1} parent=11 // pred_fallthru
          _
      $region12: #{tpu_custom_call.1} parent=5 // pred_fallthru
        _
      %p347 = scmp.lt.s32.totalorder %s24, 2
      // Predicated region
      $region45: #{tpu_custom_call.1} parent=5 // pred_check
        %p348 = pneg %p347
      $region46: #{tpu_custom_call.1} parent=5 // pred_check_branch
        %350 = sbr.rel (%p348) target = $region48
      $region47: #{tpu_custom_call.1} parent=5 // pred_region
        // Predicated region
        $region49: #{tpu_custom_call.1} parent=47 // pred_check
          %p351 = pneg %p44
        $region50: #{tpu_custom_call.1} parent=47 // pred_check_branch
          %353 = sbr.rel (%p351) target = $region52
        $region51: #{tpu_custom_call.1} parent=47 // pred_region
          %s354 = sand.u32 %s34, 1
          %s355 = scalar_lea.sflag [#allocation7], %s354
          %s356 = sand.u32 %s34, 1
          %s357 = smul.addr %s356, 32
          %s358 = scalar_lea.vmem [#allocation6], %s357
          %s359 = smul.u32 4, %s24
          %361 = vsyncadd %s355, 0
          %s362 = smul.addr %s359, 8
          %s363 = scalar_lea.hbm %s0, %s362
          %s364 = sshll.u32 %s363, 4
          %s365 = int_to_ptr.hbm [resolvable:$true] %s364
          %s366 = sshll.u32 %s358, 4
          %s367 = int_to_ptr.vmem [resolvable:$true] %s366
          %372 = dma.hbm_to_vmem [thread:$0]  %s365, 512, %s367, %s355, 128, 128, 8
        $region52: #{tpu_custom_call.1} parent=47 // pred_fallthru
          _
      $region48: #{tpu_custom_call.1} parent=5 // pred_fallthru
        _
      %p373 = scmp.le.s32.totalorder 1, %s24
      %p374 = scmp.lt.s32.totalorder %s24, 3
      %p375 = pnand %p373, %p374
      %p376 = pneg %p375
      // Predicated region
      $region53: #{tpu_custom_call.1} parent=5 // pred_check
        _
      $region54: #{tpu_custom_call.1} parent=5 // pred_check_branch
        %378 = sbr.rel (%p375) target = $region56
      $region55: #{tpu_custom_call.1} parent=5 // pred_region
        %s379 = ssub.s32 %s24, 1
        %s380 = sand.u32 %s37, 1
        %s381 = scalar_lea.sflag [#allocation7], %s380
        %s382 = sand.u32 %s37, 1
        %s383 = smul.addr %s382, 32
        %s384 = scalar_lea.vmem [#allocation6], %s383
        // Predicated region
        $region57: #{tpu_custom_call.1} parent=55 // pred_check
          %p385 = pneg %p50
        $region58: #{tpu_custom_call.1} parent=55 // pred_check_branch
          %387 = sbr.rel (%p385) target = $region60
        $region59: #{tpu_custom_call.1} parent=55 // pred_region
          %389 = dma.done %s381, 512
        $region60: #{tpu_custom_call.1} parent=55 // pred_fallthru
          _
        // Predicated region
        $region61: #{tpu_custom_call.1} parent=55 // pred_check
          %p390 = pneg %p71
        $region62: #{tpu_custom_call.1} parent=55 // pred_check_branch
          %392 = sbr.rel (%p390) target = $region64
        $region63: #{tpu_custom_call.1} parent=55 // pred_region
          %394 = dma.done [#allocation10], 8192
        $region64: #{tpu_custom_call.1} parent=55 // pred_fallthru
          _
        // Predicated region
        $region65: #{tpu_custom_call.1} parent=55 // pred_check
          %p395 = pneg %p92
        $region66: #{tpu_custom_call.1} parent=55 // pred_check_branch
          %397 = sbr.rel (%p395) target = $region68
        $region67: #{tpu_custom_call.1} parent=55 // pred_region
          %399 = dma.done [#allocation10], 8192
        $region68: #{tpu_custom_call.1} parent=55 // pred_fallthru
          _
        // Predicated region
        $region69: #{tpu_custom_call.1} parent=55 // pred_check
          %p400 = pneg %p113
        $region70: #{tpu_custom_call.1} parent=55 // pred_check_branch
          %402 = sbr.rel (%p400) target = $region72
        $region71: #{tpu_custom_call.1} parent=55 // pred_region
          %404 = dma.done [#allocation13], 64
        $region72: #{tpu_custom_call.1} parent=55 // pred_fallthru
          _
        // Predicated region
        $region73: #{tpu_custom_call.1} parent=55 // pred_check
          %p405 = pneg %p134
        $region74: #{tpu_custom_call.1} parent=55 // pred_check_branch
          %407 = sbr.rel (%p405) target = $region76
        $region75: #{tpu_custom_call.1} parent=55 // pred_region
          %409 = dma.done [#allocation13], 8192
        $region76: #{tpu_custom_call.1} parent=55 // pred_fallthru
          _
        // Predicated region
        $region77: #{tpu_custom_call.1} parent=55 // pred_check
          %p410 = pneg %p155
        $region78: #{tpu_custom_call.1} parent=55 // pred_check_branch
          %412 = sbr.rel (%p410) target = $region80
        $region79: #{tpu_custom_call.1} parent=55 // pred_region
          %414 = dma.done [#allocation16], 8192
        $region80: #{tpu_custom_call.1} parent=55 // pred_fallthru
          _
        // Predicated region
        $region81: #{tpu_custom_call.1} parent=55 // pred_check
          %p415 = pneg %p197
        $region82: #{tpu_custom_call.1} parent=55 // pred_check_branch
          %417 = sbr.rel (%p415) target = $region84
        $region83: #{tpu_custom_call.1} parent=55 // pred_region
          %419 = dma.done [#allocation16], 2048
        $region84: #{tpu_custom_call.1} parent=55 // pred_fallthru
          _
        %s420 = sand.u32 %s37, 1
        %s421 = scalar_lea.sflag [#allocation7], %s420
        %s422 = sand.u32 %s37, 1
        %s423 = smul.addr %s422, 32
        %s424 = scalar_lea.vmem [#allocation6], %s423
        %p425 = pneg %p50
        %p426 = pneg %p47
        %p427 = pneg %p71
        %p428 = pneg %p68
        %p429 = pneg %p92
        %p430 = pneg %p89
        %p431 = pneg %p113
        %p432 = pneg %p110
        %p433 = pneg %p134
        %p434 = pneg %p131
        %p435 = pneg %p155
        %p436 = pneg %p152
        %p437 = pneg %p176
        %p438 = pneg %p173
        %p439 = pneg %p197
        %p440 = pneg %p194
        %p441 = pneg %p218
        %p442 = pneg %p215
        %p443 = pneg %p244
        %p444 = pneg %p241
        %s445 = sand.u32 %s231, 1
        %s446 = scalar_lea.sflag [#allocation8], %s445
        %s447 = sand.u32 %s231, 1
        %s448 = smul.addr %s447, 32
        %s449 = scalar_lea.vmem [#allocation18], %s448
        %s450 = smul.u32 4, %s29
        %s451 = smul.u32 4, %s29
        %p452 = scmp.eq.s32.totalorder %s29, 0
        // Predicated region
        $region85: #{tpu_custom_call.1} parent=55 // pred_check
          %p453 = pneg %p452
        $region86: #{tpu_custom_call.1} parent=55 // pred_check_branch
          %455 = sbr.rel (%p453) target = $region88
        $region87: #{tpu_custom_call.1} parent=55 // pred_region
          %456 = vst [vmem:[#allocation4] sm:$0xff] 0.0
          %457 = vst [vmem:[#allocation4 + $0x8] sm:$0xff] 0.0
          %458 = vst [vmem:[#allocation5] sm:$0xff] 0.0
          %459 = vst [vmem:[#allocation5 + $0x8] sm:$0xff] 0.0
        $region88: #{tpu_custom_call.1} parent=55 // pred_fallthru
          _
        %v460 = vld [vmem:[#allocation9] sm:$0xff]
        %v461 = vld [vmem:[#allocation9 + $0x8] sm:$0xff]
        %v462 = vld [vmem:[#allocation9 + $0x10] sm:$0xff]
        %v463 = vld [vmem:[#allocation9 + $0x18] sm:$0xff]
        %v464 = vld [vmem:[#allocation9 + $0x20] sm:$0xff]
        %v465 = vld [vmem:[#allocation9 + $0x28] sm:$0xff]
        %v466 = vld [vmem:[#allocation9 + $0x30] sm:$0xff]
        %v467 = vld [vmem:[#allocation9 + $0x38] sm:$0xff]
        %v468 = vld [vmem:[#allocation9 + $0x40] sm:$0xff]
        %v469 = vld [vmem:[#allocation9 + $0x48] sm:$0xff]
        %v470 = vld [vmem:[#allocation9 + $0x50] sm:$0xff]
        %v471 = vld [vmem:[#allocation9 + $0x58] sm:$0xff]
        %v472 = vld [vmem:[#allocation9 + $0x60] sm:$0xff]
        %v473 = vld [vmem:[#allocation9 + $0x68] sm:$0xff]
        %v474 = vld [vmem:[#allocation9 + $0x70] sm:$0xff]
        %v475 = vld [vmem:[#allocation9 + $0x78] sm:$0xff]
        %v476 = vld [vmem:[#allocation9 + $0x80] sm:$0xff]
        %v477 = vld [vmem:[#allocation9 + $0x88] sm:$0xff]
        %v478 = vld [vmem:[#allocation9 + $0x90] sm:$0xff]
        %v479 = vld [vmem:[#allocation9 + $0x98] sm:$0xff]
        %v480 = vld [vmem:[#allocation9 + $0xa0] sm:$0xff]
        %v481 = vld [vmem:[#allocation9 + $0xa8] sm:$0xff]
        %v482 = vld [vmem:[#allocation9 + $0xb0] sm:$0xff]
        %v483 = vld [vmem:[#allocation9 + $0xb8] sm:$0xff]
        %v484 = vld [vmem:[#allocation9 + $0xc0] sm:$0xff]
        %v485 = vld [vmem:[#allocation9 + $0xc8] sm:$0xff]
        %v486 = vld [vmem:[#allocation9 + $0xd0] sm:$0xff]
        %v487 = vld [vmem:[#allocation9 + $0xd8] sm:$0xff]
        %v488 = vld [vmem:[#allocation9 + $0xe0] sm:$0xff]
        %v489 = vld [vmem:[#allocation9 + $0xe8] sm:$0xff]
        %v490 = vld [vmem:[#allocation9 + $0xf0] sm:$0xff]
        %v491 = vld [vmem:[#allocation9 + $0xf8] sm:$0xff]
        %v492 = vld [vmem:[#allocation9 + $0x100] sm:$0xff]
        %v493 = vld [vmem:[#allocation9 + $0x108] sm:$0xff]
        %v494 = vld [vmem:[#allocation9 + $0x110] sm:$0xff]
        %v495 = vld [vmem:[#allocation9 + $0x118] sm:$0xff]
        %v496 = vld [vmem:[#allocation9 + $0x120] sm:$0xff]
        %v497 = vld [vmem:[#allocation9 + $0x128] sm:$0xff]
        %v498 = vld [vmem:[#allocation9 + $0x130] sm:$0xff]
        %v499 = vld [vmem:[#allocation9 + $0x138] sm:$0xff]
        %v500 = vld [vmem:[#allocation9 + $0x140] sm:$0xff]
        %v501 = vld [vmem:[#allocation9 + $0x148] sm:$0xff]
        %v502 = vld [vmem:[#allocation9 + $0x150] sm:$0xff]
        %v503 = vld [vmem:[#allocation9 + $0x158] sm:$0xff]
        %v504 = vld [vmem:[#allocation9 + $0x160] sm:$0xff]
        %v505 = vld [vmem:[#allocation9 + $0x168] sm:$0xff]
        %v506 = vld [vmem:[#allocation9 + $0x170] sm:$0xff]
        %v507 = vld [vmem:[#allocation9 + $0x178] sm:$0xff]
        %v508 = vld [vmem:[#allocation9 + $0x180] sm:$0xff]
        %v509 = vld [vmem:[#allocation9 + $0x188] sm:$0xff]
        %v510 = vld [vmem:[#allocation9 + $0x190] sm:$0xff]
        %v511 = vld [vmem:[#allocation9 + $0x198] sm:$0xff]
        %v512 = vld [vmem:[#allocation9 + $0x1a0] sm:$0xff]
        %v513 = vld [vmem:[#allocation9 + $0x1a8] sm:$0xff]
        %v514 = vld [vmem:[#allocation9 + $0x1b0] sm:$0xff]
        %v515 = vld [vmem:[#allocation9 + $0x1b8] sm:$0xff]
        %v516 = vld [vmem:[#allocation9 + $0x1c0] sm:$0xff]
        %v517 = vld [vmem:[#allocation9 + $0x1c8] sm:$0xff]
        %v518 = vld [vmem:[#allocation9 + $0x1d0] sm:$0xff]
        %v519 = vld [vmem:[#allocation9 + $0x1d8] sm:$0xff]
        %v520 = vld [vmem:[#allocation9 + $0x1e0] sm:$0xff]
        %v521 = vld [vmem:[#allocation9 + $0x1e8] sm:$0xff]
        %v522 = vld [vmem:[#allocation9 + $0x1f0] sm:$0xff]
        %v523 = vld [vmem:[#allocation9 + $0x1f8] sm:$0xff]
        %v524 = vld [vmem:[#allocation11] sm:$0xff]
        %v525 = vld [vmem:[#allocation11 + $0x8] sm:$0xff]
        %v526 = vld [vmem:[#allocation11 + $0x10] sm:$0xff]
        %v527 = vld [vmem:[#allocation11 + $0x18] sm:$0xff]
        %v528 = vld [vmem:[#allocation11 + $0x20] sm:$0xff]
        %v529 = vld [vmem:[#allocation11 + $0x28] sm:$0xff]
        %v530 = vld [vmem:[#allocation11 + $0x30] sm:$0xff]
        %v531 = vld [vmem:[#allocation11 + $0x38] sm:$0xff]
        %v532 = vld [vmem:[#allocation11 + $0x40] sm:$0xff]
        %v533 = vld [vmem:[#allocation11 + $0x48] sm:$0xff]
        %v534 = vld [vmem:[#allocation11 + $0x50] sm:$0xff]
        %v535 = vld [vmem:[#allocation11 + $0x58] sm:$0xff]
        %v536 = vld [vmem:[#allocation11 + $0x60] sm:$0xff]
        %v537 = vld [vmem:[#allocation11 + $0x68] sm:$0xff]
        %v538 = vld [vmem:[#allocation11 + $0x70] sm:$0xff]
        %v539 = vld [vmem:[#allocation11 + $0x78] sm:$0xff]
        %v540 = vld [vmem:[#allocation11 + $0x80] sm:$0xff]
        %v541 = vld [vmem:[#allocation11 + $0x88] sm:$0xff]
        %v542 = vld [vmem:[#allocation11 + $0x90] sm:$0xff]
        %v543 = vld [vmem:[#allocation11 + $0x98] sm:$0xff]
        %v544 = vld [vmem:[#allocation11 + $0xa0] sm:$0xff]
        %v545 = vld [vmem:[#allocation11 + $0xa8] sm:$0xff]
        %v546 = vld [vmem:[#allocation11 + $0xb0] sm:$0xff]
        %v547 = vld [vmem:[#allocation11 + $0xb8] sm:$0xff]
        %v548 = vld [vmem:[#allocation11 + $0xc0] sm:$0xff]
        %v549 = vld [vmem:[#allocation11 + $0xc8] sm:$0xff]
        %v550 = vld [vmem:[#allocation11 + $0xd0] sm:$0xff]
        %v551 = vld [vmem:[#allocation11 + $0xd8] sm:$0xff]
        %v552 = vld [vmem:[#allocation11 + $0xe0] sm:$0xff]
        %v553 = vld [vmem:[#allocation11 + $0xe8] sm:$0xff]
        %v554 = vld [vmem:[#allocation11 + $0xf0] sm:$0xff]
        %v555 = vld [vmem:[#allocation11 + $0xf8] sm:$0xff]
        %v556 = vld [vmem:[#allocation11 + $0x100] sm:$0xff]
        %v557 = vld [vmem:[#allocation11 + $0x108] sm:$0xff]
        %v558 = vld [vmem:[#allocation11 + $0x110] sm:$0xff]
        %v559 = vld [vmem:[#allocation11 + $0x118] sm:$0xff]
        %v560 = vld [vmem:[#allocation11 + $0x120] sm:$0xff]
        %v561 = vld [vmem:[#allocation11 + $0x128] sm:$0xff]
        %v562 = vld [vmem:[#allocation11 + $0x130] sm:$0xff]
        %v563 = vld [vmem:[#allocation11 + $0x138] sm:$0xff]
        %v564 = vld [vmem:[#allocation11 + $0x140] sm:$0xff]
        %v565 = vld [vmem:[#allocation11 + $0x148] sm:$0xff]
        %v566 = vld [vmem:[#allocation11 + $0x150] sm:$0xff]
        %v567 = vld [vmem:[#allocation11 + $0x158] sm:$0xff]
        %v568 = vld [vmem:[#allocation11 + $0x160] sm:$0xff]
        %v569 = vld [vmem:[#allocation11 + $0x168] sm:$0xff]
        %v570 = vld [vmem:[#allocation11 + $0x170] sm:$0xff]
        %v571 = vld [vmem:[#allocation11 + $0x178] sm:$0xff]
        %v572 = vld [vmem:[#allocation11 + $0x180] sm:$0xff]
        %v573 = vld [vmem:[#allocation11 + $0x188] sm:$0xff]
        %v574 = vld [vmem:[#allocation11 + $0x190] sm:$0xff]
        %v575 = vld [vmem:[#allocation11 + $0x198] sm:$0xff]
        %v576 = vld [vmem:[#allocation11 + $0x1a0] sm:$0xff]
        %v577 = vld [vmem:[#allocation11 + $0x1a8] sm:$0xff]
        %v578 = vld [vmem:[#allocation11 + $0x1b0] sm:$0xff]
        %v579 = vld [vmem:[#allocation11 + $0x1b8] sm:$0xff]
        %v580 = vld [vmem:[#allocation11 + $0x1c0] sm:$0xff]
        %v581 = vld [vmem:[#allocation11 + $0x1c8] sm:$0xff]
        %v582 = vld [vmem:[#allocation11 + $0x1d0] sm:$0xff]
        %v583 = vld [vmem:[#allocation11 + $0x1d8] sm:$0xff]
        %v584 = vld [vmem:[#allocation11 + $0x1e0] sm:$0xff]
        %v585 = vld [vmem:[#allocation11 + $0x1e8] sm:$0xff]
        %v586 = vld [vmem:[#allocation11 + $0x1f0] sm:$0xff]
        %v587 = vld [vmem:[#allocation11 + $0x1f8] sm:$0xff]
        %v588 = vld [vmem:[#allocation12] sm:$0xf]
        %v589 = vld [vmem:[%s384] sm:$0xff]
        %v590 = vld [vmem:[%s384 + $0x8] sm:$0xff]
        %v591 = vld [vmem:[%s384 + $0x10] sm:$0xff]
        %v592 = vld [vmem:[%s384 + $0x18] sm:$0xff]
        %v594 = vperm.slane %v588, 0
        %v595 = vperm.slane %v588, 1
        %v596 = vperm.slane %v588, 2
        %v597 = vperm.slane %v588, 3
        %602 = vmatpush.msra.mxu0 %v520
        %603 = vmatpush.msra.mxu0 %v516
        %604 = vmatpush.msra.mxu0 %v512
        %605 = vmatpush.msra.mxu0 %v508
        %606 = vmatpush.msra.mxu0 %v504
        %607 = vmatpush.msra.mxu0 %v500
        %608 = vmatpush.msra.mxu0 %v496
        %609 = vmatpush.msra.mxu0 %v492
        %610 = vmatpush.msra.mxu0 %v488
        %611 = vmatpush.msra.mxu0 %v484
        %612 = vmatpush.msra.mxu0 %v480
        %613 = vmatpush.msra.mxu0 %v476
        %614 = vmatpush.msra.mxu0 %v472
        %615 = vmatpush.msra.mxu0 %v468
        %616 = vmatpush.msra.mxu0 %v464
        %617 = vmatpush.msra.mxu0 %v460
        %618 = vmatmul.f32.gmra.mxu0 %v589
        %v619 = vpop.f32.mrf.mxu0
        %v620 = vadd.f32 %v594, %v619
        %621 = vmatmul.f32.gmra.mxu0 %v590
        %v622 = vpop.f32.mrf.mxu0
        %v623 = vadd.f32 %v594, %v622
        %624 = vmatmul.f32.gmra.mxu0 %v591
        %v625 = vpop.f32.mrf.mxu0
        %v626 = vadd.f32 %v594, %v625
        %627 = vmatmul.f32.gmra.mxu0 %v592
        %v628 = vpop.f32.mrf.mxu0
        %v629 = vadd.f32 %v594, %v628
        %630 = vdwg.mxu0
        %631 = vmatpush.msra.mxu0 %v521
        %632 = vmatpush.msra.mxu0 %v517
        %633 = vmatpush.msra.mxu0 %v513
        %634 = vmatpush.msra.mxu0 %v509
        %635 = vmatpush.msra.mxu0 %v505
        %636 = vmatpush.msra.mxu0 %v501
        %637 = vmatpush.msra.mxu0 %v497
        %638 = vmatpush.msra.mxu0 %v493
        %639 = vmatpush.msra.mxu0 %v489
        %640 = vmatpush.msra.mxu0 %v485
        %641 = vmatpush.msra.mxu0 %v481
        %642 = vmatpush.msra.mxu0 %v477
        %643 = vmatpush.msra.mxu0 %v473
        %644 = vmatpush.msra.mxu0 %v469
        %645 = vmatpush.msra.mxu0 %v465
        %646 = vmatpush.msra.mxu0 %v461
        %647 = vmatmul.f32.gmra.mxu0 %v589
        %v648 = vpop.f32.mrf.mxu0
        %v649 = vadd.f32 %v595, %v648
        %650 = vmatmul.f32.gmra.mxu0 %v590
        %v651 = vpop.f32.mrf.mxu0
        %v652 = vadd.f32 %v595, %v651
        %653 = vmatmul.f32.gmra.mxu0 %v591
        %v654 = vpop.f32.mrf.mxu0
        %v655 = vadd.f32 %v595, %v654
        %656 = vmatmul.f32.gmra.mxu0 %v592
        %v657 = vpop.f32.mrf.mxu0
        %v658 = vadd.f32 %v595, %v657
        %659 = vdwg.mxu0
        %660 = vmatpush.msra.mxu0 %v522
        %661 = vmatpush.msra.mxu0 %v518
        %662 = vmatpush.msra.mxu0 %v514
        %663 = vmatpush.msra.mxu0 %v510
        %664 = vmatpush.msra.mxu0 %v506
        %665 = vmatpush.msra.mxu0 %v502
        %666 = vmatpush.msra.mxu0 %v498
        %667 = vmatpush.msra.mxu0 %v494
        %668 = vmatpush.msra.mxu0 %v490
        %669 = vmatpush.msra.mxu0 %v486
        %670 = vmatpush.msra.mxu0 %v482
        %671 = vmatpush.msra.mxu0 %v478
        %672 = vmatpush.msra.mxu0 %v474
        %673 = vmatpush.msra.mxu0 %v470
        %674 = vmatpush.msra.mxu0 %v466
        %675 = vmatpush.msra.mxu0 %v462
        %676 = vmatmul.f32.gmra.mxu0 %v589
        %v677 = vpop.f32.mrf.mxu0
        %v678 = vadd.f32 %v596, %v677
        %679 = vmatmul.f32.gmra.mxu0 %v590
        %v680 = vpop.f32.mrf.mxu0
        %v681 = vadd.f32 %v596, %v680
        %682 = vmatmul.f32.gmra.mxu0 %v591
        %v683 = vpop.f32.mrf.mxu0
        %v684 = vadd.f32 %v596, %v683
        %685 = vmatmul.f32.gmra.mxu0 %v592
        %v686 = vpop.f32.mrf.mxu0
        %v687 = vadd.f32 %v596, %v686
        %688 = vdwg.mxu0
        %689 = vmatpush.msra.mxu0 %v523
        %690 = vmatpush.msra.mxu0 %v519
        %691 = vmatpush.msra.mxu0 %v515
        %692 = vmatpush.msra.mxu0 %v511
        %693 = vmatpush.msra.mxu0 %v507
        %694 = vmatpush.msra.mxu0 %v503
        %695 = vmatpush.msra.mxu0 %v499
        %696 = vmatpush.msra.mxu0 %v495
        %697 = vmatpush.msra.mxu0 %v491
        %698 = vmatpush.msra.mxu0 %v487
        %699 = vmatpush.msra.mxu0 %v483
        %700 = vmatpush.msra.mxu0 %v479
        %701 = vmatpush.msra.mxu0 %v475
        %702 = vmatpush.msra.mxu0 %v471
        %703 = vmatpush.msra.mxu0 %v467
        %704 = vmatpush.msra.mxu0 %v463
        %705 = vmatmul.f32.gmra.mxu0 %v589
        %v706 = vpop.f32.mrf.mxu0
        %v707 = vadd.f32 %v597, %v706
        %708 = vmatmul.f32.gmra.mxu0 %v590
        %v709 = vpop.f32.mrf.mxu0
        %v710 = vadd.f32 %v597, %v709
        %711 = vmatmul.f32.gmra.mxu0 %v591
        %v712 = vpop.f32.mrf.mxu0
        %v713 = vadd.f32 %v597, %v712
        %714 = vmatmul.f32.gmra.mxu0 %v592
        %v715 = vpop.f32.mrf.mxu0
        %v716 = vadd.f32 %v597, %v715
        %717 = vdwg.mxu0
        %718 = vst [vmem:[#allocation2] sm:$0xff] %v620
        %719 = vst [vmem:[#allocation2 + $0x8] sm:$0xff] %v649
        %720 = vst [vmem:[#allocation2 + $0x10] sm:$0xff] %v678
        %721 = vst [vmem:[#allocation2 + $0x18] sm:$0xff] %v707
        %722 = vst [vmem:[#allocation2 + $0x20] sm:$0xff] %v623
        %723 = vst [vmem:[#allocation2 + $0x28] sm:$0xff] %v652
        %724 = vst [vmem:[#allocation2 + $0x30] sm:$0xff] %v681
        %725 = vst [vmem:[#allocation2 + $0x38] sm:$0xff] %v710
        %726 = vst [vmem:[#allocation2 + $0x40] sm:$0xff] %v626
        %727 = vst [vmem:[#allocation2 + $0x48] sm:$0xff] %v655
        %728 = vst [vmem:[#allocation2 + $0x50] sm:$0xff] %v684
        %729 = vst [vmem:[#allocation2 + $0x58] sm:$0xff] %v713
        %730 = vst [vmem:[#allocation2 + $0x60] sm:$0xff] %v629
        %731 = vst [vmem:[#allocation2 + $0x68] sm:$0xff] %v658
        %732 = vst [vmem:[#allocation2 + $0x70] sm:$0xff] %v687
        %733 = vst [vmem:[#allocation2 + $0x78] sm:$0xff] %v716
        %v734 = vld [vmem:[#allocation4] sm:$0xff]
        %v735 = vld [vmem:[#allocation5] sm:$0xff]
        %s736 = smul.u32 0, 4
        %s737 = smul.addr %s736, 8
        %s738 = scalar_lea.vmem [#allocation2], %s737
        %v739 = vld [vmem:[%s738] sm:$0xff]
        %v740 = vld [vmem:[%s738 + $0x8] sm:$0xff]
        %v741 = vld [vmem:[%s738 + $0x10] sm:$0xff]
        %v742 = vld [vmem:[%s738 + $0x18] sm:$0xff]
        %743 = vmatpush.msra.mxu0 %v584
        %744 = vmatpush.msra.mxu0 %v580
        %745 = vmatpush.msra.mxu0 %v576
        %746 = vmatpush.msra.mxu0 %v572
        %747 = vmatpush.msra.mxu0 %v568
        %748 = vmatpush.msra.mxu0 %v564
        %749 = vmatpush.msra.mxu0 %v560
        %750 = vmatpush.msra.mxu0 %v556
        %751 = vmatpush.msra.mxu0 %v552
        %752 = vmatpush.msra.mxu0 %v548
        %753 = vmatpush.msra.mxu0 %v544
        %754 = vmatpush.msra.mxu0 %v540
        %755 = vmatpush.msra.mxu0 %v536
        %756 = vmatpush.msra.mxu0 %v532
        %757 = vmatpush.msra.mxu0 %v528
        %758 = vmatpush.msra.mxu0 %v524
        %759 = vmatmul.f32.gmra.mxu0 %v734
        %v760 = vpop.f32.mrf.mxu0
        %v761 = vadd.f32 0.0, %v760
        %762 = vdwg.mxu0
        %763 = vmatpush.msra.mxu0 %v585
        %764 = vmatpush.msra.mxu0 %v581
        %765 = vmatpush.msra.mxu0 %v577
        %766 = vmatpush.msra.mxu0 %v573
        %767 = vmatpush.msra.mxu0 %v569
        %768 = vmatpush.msra.mxu0 %v565
        %769 = vmatpush.msra.mxu0 %v561
        %770 = vmatpush.msra.mxu0 %v557
        %771 = vmatpush.msra.mxu0 %v553
        %772 = vmatpush.msra.mxu0 %v549
        %773 = vmatpush.msra.mxu0 %v545
        %774 = vmatpush.msra.mxu0 %v541
        %775 = vmatpush.msra.mxu0 %v537
        %776 = vmatpush.msra.mxu0 %v533
        %777 = vmatpush.msra.mxu0 %v529
        %778 = vmatpush.msra.mxu0 %v525
        %779 = vmatmul.f32.gmra.mxu0 %v734
        %v780 = vpop.f32.mrf.mxu0
        %v781 = vadd.f32 0.0, %v780
        %782 = vdwg.mxu0
        %783 = vmatpush.msra.mxu0 %v586
        %784 = vmatpush.msra.mxu0 %v582
        %785 = vmatpush.msra.mxu0 %v578
        %786 = vmatpush.msra.mxu0 %v574
        %787 = vmatpush.msra.mxu0 %v570
        %788 = vmatpush.msra.mxu0 %v566
        %789 = vmatpush.msra.mxu0 %v562
        %790 = vmatpush.msra.mxu0 %v558
        %791 = vmatpush.msra.mxu0 %v554
        %792 = vmatpush.msra.mxu0 %v550
        %793 = vmatpush.msra.mxu0 %v546
        %794 = vmatpush.msra.mxu0 %v542
        %795 = vmatpush.msra.mxu0 %v538
        %796 = vmatpush.msra.mxu0 %v534
        %797 = vmatpush.msra.mxu0 %v530
        %798 = vmatpush.msra.mxu0 %v526
        %799 = vmatmul.f32.gmra.mxu0 %v734
        %v800 = vpop.f32.mrf.mxu0
        %v801 = vadd.f32 0.0, %v800
        %802 = vdwg.mxu0
        %803 = vmatpush.msra.mxu0 %v587
        %804 = vmatpush.msra.mxu0 %v583
        %805 = vmatpush.msra.mxu0 %v579
        %806 = vmatpush.msra.mxu0 %v575
        %807 = vmatpush.msra.mxu0 %v571
        %808 = vmatpush.msra.mxu0 %v567
        %809 = vmatpush.msra.mxu0 %v563
        %810 = vmatpush.msra.mxu0 %v559
        %811 = vmatpush.msra.mxu0 %v555
        %812 = vmatpush.msra.mxu0 %v551
        %813 = vmatpush.msra.mxu0 %v547
        %814 = vmatpush.msra.mxu0 %v543
        %815 = vmatpush.msra.mxu0 %v539
        %816 = vmatpush.msra.mxu0 %v535
        %817 = vmatpush.msra.mxu0 %v531
        %818 = vmatpush.msra.mxu0 %v527
        %819 = vmatmul.f32.gmra.mxu0 %v734
        %v820 = vpop.f32.mrf.mxu0
        %v821 = vadd.f32 0.0, %v820
        %822 = vdwg.mxu0
        %v823 = vadd.f32 %v739, %v761
        %v824 = vadd.f32 %v740, %v781
        %v825 = vadd.f32 %v741, %v801
        %v826 = vadd.f32 %v742, %v821
        %v827 = vxor.u32 %v823, 2147483648
        %v828 = vmul.f32 %v827, 1.442695
        %v829 = vpow.pop %v828
        %v830 = vadd.f32 %v829, 1.0
        %v831 = vrcp.pop %v830
        %v832 = vmul.f32 %v830, %v831
        %v833 = vsub.f32 1.0, %v832
        %v834 = vmul.f32 %v831, %v833
        %v835 = vadd.f32 %v831, %v834
        %vm836 = vweird.f32 %v830
        %vm837 = vweird.f32 %v831
        %vm838 = vmor %vm836, %vm837
        %v839 = vsel %vm838, %v831, %v835
        %v840 = vand.u32 2147483647, %v830
        %vm841 = vcmp.eq.f32.partialorder %v840, 8.507059e+37
        %v842 = vand.u32 %v830, 2147483648
        %v843 = vor.u32 1.1754944e-38, %v842
        %v844 = vsel %vm841, %v843, %v839
        %v845 = vmul.f32 1.0, %v844
        %v846 = vxor.u32 %v824, 2147483648
        %v847 = vmul.f32 %v846, 1.442695
        %v848 = vpow.pop %v847
        %v849 = vadd.f32 %v848, 1.0
        %v850 = vrcp.pop %v849
        %v851 = vmul.f32 %v849, %v850
        %v852 = vsub.f32 1.0, %v851
        %v853 = vmul.f32 %v850, %v852
        %v854 = vadd.f32 %v850, %v853
        %vm855 = vweird.f32 %v849
        %vm856 = vweird.f32 %v850
        %vm857 = vmor %vm855, %vm856
        %v858 = vsel %vm857, %v850, %v854
        %v859 = vand.u32 2147483647, %v849
        %vm860 = vcmp.eq.f32.partialorder %v859, 8.507059e+37
        %v861 = vand.u32 %v849, 2147483648
        %v862 = vor.u32 1.1754944e-38, %v861
        %v863 = vsel %vm860, %v862, %v858
        %v864 = vmul.f32 1.0, %v863
        %v865 = vtanh.pop %v825
        %v866 = vxor.u32 %v826, 2147483648
        %v867 = vmul.f32 %v866, 1.442695
        %v868 = vpow.pop %v867
        %v869 = vadd.f32 %v868, 1.0
        %v870 = vrcp.pop %v869
        %v871 = vmul.f32 %v869, %v870
        %v872 = vsub.f32 1.0, %v871
        %v873 = vmul.f32 %v870, %v872
        %v874 = vadd.f32 %v870, %v873
        %vm875 = vweird.f32 %v869
        %vm876 = vweird.f32 %v870
        %vm877 = vmor %vm875, %vm876
        %v878 = vsel %vm877, %v870, %v874
        %v879 = vand.u32 2147483647, %v869
        %vm880 = vcmp.eq.f32.partialorder %v879, 8.507059e+37
        %v881 = vand.u32 %v869, 2147483648
        %v882 = vor.u32 1.1754944e-38, %v881
        %v883 = vsel %vm880, %v882, %v878
        %v884 = vmul.f32 1.0, %v883
        %v885 = vmul.f32 %v864, %v735
        %v886 = vmul.f32 %v845, %v865
        %v887 = vadd.f32 %v885, %v886
        %v888 = vtanh.pop %v887
        %v889 = vmul.f32 %v884, %v888
        %890 = vst [vmem:[#allocation3] sm:$0xff] %v889
        %s891 = smul.u32 1, 4
        %s892 = smul.addr %s891, 8
        %s893 = scalar_lea.vmem [#allocation2], %s892
        %v894 = vld [vmem:[%s893] sm:$0xff]
        %v895 = vld [vmem:[%s893 + $0x8] sm:$0xff]
        %v896 = vld [vmem:[%s893 + $0x10] sm:$0xff]
        %v897 = vld [vmem:[%s893 + $0x18] sm:$0xff]
        %898 = vmatpush.msra.mxu0 %v584
        %899 = vmatpush.msra.mxu0 %v580
        %900 = vmatpush.msra.mxu0 %v576
        %901 = vmatpush.msra.mxu0 %v572
        %902 = vmatpush.msra.mxu0 %v568
        %903 = vmatpush.msra.mxu0 %v564
        %904 = vmatpush.msra.mxu0 %v560
        %905 = vmatpush.msra.mxu0 %v556
        %906 = vmatpush.msra.mxu0 %v552
        %907 = vmatpush.msra.mxu0 %v548
        %908 = vmatpush.msra.mxu0 %v544
        %909 = vmatpush.msra.mxu0 %v540
        %910 = vmatpush.msra.mxu0 %v536
        %911 = vmatpush.msra.mxu0 %v532
        %912 = vmatpush.msra.mxu0 %v528
        %913 = vmatpush.msra.mxu0 %v524
        %914 = vmatmul.f32.gmra.mxu0 %v889
        %v915 = vpop.f32.mrf.mxu0
        %v916 = vadd.f32 0.0, %v915
        %917 = vdwg.mxu0
        %918 = vmatpush.msra.mxu0 %v585
        %919 = vmatpush.msra.mxu0 %v581
        %920 = vmatpush.msra.mxu0 %v577
        %921 = vmatpush.msra.mxu0 %v573
        %922 = vmatpush.msra.mxu0 %v569
        %923 = vmatpush.msra.mxu0 %v565
        %924 = vmatpush.msra.mxu0 %v561
        %925 = vmatpush.msra.mxu0 %v557
        %926 = vmatpush.msra.mxu0 %v553
        %927 = vmatpush.msra.mxu0 %v549
        %928 = vmatpush.msra.mxu0 %v545
        %929 = vmatpush.msra.mxu0 %v541
        %930 = vmatpush.msra.mxu0 %v537
        %931 = vmatpush.msra.mxu0 %v533
        %932 = vmatpush.msra.mxu0 %v529
        %933 = vmatpush.msra.mxu0 %v525
        %934 = vmatmul.f32.gmra.mxu0 %v889
        %v935 = vpop.f32.mrf.mxu0
        %v936 = vadd.f32 0.0, %v935
        %937 = vdwg.mxu0
        %938 = vmatpush.msra.mxu0 %v586
        %939 = vmatpush.msra.mxu0 %v582
        %940 = vmatpush.msra.mxu0 %v578
        %941 = vmatpush.msra.mxu0 %v574
        %942 = vmatpush.msra.mxu0 %v570
        %943 = vmatpush.msra.mxu0 %v566
        %944 = vmatpush.msra.mxu0 %v562
        %945 = vmatpush.msra.mxu0 %v558
        %946 = vmatpush.msra.mxu0 %v554
        %947 = vmatpush.msra.mxu0 %v550
        %948 = vmatpush.msra.mxu0 %v546
        %949 = vmatpush.msra.mxu0 %v542
        %950 = vmatpush.msra.mxu0 %v538
        %951 = vmatpush.msra.mxu0 %v534
        %952 = vmatpush.msra.mxu0 %v530
        %953 = vmatpush.msra.mxu0 %v526
        %954 = vmatmul.f32.gmra.mxu0 %v889
        %v955 = vpop.f32.mrf.mxu0
        %v956 = vadd.f32 0.0, %v955
        %957 = vdwg.mxu0
        %958 = vmatpush.msra.mxu0 %v587
        %959 = vmatpush.msra.mxu0 %v583
        %960 = vmatpush.msra.mxu0 %v579
        %961 = vmatpush.msra.mxu0 %v575
        %962 = vmatpush.msra.mxu0 %v571
        %963 = vmatpush.msra.mxu0 %v567
        %964 = vmatpush.msra.mxu0 %v563
        %965 = vmatpush.msra.mxu0 %v559
        %966 = vmatpush.msra.mxu0 %v555
        %967 = vmatpush.msra.mxu0 %v551
        %968 = vmatpush.msra.mxu0 %v547
        %969 = vmatpush.msra.mxu0 %v543
        %970 = vmatpush.msra.mxu0 %v539
        %971 = vmatpush.msra.mxu0 %v535
        %972 = vmatpush.msra.mxu0 %v531
        %973 = vmatpush.msra.mxu0 %v527
        %974 = vmatmul.f32.gmra.mxu0 %v889
        %v975 = vpop.f32.mrf.mxu0
        %v976 = vadd.f32 0.0, %v975
        %977 = vdwg.mxu0
        %v978 = vadd.f32 %v894, %v916
        %v979 = vadd.f32 %v895, %v936
        %v980 = vadd.f32 %v896, %v956
        %v981 = vadd.f32 %v897, %v976
        %v982 = vxor.u32 %v978, 2147483648
        %v983 = vmul.f32 %v982, 1.442695
        %v984 = vpow.pop %v983
        %v985 = vadd.f32 %v984, 1.0
        %v986 = vrcp.pop %v985
        %v987 = vmul.f32 %v985, %v986
        %v988 = vsub.f32 1.0, %v987
        %v989 = vmul.f32 %v986, %v988
        %v990 = vadd.f32 %v986, %v989
        %vm991 = vweird.f32 %v985
        %vm992 = vweird.f32 %v986
        %vm993 = vmor %vm991, %vm992
        %v994 = vsel %vm993, %v986, %v990
        %v995 = vand.u32 2147483647, %v985
        %vm996 = vcmp.eq.f32.partialorder %v995, 8.507059e+37
        %v997 = vand.u32 %v985, 2147483648
        %v998 = vor.u32 1.1754944e-38, %v997
        %v999 = vsel %vm996, %v998, %v994
        %v1000 = vmul.f32 1.0, %v999
        %v1001 = vxor.u32 %v979, 2147483648
        %v1002 = vmul.f32 %v1001, 1.442695
        %v1003 = vpow.pop %v1002
        %v1004 = vadd.f32 %v1003, 1.0
        %v1005 = vrcp.pop %v1004
        %v1006 = vmul.f32 %v1004, %v1005
        %v1007 = vsub.f32 1.0, %v1006
        %v1008 = vmul.f32 %v1005, %v1007
        %v1009 = vadd.f32 %v1005, %v1008
        %vm1010 = vweird.f32 %v1004
        %vm1011 = vweird.f32 %v1005
        %vm1012 = vmor %vm1010, %vm1011
        %v1013 = vsel %vm1012, %v1005, %v1009
        %v1014 = vand.u32 2147483647, %v1004
        %vm1015 = vcmp.eq.f32.partialorder %v1014, 8.507059e+37
        %v1016 = vand.u32 %v1004, 2147483648
        %v1017 = vor.u32 1.1754944e-38, %v1016
        %v1018 = vsel %vm1015, %v1017, %v1013
        %v1019 = vmul.f32 1.0, %v1018
        %v1020 = vtanh.pop %v980
        %v1021 = vxor.u32 %v981, 2147483648
        %v1022 = vmul.f32 %v1021, 1.442695
        %v1023 = vpow.pop %v1022
        %v1024 = vadd.f32 %v1023, 1.0
        %v1025 = vrcp.pop %v1024
        %v1026 = vmul.f32 %v1024, %v1025
        %v1027 = vsub.f32 1.0, %v1026
        %v1028 = vmul.f32 %v1025, %v1027
        %v1029 = vadd.f32 %v1025, %v1028
        %vm1030 = vweird.f32 %v1024
        %vm1031 = vweird.f32 %v1025
        %vm1032 = vmor %vm1030, %vm1031
        %v1033 = vsel %vm1032, %v1025, %v1029
        %v1034 = vand.u32 2147483647, %v1024
        %vm1035 = vcmp.eq.f32.partialorder %v1034, 8.507059e+37
        %v1036 = vand.u32 %v1024, 2147483648
        %v1037 = vor.u32 1.1754944e-38, %v1036
        %v1038 = vsel %vm1035, %v1037, %v1033
        %v1039 = vmul.f32 1.0, %v1038
        %v1040 = vmul.f32 %v1019, %v887
        %v1041 = vmul.f32 %v1000, %v1020
        %v1042 = vadd.f32 %v1040, %v1041
        %v1043 = vtanh.pop %v1042
        %v1044 = vmul.f32 %v1039, %v1043
        %s1045 = scalar_lea.vmem [#allocation3], 8
        %1046 = vst [vmem:[%s1045] sm:$0xff] %v1044
        %s1047 = smul.u32 2, 4
        %s1048 = smul.addr %s1047, 8
        %s1049 = scalar_lea.vmem [#allocation2], %s1048
        %v1050 = vld [vmem:[%s1049] sm:$0xff]
        %v1051 = vld [vmem:[%s1049 + $0x8] sm:$0xff]
        %v1052 = vld [vmem:[%s1049 + $0x10] sm:$0xff]
        %v1053 = vld [vmem:[%s1049 + $0x18] sm:$0xff]
        %1054 = vmatpush.msra.mxu0 %v584
        %1055 = vmatpush.msra.mxu0 %v580
        %1056 = vmatpush.msra.mxu0 %v576
        %1057 = vmatpush.msra.mxu0 %v572
        %1058 = vmatpush.msra.mxu0 %v568
        %1059 = vmatpush.msra.mxu0 %v564
        %1060 = vmatpush.msra.mxu0 %v560
        %1061 = vmatpush.msra.mxu0 %v556
        %1062 = vmatpush.msra.mxu0 %v552
        %1063 = vmatpush.msra.mxu0 %v548
        %1064 = vmatpush.msra.mxu0 %v544
        %1065 = vmatpush.msra.mxu0 %v540
        %1066 = vmatpush.msra.mxu0 %v536
        %1067 = vmatpush.msra.mxu0 %v532
        %1068 = vmatpush.msra.mxu0 %v528
        %1069 = vmatpush.msra.mxu0 %v524
        %1070 = vmatmul.f32.gmra.mxu0 %v1044
        %v1071 = vpop.f32.mrf.mxu0
        %v1072 = vadd.f32 0.0, %v1071
        %1073 = vdwg.mxu0
        %1074 = vmatpush.msra.mxu0 %v585
        %1075 = vmatpush.msra.mxu0 %v581
        %1076 = vmatpush.msra.mxu0 %v577
        %1077 = vmatpush.msra.mxu0 %v573
        %1078 = vmatpush.msra.mxu0 %v569
        %1079 = vmatpush.msra.mxu0 %v565
        %1080 = vmatpush.msra.mxu0 %v561
        %1081 = vmatpush.msra.mxu0 %v557
        %1082 = vmatpush.msra.mxu0 %v553
        %1083 = vmatpush.msra.mxu0 %v549
        %1084 = vmatpush.msra.mxu0 %v545
        %1085 = vmatpush.msra.mxu0 %v541
        %1086 = vmatpush.msra.mxu0 %v537
        %1087 = vmatpush.msra.mxu0 %v533
        %1088 = vmatpush.msra.mxu0 %v529
        %1089 = vmatpush.msra.mxu0 %v525
        %1090 = vmatmul.f32.gmra.mxu0 %v1044
        %v1091 = vpop.f32.mrf.mxu0
        %v1092 = vadd.f32 0.0, %v1091
        %1093 = vdwg.mxu0
        %1094 = vmatpush.msra.mxu0 %v586
        %1095 = vmatpush.msra.mxu0 %v582
        %1096 = vmatpush.msra.mxu0 %v578
        %1097 = vmatpush.msra.mxu0 %v574
        %1098 = vmatpush.msra.mxu0 %v570
        %1099 = vmatpush.msra.mxu0 %v566
        %1100 = vmatpush.msra.mxu0 %v562
        %1101 = vmatpush.msra.mxu0 %v558
        %1102 = vmatpush.msra.mxu0 %v554
        %1103 = vmatpush.msra.mxu0 %v550
        %1104 = vmatpush.msra.mxu0 %v546
        %1105 = vmatpush.msra.mxu0 %v542
        %1106 = vmatpush.msra.mxu0 %v538
        %1107 = vmatpush.msra.mxu0 %v534
        %1108 = vmatpush.msra.mxu0 %v530
        %1109 = vmatpush.msra.mxu0 %v526
        %1110 = vmatmul.f32.gmra.mxu0 %v1044
        %v1111 = vpop.f32.mrf.mxu0
        %v1112 = vadd.f32 0.0, %v1111
        %1113 = vdwg.mxu0
        %1114 = vmatpush.msra.mxu0 %v587
        %1115 = vmatpush.msra.mxu0 %v583
        %1116 = vmatpush.msra.mxu0 %v579
        %1117 = vmatpush.msra.mxu0 %v575
        %1118 = vmatpush.msra.mxu0 %v571
        %1119 = vmatpush.msra.mxu0 %v567
        %1120 = vmatpush.msra.mxu0 %v563
        %1121 = vmatpush.msra.mxu0 %v559
        %1122 = vmatpush.msra.mxu0 %v555
        %1123 = vmatpush.msra.mxu0 %v551
        %1124 = vmatpush.msra.mxu0 %v547
        %1125 = vmatpush.msra.mxu0 %v543
        %1126 = vmatpush.msra.mxu0 %v539
        %1127 = vmatpush.msra.mxu0 %v535
        %1128 = vmatpush.msra.mxu0 %v531
        %1129 = vmatpush.msra.mxu0 %v527
        %1130 = vmatmul.f32.gmra.mxu0 %v1044
        %v1131 = vpop.f32.mrf.mxu0
        %v1132 = vadd.f32 0.0, %v1131
        %1133 = vdwg.mxu0
        %v1134 = vadd.f32 %v1050, %v1072
        %v1135 = vadd.f32 %v1051, %v1092
        %v1136 = vadd.f32 %v1052, %v1112
        %v1137 = vadd.f32 %v1053, %v1132
        %v1138 = vxor.u32 %v1134, 2147483648
        %v1139 = vmul.f32 %v1138, 1.442695
        %v1140 = vpow.pop %v1139
        %v1141 = vadd.f32 %v1140, 1.0
        %v1142 = vrcp.pop %v1141
        %v1143 = vmul.f32 %v1141, %v1142
        %v1144 = vsub.f32 1.0, %v1143
        %v1145 = vmul.f32 %v1142, %v1144
        %v1146 = vadd.f32 %v1142, %v1145
        %vm1147 = vweird.f32 %v1141
        %vm1148 = vweird.f32 %v1142
        %vm1149 = vmor %vm1147, %vm1148
        %v1150 = vsel %vm1149, %v1142, %v1146
        %v1151 = vand.u32 2147483647, %v1141
        %vm1152 = vcmp.eq.f32.partialorder %v1151, 8.507059e+37
        %v1153 = vand.u32 %v1141, 2147483648
        %v1154 = vor.u32 1.1754944e-38, %v1153
        %v1155 = vsel %vm1152, %v1154, %v1150
        %v1156 = vmul.f32 1.0, %v1155
        %v1157 = vxor.u32 %v1135, 2147483648
        %v1158 = vmul.f32 %v1157, 1.442695
        %v1159 = vpow.pop %v1158
        %v1160 = vadd.f32 %v1159, 1.0
        %v1161 = vrcp.pop %v1160
        %v1162 = vmul.f32 %v1160, %v1161
        %v1163 = vsub.f32 1.0, %v1162
        %v1164 = vmul.f32 %v1161, %v1163
        %v1165 = vadd.f32 %v1161, %v1164
        %vm1166 = vweird.f32 %v1160
        %vm1167 = vweird.f32 %v1161
        %vm1168 = vmor %vm1166, %vm1167
        %v1169 = vsel %vm1168, %v1161, %v1165
        %v1170 = vand.u32 2147483647, %v1160
        %vm1171 = vcmp.eq.f32.partialorder %v1170, 8.507059e+37
        %v1172 = vand.u32 %v1160, 2147483648
        %v1173 = vor.u32 1.1754944e-38, %v1172
        %v1174 = vsel %vm1171, %v1173, %v1169
        %v1175 = vmul.f32 1.0, %v1174
        %v1176 = vtanh.pop %v1136
        %v1177 = vxor.u32 %v1137, 2147483648
        %v1178 = vmul.f32 %v1177, 1.442695
        %v1179 = vpow.pop %v1178
        %v1180 = vadd.f32 %v1179, 1.0
        %v1181 = vrcp.pop %v1180
        %v1182 = vmul.f32 %v1180, %v1181
        %v1183 = vsub.f32 1.0, %v1182
        %v1184 = vmul.f32 %v1181, %v1183
        %v1185 = vadd.f32 %v1181, %v1184
        %vm1186 = vweird.f32 %v1180
        %vm1187 = vweird.f32 %v1181
        %vm1188 = vmor %vm1186, %vm1187
        %v1189 = vsel %vm1188, %v1181, %v1185
        %v1190 = vand.u32 2147483647, %v1180
        %vm1191 = vcmp.eq.f32.partialorder %v1190, 8.507059e+37
        %v1192 = vand.u32 %v1180, 2147483648
        %v1193 = vor.u32 1.1754944e-38, %v1192
        %v1194 = vsel %vm1191, %v1193, %v1189
        %v1195 = vmul.f32 1.0, %v1194
        %v1196 = vmul.f32 %v1175, %v1042
        %v1197 = vmul.f32 %v1156, %v1176
        %v1198 = vadd.f32 %v1196, %v1197
        %v1199 = vtanh.pop %v1198
        %v1200 = vmul.f32 %v1195, %v1199
        %s1201 = scalar_lea.vmem [#allocation3], 16
        %1202 = vst [vmem:[%s1201] sm:$0xff] %v1200
        %s1203 = smul.u32 3, 4
        %s1204 = smul.addr %s1203, 8
        %s1205 = scalar_lea.vmem [#allocation2], %s1204
        %v1206 = vld [vmem:[%s1205] sm:$0xff]
        %v1207 = vld [vmem:[%s1205 + $0x8] sm:$0xff]
        %v1208 = vld [vmem:[%s1205 + $0x10] sm:$0xff]
        %v1209 = vld [vmem:[%s1205 + $0x18] sm:$0xff]
        %1210 = vmatpush.msra.mxu0 %v584
        %1211 = vmatpush.msra.mxu0 %v580
        %1212 = vmatpush.msra.mxu0 %v576
        %1213 = vmatpush.msra.mxu0 %v572
        %1214 = vmatpush.msra.mxu0 %v568
        %1215 = vmatpush.msra.mxu0 %v564
        %1216 = vmatpush.msra.mxu0 %v560
        %1217 = vmatpush.msra.mxu0 %v556
        %1218 = vmatpush.msra.mxu0 %v552
        %1219 = vmatpush.msra.mxu0 %v548
        %1220 = vmatpush.msra.mxu0 %v544
        %1221 = vmatpush.msra.mxu0 %v540
        %1222 = vmatpush.msra.mxu0 %v536
        %1223 = vmatpush.msra.mxu0 %v532
        %1224 = vmatpush.msra.mxu0 %v528
        %1225 = vmatpush.msra.mxu0 %v524
        %1226 = vmatmul.f32.gmra.mxu0 %v1200
        %v1227 = vpop.f32.mrf.mxu0
        %v1228 = vadd.f32 0.0, %v1227
        %1229 = vdwg.mxu0
        %1230 = vmatpush.msra.mxu0 %v585
        %1231 = vmatpush.msra.mxu0 %v581
        %1232 = vmatpush.msra.mxu0 %v577
        %1233 = vmatpush.msra.mxu0 %v573
        %1234 = vmatpush.msra.mxu0 %v569
        %1235 = vmatpush.msra.mxu0 %v565
        %1236 = vmatpush.msra.mxu0 %v561
        %1237 = vmatpush.msra.mxu0 %v557
        %1238 = vmatpush.msra.mxu0 %v553
        %1239 = vmatpush.msra.mxu0 %v549
        %1240 = vmatpush.msra.mxu0 %v545
        %1241 = vmatpush.msra.mxu0 %v541
        %1242 = vmatpush.msra.mxu0 %v537
        %1243 = vmatpush.msra.mxu0 %v533
        %1244 = vmatpush.msra.mxu0 %v529
        %1245 = vmatpush.msra.mxu0 %v525
        %1246 = vmatmul.f32.gmra.mxu0 %v1200
        %v1247 = vpop.f32.mrf.mxu0
        %v1248 = vadd.f32 0.0, %v1247
        %1249 = vdwg.mxu0
        %1250 = vmatpush.msra.mxu0 %v586
        %1251 = vmatpush.msra.mxu0 %v582
        %1252 = vmatpush.msra.mxu0 %v578
        %1253 = vmatpush.msra.mxu0 %v574
        %1254 = vmatpush.msra.mxu0 %v570
        %1255 = vmatpush.msra.mxu0 %v566
        %1256 = vmatpush.msra.mxu0 %v562
        %1257 = vmatpush.msra.mxu0 %v558
        %1258 = vmatpush.msra.mxu0 %v554
        %1259 = vmatpush.msra.mxu0 %v550
        %1260 = vmatpush.msra.mxu0 %v546
        %1261 = vmatpush.msra.mxu0 %v542
        %1262 = vmatpush.msra.mxu0 %v538
        %1263 = vmatpush.msra.mxu0 %v534
        %1264 = vmatpush.msra.mxu0 %v530
        %1265 = vmatpush.msra.mxu0 %v526
        %1266 = vmatmul.f32.gmra.mxu0 %v1200
        %v1267 = vpop.f32.mrf.mxu0
        %v1268 = vadd.f32 0.0, %v1267
        %1269 = vdwg.mxu0
        %1270 = vmatpush.msra.mxu0 %v587
        %1271 = vmatpush.msra.mxu0 %v583
        %1272 = vmatpush.msra.mxu0 %v579
        %1273 = vmatpush.msra.mxu0 %v575
        %1274 = vmatpush.msra.mxu0 %v571
        %1275 = vmatpush.msra.mxu0 %v567
        %1276 = vmatpush.msra.mxu0 %v563
        %1277 = vmatpush.msra.mxu0 %v559
        %1278 = vmatpush.msra.mxu0 %v555
        %1279 = vmatpush.msra.mxu0 %v551
        %1280 = vmatpush.msra.mxu0 %v547
        %1281 = vmatpush.msra.mxu0 %v543
        %1282 = vmatpush.msra.mxu0 %v539
        %1283 = vmatpush.msra.mxu0 %v535
        %1284 = vmatpush.msra.mxu0 %v531
        %1285 = vmatpush.msra.mxu0 %v527
        %1286 = vmatmul.f32.gmra.mxu0 %v1200
        %v1287 = vpop.f32.mrf.mxu0
        %v1288 = vadd.f32 0.0, %v1287
        %1289 = vdwg.mxu0
        %v1290 = vadd.f32 %v1206, %v1228
        %v1291 = vadd.f32 %v1207, %v1248
        %v1292 = vadd.f32 %v1208, %v1268
        %v1293 = vadd.f32 %v1209, %v1288
        %v1294 = vxor.u32 %v1290, 2147483648
        %v1295 = vmul.f32 %v1294, 1.442695
        %v1296 = vpow.pop %v1295
        %v1297 = vadd.f32 %v1296, 1.0
        %v1298 = vrcp.pop %v1297
        %v1299 = vmul.f32 %v1297, %v1298
        %v1300 = vsub.f32 1.0, %v1299
        %v1301 = vmul.f32 %v1298, %v1300
        %v1302 = vadd.f32 %v1298, %v1301
        %vm1303 = vweird.f32 %v1297
        %vm1304 = vweird.f32 %v1298
        %vm1305 = vmor %vm1303, %vm1304
        %v1306 = vsel %vm1305, %v1298, %v1302
        %v1307 = vand.u32 2147483647, %v1297
        %vm1308 = vcmp.eq.f32.partialorder %v1307, 8.507059e+37
        %v1309 = vand.u32 %v1297, 2147483648
        %v1310 = vor.u32 1.1754944e-38, %v1309
        %v1311 = vsel %vm1308, %v1310, %v1306
        %v1312 = vmul.f32 1.0, %v1311
        %v1313 = vxor.u32 %v1291, 2147483648
        %v1314 = vmul.f32 %v1313, 1.442695
        %v1315 = vpow.pop %v1314
        %v1316 = vadd.f32 %v1315, 1.0
        %v1317 = vrcp.pop %v1316
        %v1318 = vmul.f32 %v1316, %v1317
        %v1319 = vsub.f32 1.0, %v1318
        %v1320 = vmul.f32 %v1317, %v1319
        %v1321 = vadd.f32 %v1317, %v1320
        %vm1322 = vweird.f32 %v1316
        %vm1323 = vweird.f32 %v1317
        %vm1324 = vmor %vm1322, %vm1323
        %v1325 = vsel %vm1324, %v1317, %v1321
        %v1326 = vand.u32 2147483647, %v1316
        %vm1327 = vcmp.eq.f32.partialorder %v1326, 8.507059e+37
        %v1328 = vand.u32 %v1316, 2147483648
        %v1329 = vor.u32 1.1754944e-38, %v1328
        %v1330 = vsel %vm1327, %v1329, %v1325
        %v1331 = vmul.f32 1.0, %v1330
        %v1332 = vtanh.pop %v1292
        %v1333 = vxor.u32 %v1293, 2147483648
        %v1334 = vmul.f32 %v1333, 1.442695
        %v1335 = vpow.pop %v1334
        %v1336 = vadd.f32 %v1335, 1.0
        %v1337 = vrcp.pop %v1336
        %v1338 = vmul.f32 %v1336, %v1337
        %v1339 = vsub.f32 1.0, %v1338
        %v1340 = vmul.f32 %v1337, %v1339
        %v1341 = vadd.f32 %v1337, %v1340
        %vm1342 = vweird.f32 %v1336
        %vm1343 = vweird.f32 %v1337
        %vm1344 = vmor %vm1342, %vm1343
        %v1345 = vsel %vm1344, %v1337, %v1341
        %v1346 = vand.u32 2147483647, %v1336
        %vm1347 = vcmp.eq.f32.partialorder %v1346, 8.507059e+37
        %v1348 = vand.u32 %v1336, 2147483648
        %v1349 = vor.u32 1.1754944e-38, %v1348
        %v1350 = vsel %vm1347, %v1349, %v1345
        %v1351 = vmul.f32 1.0, %v1350
        %v1352 = vmul.f32 %v1331, %v1198
        %v1353 = vmul.f32 %v1312, %v1332
        %v1354 = vadd.f32 %v1352, %v1353
        %v1355 = vtanh.pop %v1354
        %v1356 = vmul.f32 %v1351, %v1355
        %s1357 = scalar_lea.vmem [#allocation3], 24
        %1358 = vst [vmem:[%s1357] sm:$0xff] %v1356
        %1359 = vst [vmem:[#allocation4] sm:$0xff] %v1356
        %1360 = vst [vmem:[#allocation5] sm:$0xff] %v1354
        %v1361 = vld [vmem:[#allocation14] sm:$0xff]
        %v1362 = vld [vmem:[#allocation14 + $0x8] sm:$0xff]
        %v1363 = vld [vmem:[#allocation14 + $0x10] sm:$0xff]
        %v1364 = vld [vmem:[#allocation14 + $0x18] sm:$0xff]
        %v1365 = vld [vmem:[#allocation14 + $0x20] sm:$0xff]
        %v1366 = vld [vmem:[#allocation14 + $0x28] sm:$0xff]
        %v1367 = vld [vmem:[#allocation14 + $0x30] sm:$0xff]
        %v1368 = vld [vmem:[#allocation14 + $0x38] sm:$0xff]
        %v1369 = vld [vmem:[#allocation14 + $0x40] sm:$0xff]
        %v1370 = vld [vmem:[#allocation14 + $0x48] sm:$0xff]
        %v1371 = vld [vmem:[#allocation14 + $0x50] sm:$0xff]
        %v1372 = vld [vmem:[#allocation14 + $0x58] sm:$0xff]
        %v1373 = vld [vmem:[#allocation14 + $0x60] sm:$0xff]
        %v1374 = vld [vmem:[#allocation14 + $0x68] sm:$0xff]
        %v1375 = vld [vmem:[#allocation14 + $0x70] sm:$0xff]
        %v1376 = vld [vmem:[#allocation14 + $0x78] sm:$0xff]
        %v1377 = vld [vmem:[#allocation14 + $0x80] sm:$0xff]
        %v1378 = vld [vmem:[#allocation14 + $0x88] sm:$0xff]
        %v1379 = vld [vmem:[#allocation14 + $0x90] sm:$0xff]
        %v1380 = vld [vmem:[#allocation14 + $0x98] sm:$0xff]
        %v1381 = vld [vmem:[#allocation14 + $0xa0] sm:$0xff]
        %v1382 = vld [vmem:[#allocation14 + $0xa8] sm:$0xff]
        %v1383 = vld [vmem:[#allocation14 + $0xb0] sm:$0xff]
        %v1384 = vld [vmem:[#allocation14 + $0xb8] sm:$0xff]
        %v1385 = vld [vmem:[#allocation14 + $0xc0] sm:$0xff]
        %v1386 = vld [vmem:[#allocation14 + $0xc8] sm:$0xff]
        %v1387 = vld [vmem:[#allocation14 + $0xd0] sm:$0xff]
        %v1388 = vld [vmem:[#allocation14 + $0xd8] sm:$0xff]
        %v1389 = vld [vmem:[#allocation14 + $0xe0] sm:$0xff]
        %v1390 = vld [vmem:[#allocation14 + $0xe8] sm:$0xff]
        %v1391 = vld [vmem:[#allocation14 + $0xf0] sm:$0xff]
        %v1392 = vld [vmem:[#allocation14 + $0xf8] sm:$0xff]
        %v1393 = vld [vmem:[#allocation14 + $0x100] sm:$0xff]
        %v1394 = vld [vmem:[#allocation14 + $0x108] sm:$0xff]
        %v1395 = vld [vmem:[#allocation14 + $0x110] sm:$0xff]
        %v1396 = vld [vmem:[#allocation14 + $0x118] sm:$0xff]
        %v1397 = vld [vmem:[#allocation14 + $0x120] sm:$0xff]
        %v1398 = vld [vmem:[#allocation14 + $0x128] sm:$0xff]
        %v1399 = vld [vmem:[#allocation14 + $0x130] sm:$0xff]
        %v1400 = vld [vmem:[#allocation14 + $0x138] sm:$0xff]
        %v1401 = vld [vmem:[#allocation14 + $0x140] sm:$0xff]
        %v1402 = vld [vmem:[#allocation14 + $0x148] sm:$0xff]
        %v1403 = vld [vmem:[#allocation14 + $0x150] sm:$0xff]
        %v1404 = vld [vmem:[#allocation14 + $0x158] sm:$0xff]
        %v1405 = vld [vmem:[#allocation14 + $0x160] sm:$0xff]
        %v1406 = vld [vmem:[#allocation14 + $0x168] sm:$0xff]
        %v1407 = vld [vmem:[#allocation14 + $0x170] sm:$0xff]
        %v1408 = vld [vmem:[#allocation14 + $0x178] sm:$0xff]
        %v1409 = vld [vmem:[#allocation14 + $0x180] sm:$0xff]
        %v1410 = vld [vmem:[#allocation14 + $0x188] sm:$0xff]
        %v1411 = vld [vmem:[#allocation14 + $0x190] sm:$0xff]
        %v1412 = vld [vmem:[#allocation14 + $0x198] sm:$0xff]
        %v1413 = vld [vmem:[#allocation14 + $0x1a0] sm:$0xff]
        %v1414 = vld [vmem:[#allocation14 + $0x1a8] sm:$0xff]
        %v1415 = vld [vmem:[#allocation14 + $0x1b0] sm:$0xff]
        %v1416 = vld [vmem:[#allocation14 + $0x1b8] sm:$0xff]
        %v1417 = vld [vmem:[#allocation14 + $0x1c0] sm:$0xff]
        %v1418 = vld [vmem:[#allocation14 + $0x1c8] sm:$0xff]
        %v1419 = vld [vmem:[#allocation14 + $0x1d0] sm:$0xff]
        %v1420 = vld [vmem:[#allocation14 + $0x1d8] sm:$0xff]
        %v1421 = vld [vmem:[#allocation14 + $0x1e0] sm:$0xff]
        %v1422 = vld [vmem:[#allocation14 + $0x1e8] sm:$0xff]
        %v1423 = vld [vmem:[#allocation14 + $0x1f0] sm:$0xff]
        %v1424 = vld [vmem:[#allocation14 + $0x1f8] sm:$0xff]
        %v1425 = vld [vmem:[#allocation15] sm:$0xff]
        %v1426 = vld [vmem:[#allocation15 + $0x8] sm:$0xff]
        %v1427 = vld [vmem:[#allocation15 + $0x10] sm:$0xff]
        %v1428 = vld [vmem:[#allocation15 + $0x18] sm:$0xff]
        %v1429 = vld [vmem:[#allocation15 + $0x20] sm:$0xff]
        %v1430 = vld [vmem:[#allocation15 + $0x28] sm:$0xff]
        %v1431 = vld [vmem:[#allocation15 + $0x30] sm:$0xff]
        %v1432 = vld [vmem:[#allocation15 + $0x38] sm:$0xff]
        %v1433 = vld [vmem:[#allocation15 + $0x40] sm:$0xff]
        %v1434 = vld [vmem:[#allocation15 + $0x48] sm:$0xff]
        %v1435 = vld [vmem:[#allocation15 + $0x50] sm:$0xff]
        %v1436 = vld [vmem:[#allocation15 + $0x58] sm:$0xff]
        %v1437 = vld [vmem:[#allocation15 + $0x60] sm:$0xff]
        %v1438 = vld [vmem:[#allocation15 + $0x68] sm:$0xff]
        %v1439 = vld [vmem:[#allocation15 + $0x70] sm:$0xff]
        %v1440 = vld [vmem:[#allocation15 + $0x78] sm:$0xff]
        %v1441 = vld [vmem:[#allocation15 + $0x80] sm:$0xff]
        %v1442 = vld [vmem:[#allocation15 + $0x88] sm:$0xff]
        %v1443 = vld [vmem:[#allocation15 + $0x90] sm:$0xff]
        %v1444 = vld [vmem:[#allocation15 + $0x98] sm:$0xff]
        %v1445 = vld [vmem:[#allocation15 + $0xa0] sm:$0xff]
        %v1446 = vld [vmem:[#allocation15 + $0xa8] sm:$0xff]
        %v1447 = vld [vmem:[#allocation15 + $0xb0] sm:$0xff]
        %v1448 = vld [vmem:[#allocation15 + $0xb8] sm:$0xff]
        %v1449 = vld [vmem:[#allocation15 + $0xc0] sm:$0xff]
        %v1450 = vld [vmem:[#allocation15 + $0xc8] sm:$0xff]
        %v1451 = vld [vmem:[#allocation15 + $0xd0] sm:$0xff]
        %v1452 = vld [vmem:[#allocation15 + $0xd8] sm:$0xff]
        %v1453 = vld [vmem:[#allocation15 + $0xe0] sm:$0xff]
        %v1454 = vld [vmem:[#allocation15 + $0xe8] sm:$0xff]
        %v1455 = vld [vmem:[#allocation15 + $0xf0] sm:$0xff]
        %v1456 = vld [vmem:[#allocation15 + $0xf8] sm:$0xff]
        %v1457 = vld [vmem:[#allocation15 + $0x100] sm:$0xff]
        %v1458 = vld [vmem:[#allocation15 + $0x108] sm:$0xff]
        %v1459 = vld [vmem:[#allocation15 + $0x110] sm:$0xff]
        %v1460 = vld [vmem:[#allocation15 + $0x118] sm:$0xff]
        %v1461 = vld [vmem:[#allocation15 + $0x120] sm:$0xff]
        %v1462 = vld [vmem:[#allocation15 + $0x128] sm:$0xff]
        %v1463 = vld [vmem:[#allocation15 + $0x130] sm:$0xff]
        %v1464 = vld [vmem:[#allocation15 + $0x138] sm:$0xff]
        %v1465 = vld [vmem:[#allocation15 + $0x140] sm:$0xff]
        %v1466 = vld [vmem:[#allocation15 + $0x148] sm:$0xff]
        %v1467 = vld [vmem:[#allocation15 + $0x150] sm:$0xff]
        %v1468 = vld [vmem:[#allocation15 + $0x158] sm:$0xff]
        %v1469 = vld [vmem:[#allocation15 + $0x160] sm:$0xff]
        %v1470 = vld [vmem:[#allocation15 + $0x168] sm:$0xff]
        %v1471 = vld [vmem:[#allocation15 + $0x170] sm:$0xff]
        %v1472 = vld [vmem:[#allocation15 + $0x178] sm:$0xff]
        %v1473 = vld [vmem:[#allocation15 + $0x180] sm:$0xff]
        %v1474 = vld [vmem:[#allocation15 + $0x188] sm:$0xff]
        %v1475 = vld [vmem:[#allocation15 + $0x190] sm:$0xff]
        %v1476 = vld [vmem:[#allocation15 + $0x198] sm:$0xff]
        %v1477 = vld [vmem:[#allocation15 + $0x1a0] sm:$0xff]
        %v1478 = vld [vmem:[#allocation15 + $0x1a8] sm:$0xff]
        %v1479 = vld [vmem:[#allocation15 + $0x1b0] sm:$0xff]
        %v1480 = vld [vmem:[#allocation15 + $0x1b8] sm:$0xff]
        %v1481 = vld [vmem:[#allocation15 + $0x1c0] sm:$0xff]
        %v1482 = vld [vmem:[#allocation15 + $0x1c8] sm:$0xff]
        %v1483 = vld [vmem:[#allocation15 + $0x1d0] sm:$0xff]
        %v1484 = vld [vmem:[#allocation15 + $0x1d8] sm:$0xff]
        %v1485 = vld [vmem:[#allocation15 + $0x1e0] sm:$0xff]
        %v1486 = vld [vmem:[#allocation15 + $0x1e8] sm:$0xff]
        %v1487 = vld [vmem:[#allocation15 + $0x1f0] sm:$0xff]
        %v1488 = vld [vmem:[#allocation15 + $0x1f8] sm:$0xff]
        %v1489 = vld [vmem:[%s6] sm:$0xf]
        %v1490 = vld [vmem:[#allocation3] sm:$0xff]
        %v1491 = vld [vmem:[#allocation3 + $0x8] sm:$0xff]
        %v1492 = vld [vmem:[#allocation3 + $0x10] sm:$0xff]
        %v1493 = vld [vmem:[#allocation3 + $0x18] sm:$0xff]
        %v1495 = vperm.slane %v1489, 0
        %v1496 = vperm.slane %v1489, 1
        %v1497 = vperm.slane %v1489, 2
        %v1498 = vperm.slane %v1489, 3
        %1503 = vmatpush.msra.mxu0 %v1421
        %1504 = vmatpush.msra.mxu0 %v1417
        %1505 = vmatpush.msra.mxu0 %v1413
        %1506 = vmatpush.msra.mxu0 %v1409
        %1507 = vmatpush.msra.mxu0 %v1405
        %1508 = vmatpush.msra.mxu0 %v1401
        %1509 = vmatpush.msra.mxu0 %v1397
        %1510 = vmatpush.msra.mxu0 %v1393
        %1511 = vmatpush.msra.mxu0 %v1389
        %1512 = vmatpush.msra.mxu0 %v1385
        %1513 = vmatpush.msra.mxu0 %v1381
        %1514 = vmatpush.msra.mxu0 %v1377
        %1515 = vmatpush.msra.mxu0 %v1373
        %1516 = vmatpush.msra.mxu0 %v1369
        %1517 = vmatpush.msra.mxu0 %v1365
        %1518 = vmatpush.msra.mxu0 %v1361
        %1519 = vmatmul.f32.gmra.mxu0 %v1490
        %v1520 = vpop.f32.mrf.mxu0
        %v1521 = vadd.f32 %v1495, %v1520
        %1522 = vmatmul.f32.gmra.mxu0 %v1491
        %v1523 = vpop.f32.mrf.mxu0
        %v1524 = vadd.f32 %v1495, %v1523
        %1525 = vmatmul.f32.gmra.mxu0 %v1492
        %v1526 = vpop.f32.mrf.mxu0
        %v1527 = vadd.f32 %v1495, %v1526
        %1528 = vmatmul.f32.gmra.mxu0 %v1493
        %v1529 = vpop.f32.mrf.mxu0
        %v1530 = vadd.f32 %v1495, %v1529
        %1531 = vdwg.mxu0
        %1532 = vmatpush.msra.mxu0 %v1422
        %1533 = vmatpush.msra.mxu0 %v1418
        %1534 = vmatpush.msra.mxu0 %v1414
        %1535 = vmatpush.msra.mxu0 %v1410
        %1536 = vmatpush.msra.mxu0 %v1406
        %1537 = vmatpush.msra.mxu0 %v1402
        %1538 = vmatpush.msra.mxu0 %v1398
        %1539 = vmatpush.msra.mxu0 %v1394
        %1540 = vmatpush.msra.mxu0 %v1390
        %1541 = vmatpush.msra.mxu0 %v1386
        %1542 = vmatpush.msra.mxu0 %v1382
        %1543 = vmatpush.msra.mxu0 %v1378
        %1544 = vmatpush.msra.mxu0 %v1374
        %1545 = vmatpush.msra.mxu0 %v1370
        %1546 = vmatpush.msra.mxu0 %v1366
        %1547 = vmatpush.msra.mxu0 %v1362
        %1548 = vmatmul.f32.gmra.mxu0 %v1490
        %v1549 = vpop.f32.mrf.mxu0
        %v1550 = vadd.f32 %v1496, %v1549
        %1551 = vmatmul.f32.gmra.mxu0 %v1491
        %v1552 = vpop.f32.mrf.mxu0
        %v1553 = vadd.f32 %v1496, %v1552
        %1554 = vmatmul.f32.gmra.mxu0 %v1492
        %v1555 = vpop.f32.mrf.mxu0
        %v1556 = vadd.f32 %v1496, %v1555
        %1557 = vmatmul.f32.gmra.mxu0 %v1493
        %v1558 = vpop.f32.mrf.mxu0
        %v1559 = vadd.f32 %v1496, %v1558
        %1560 = vdwg.mxu0
        %1561 = vmatpush.msra.mxu0 %v1423
        %1562 = vmatpush.msra.mxu0 %v1419
        %1563 = vmatpush.msra.mxu0 %v1415
        %1564 = vmatpush.msra.mxu0 %v1411
        %1565 = vmatpush.msra.mxu0 %v1407
        %1566 = vmatpush.msra.mxu0 %v1403
        %1567 = vmatpush.msra.mxu0 %v1399
        %1568 = vmatpush.msra.mxu0 %v1395
        %1569 = vmatpush.msra.mxu0 %v1391
        %1570 = vmatpush.msra.mxu0 %v1387
        %1571 = vmatpush.msra.mxu0 %v1383
        %1572 = vmatpush.msra.mxu0 %v1379
        %1573 = vmatpush.msra.mxu0 %v1375
        %1574 = vmatpush.msra.mxu0 %v1371
        %1575 = vmatpush.msra.mxu0 %v1367
        %1576 = vmatpush.msra.mxu0 %v1363
        %1577 = vmatmul.f32.gmra.mxu0 %v1490
        %v1578 = vpop.f32.mrf.mxu0
        %v1579 = vadd.f32 %v1497, %v1578
        %1580 = vmatmul.f32.gmra.mxu0 %v1491
        %v1581 = vpop.f32.mrf.mxu0
        %v1582 = vadd.f32 %v1497, %v1581
        %1583 = vmatmul.f32.gmra.mxu0 %v1492
        %v1584 = vpop.f32.mrf.mxu0
        %v1585 = vadd.f32 %v1497, %v1584
        %1586 = vmatmul.f32.gmra.mxu0 %v1493
        %v1587 = vpop.f32.mrf.mxu0
        %v1588 = vadd.f32 %v1497, %v1587
        %1589 = vdwg.mxu0
        %1590 = vmatpush.msra.mxu0 %v1424
        %1591 = vmatpush.msra.mxu0 %v1420
        %1592 = vmatpush.msra.mxu0 %v1416
        %1593 = vmatpush.msra.mxu0 %v1412
        %1594 = vmatpush.msra.mxu0 %v1408
        %1595 = vmatpush.msra.mxu0 %v1404
        %1596 = vmatpush.msra.mxu0 %v1400
        %1597 = vmatpush.msra.mxu0 %v1396
        %1598 = vmatpush.msra.mxu0 %v1392
        %1599 = vmatpush.msra.mxu0 %v1388
        %1600 = vmatpush.msra.mxu0 %v1384
        %1601 = vmatpush.msra.mxu0 %v1380
        %1602 = vmatpush.msra.mxu0 %v1376
        %1603 = vmatpush.msra.mxu0 %v1372
        %1604 = vmatpush.msra.mxu0 %v1368
        %1605 = vmatpush.msra.mxu0 %v1364
        %1606 = vmatmul.f32.gmra.mxu0 %v1490
        %v1607 = vpop.f32.mrf.mxu0
        %v1608 = vadd.f32 %v1498, %v1607
        %1609 = vmatmul.f32.gmra.mxu0 %v1491
        %v1610 = vpop.f32.mrf.mxu0
        %v1611 = vadd.f32 %v1498, %v1610
        %1612 = vmatmul.f32.gmra.mxu0 %v1492
        %v1613 = vpop.f32.mrf.mxu0
        %v1614 = vadd.f32 %v1498, %v1613
        %1615 = vmatmul.f32.gmra.mxu0 %v1493
        %v1616 = vpop.f32.mrf.mxu0
        %v1617 = vadd.f32 %v1498, %v1616
        %1618 = vdwg.mxu0
        %1619 = vst [vmem:[#allocation2] sm:$0xff] %v1521
        %1620 = vst [vmem:[#allocation2 + $0x8] sm:$0xff] %v1550
        %1621 = vst [vmem:[#allocation2 + $0x10] sm:$0xff] %v1579
        %1622 = vst [vmem:[#allocation2 + $0x18] sm:$0xff] %v1608
        %1623 = vst [vmem:[#allocation2 + $0x20] sm:$0xff] %v1524
        %1624 = vst [vmem:[#allocation2 + $0x28] sm:$0xff] %v1553
        %1625 = vst [vmem:[#allocation2 + $0x30] sm:$0xff] %v1582
        %1626 = vst [vmem:[#allocation2 + $0x38] sm:$0xff] %v1611
        %1627 = vst [vmem:[#allocation2 + $0x40] sm:$0xff] %v1527
        %1628 = vst [vmem:[#allocation2 + $0x48] sm:$0xff] %v1556
        %1629 = vst [vmem:[#allocation2 + $0x50] sm:$0xff] %v1585
        %1630 = vst [vmem:[#allocation2 + $0x58] sm:$0xff] %v1614
        %1631 = vst [vmem:[#allocation2 + $0x60] sm:$0xff] %v1530
        %1632 = vst [vmem:[#allocation2 + $0x68] sm:$0xff] %v1559
        %1633 = vst [vmem:[#allocation2 + $0x70] sm:$0xff] %v1588
        %1634 = vst [vmem:[#allocation2 + $0x78] sm:$0xff] %v1617
        %v1635 = vld [vmem:[#allocation4 + $0x8] sm:$0xff]
        %v1636 = vld [vmem:[#allocation5 + $0x8] sm:$0xff]
        %v1637 = vld [vmem:[%s738] sm:$0xff]
        %v1638 = vld [vmem:[%s738 + $0x8] sm:$0xff]
        %v1639 = vld [vmem:[%s738 + $0x10] sm:$0xff]
        %v1640 = vld [vmem:[%s738 + $0x18] sm:$0xff]
        %1641 = vmatpush.msra.mxu0 %v1485
        %1642 = vmatpush.msra.mxu0 %v1481
        %1643 = vmatpush.msra.mxu0 %v1477
        %1644 = vmatpush.msra.mxu0 %v1473
        %1645 = vmatpush.msra.mxu0 %v1469
        %1646 = vmatpush.msra.mxu0 %v1465
        %1647 = vmatpush.msra.mxu0 %v1461
        %1648 = vmatpush.msra.mxu0 %v1457
        %1649 = vmatpush.msra.mxu0 %v1453
        %1650 = vmatpush.msra.mxu0 %v1449
        %1651 = vmatpush.msra.mxu0 %v1445
        %1652 = vmatpush.msra.mxu0 %v1441
        %1653 = vmatpush.msra.mxu0 %v1437
        %1654 = vmatpush.msra.mxu0 %v1433
        %1655 = vmatpush.msra.mxu0 %v1429
        %1656 = vmatpush.msra.mxu0 %v1425
        %1657 = vmatmul.f32.gmra.mxu0 %v1635
        %v1658 = vpop.f32.mrf.mxu0
        %v1659 = vadd.f32 0.0, %v1658
        %1660 = vdwg.mxu0
        %1661 = vmatpush.msra.mxu0 %v1486
        %1662 = vmatpush.msra.mxu0 %v1482
        %1663 = vmatpush.msra.mxu0 %v1478
        %1664 = vmatpush.msra.mxu0 %v1474
        %1665 = vmatpush.msra.mxu0 %v1470
        %1666 = vmatpush.msra.mxu0 %v1466
        %1667 = vmatpush.msra.mxu0 %v1462
        %1668 = vmatpush.msra.mxu0 %v1458
        %1669 = vmatpush.msra.mxu0 %v1454
        %1670 = vmatpush.msra.mxu0 %v1450
        %1671 = vmatpush.msra.mxu0 %v1446
        %1672 = vmatpush.msra.mxu0 %v1442
        %1673 = vmatpush.msra.mxu0 %v1438
        %1674 = vmatpush.msra.mxu0 %v1434
        %1675 = vmatpush.msra.mxu0 %v1430
        %1676 = vmatpush.msra.mxu0 %v1426
        %1677 = vmatmul.f32.gmra.mxu0 %v1635
        %v1678 = vpop.f32.mrf.mxu0
        %v1679 = vadd.f32 0.0, %v1678
        %1680 = vdwg.mxu0
        %1681 = vmatpush.msra.mxu0 %v1487
        %1682 = vmatpush.msra.mxu0 %v1483
        %1683 = vmatpush.msra.mxu0 %v1479
        %1684 = vmatpush.msra.mxu0 %v1475
        %1685 = vmatpush.msra.mxu0 %v1471
        %1686 = vmatpush.msra.mxu0 %v1467
        %1687 = vmatpush.msra.mxu0 %v1463
        %1688 = vmatpush.msra.mxu0 %v1459
        %1689 = vmatpush.msra.mxu0 %v1455
        %1690 = vmatpush.msra.mxu0 %v1451
        %1691 = vmatpush.msra.mxu0 %v1447
        %1692 = vmatpush.msra.mxu0 %v1443
        %1693 = vmatpush.msra.mxu0 %v1439
        %1694 = vmatpush.msra.mxu0 %v1435
        %1695 = vmatpush.msra.mxu0 %v1431
        %1696 = vmatpush.msra.mxu0 %v1427
        %1697 = vmatmul.f32.gmra.mxu0 %v1635
        %v1698 = vpop.f32.mrf.mxu0
        %v1699 = vadd.f32 0.0, %v1698
        %1700 = vdwg.mxu0
        %1701 = vmatpush.msra.mxu0 %v1488
        %1702 = vmatpush.msra.mxu0 %v1484
        %1703 = vmatpush.msra.mxu0 %v1480
        %1704 = vmatpush.msra.mxu0 %v1476
        %1705 = vmatpush.msra.mxu0 %v1472
        %1706 = vmatpush.msra.mxu0 %v1468
        %1707 = vmatpush.msra.mxu0 %v1464
        %1708 = vmatpush.msra.mxu0 %v1460
        %1709 = vmatpush.msra.mxu0 %v1456
        %1710 = vmatpush.msra.mxu0 %v1452
        %1711 = vmatpush.msra.mxu0 %v1448
        %1712 = vmatpush.msra.mxu0 %v1444
        %1713 = vmatpush.msra.mxu0 %v1440
        %1714 = vmatpush.msra.mxu0 %v1436
        %1715 = vmatpush.msra.mxu0 %v1432
        %1716 = vmatpush.msra.mxu0 %v1428
        %1717 = vmatmul.f32.gmra.mxu0 %v1635
        %v1718 = vpop.f32.mrf.mxu0
        %v1719 = vadd.f32 0.0, %v1718
        %1720 = vdwg.mxu0
        %v1721 = vadd.f32 %v1637, %v1659
        %v1722 = vadd.f32 %v1638, %v1679
        %v1723 = vadd.f32 %v1639, %v1699
        %v1724 = vadd.f32 %v1640, %v1719
        %v1725 = vxor.u32 %v1721, 2147483648
        %v1726 = vmul.f32 %v1725, 1.442695
        %v1727 = vpow.pop %v1726
        %v1728 = vadd.f32 %v1727, 1.0
        %v1729 = vrcp.pop %v1728
        %v1730 = vmul.f32 %v1728, %v1729
        %v1731 = vsub.f32 1.0, %v1730
        %v1732 = vmul.f32 %v1729, %v1731
        %v1733 = vadd.f32 %v1729, %v1732
        %vm1734 = vweird.f32 %v1728
        %vm1735 = vweird.f32 %v1729
        %vm1736 = vmor %vm1734, %vm1735
        %v1737 = vsel %vm1736, %v1729, %v1733
        %v1738 = vand.u32 2147483647, %v1728
        %vm1739 = vcmp.eq.f32.partialorder %v1738, 8.507059e+37
        %v1740 = vand.u32 %v1728, 2147483648
        %v1741 = vor.u32 1.1754944e-38, %v1740
        %v1742 = vsel %vm1739, %v1741, %v1737
        %v1743 = vmul.f32 1.0, %v1742
        %v1744 = vxor.u32 %v1722, 2147483648
        %v1745 = vmul.f32 %v1744, 1.442695
        %v1746 = vpow.pop %v1745
        %v1747 = vadd.f32 %v1746, 1.0
        %v1748 = vrcp.pop %v1747
        %v1749 = vmul.f32 %v1747, %v1748
        %v1750 = vsub.f32 1.0, %v1749
        %v1751 = vmul.f32 %v1748, %v1750
        %v1752 = vadd.f32 %v1748, %v1751
        %vm1753 = vweird.f32 %v1747
        %vm1754 = vweird.f32 %v1748
        %vm1755 = vmor %vm1753, %vm1754
        %v1756 = vsel %vm1755, %v1748, %v1752
        %v1757 = vand.u32 2147483647, %v1747
        %vm1758 = vcmp.eq.f32.partialorder %v1757, 8.507059e+37
        %v1759 = vand.u32 %v1747, 2147483648
        %v1760 = vor.u32 1.1754944e-38, %v1759
        %v1761 = vsel %vm1758, %v1760, %v1756
        %v1762 = vmul.f32 1.0, %v1761
        %v1763 = vtanh.pop %v1723
        %v1764 = vxor.u32 %v1724, 2147483648
        %v1765 = vmul.f32 %v1764, 1.442695
        %v1766 = vpow.pop %v1765
        %v1767 = vadd.f32 %v1766, 1.0
        %v1768 = vrcp.pop %v1767
        %v1769 = vmul.f32 %v1767, %v1768
        %v1770 = vsub.f32 1.0, %v1769
        %v1771 = vmul.f32 %v1768, %v1770
        %v1772 = vadd.f32 %v1768, %v1771
        %vm1773 = vweird.f32 %v1767
        %vm1774 = vweird.f32 %v1768
        %vm1775 = vmor %vm1773, %vm1774
        %v1776 = vsel %vm1775, %v1768, %v1772
        %v1777 = vand.u32 2147483647, %v1767
        %vm1778 = vcmp.eq.f32.partialorder %v1777, 8.507059e+37
        %v1779 = vand.u32 %v1767, 2147483648
        %v1780 = vor.u32 1.1754944e-38, %v1779
        %v1781 = vsel %vm1778, %v1780, %v1776
        %v1782 = vmul.f32 1.0, %v1781
        %v1783 = vmul.f32 %v1762, %v1636
        %v1784 = vmul.f32 %v1743, %v1763
        %v1785 = vadd.f32 %v1783, %v1784
        %v1786 = vtanh.pop %v1785
        %v1787 = vmul.f32 %v1782, %v1786
        %1788 = vst [vmem:[#allocation3] sm:$0xff] %v1787
        %v1789 = vld [vmem:[%s893] sm:$0xff]
        %v1790 = vld [vmem:[%s893 + $0x8] sm:$0xff]
        %v1791 = vld [vmem:[%s893 + $0x10] sm:$0xff]
        %v1792 = vld [vmem:[%s893 + $0x18] sm:$0xff]
        %1793 = vmatpush.msra.mxu0 %v1485
        %1794 = vmatpush.msra.mxu0 %v1481
        %1795 = vmatpush.msra.mxu0 %v1477
        %1796 = vmatpush.msra.mxu0 %v1473
        %1797 = vmatpush.msra.mxu0 %v1469
        %1798 = vmatpush.msra.mxu0 %v1465
        %1799 = vmatpush.msra.mxu0 %v1461
        %1800 = vmatpush.msra.mxu0 %v1457
        %1801 = vmatpush.msra.mxu0 %v1453
        %1802 = vmatpush.msra.mxu0 %v1449
        %1803 = vmatpush.msra.mxu0 %v1445
        %1804 = vmatpush.msra.mxu0 %v1441
        %1805 = vmatpush.msra.mxu0 %v1437
        %1806 = vmatpush.msra.mxu0 %v1433
        %1807 = vmatpush.msra.mxu0 %v1429
        %1808 = vmatpush.msra.mxu0 %v1425
        %1809 = vmatmul.f32.gmra.mxu0 %v1787
        %v1810 = vpop.f32.mrf.mxu0
        %v1811 = vadd.f32 0.0, %v1810
        %1812 = vdwg.mxu0
        %1813 = vmatpush.msra.mxu0 %v1486
        %1814 = vmatpush.msra.mxu0 %v1482
        %1815 = vmatpush.msra.mxu0 %v1478
        %1816 = vmatpush.msra.mxu0 %v1474
        %1817 = vmatpush.msra.mxu0 %v1470
        %1818 = vmatpush.msra.mxu0 %v1466
        %1819 = vmatpush.msra.mxu0 %v1462
        %1820 = vmatpush.msra.mxu0 %v1458
        %1821 = vmatpush.msra.mxu0 %v1454
        %1822 = vmatpush.msra.mxu0 %v1450
        %1823 = vmatpush.msra.mxu0 %v1446
        %1824 = vmatpush.msra.mxu0 %v1442
        %1825 = vmatpush.msra.mxu0 %v1438
        %1826 = vmatpush.msra.mxu0 %v1434
        %1827 = vmatpush.msra.mxu0 %v1430
        %1828 = vmatpush.msra.mxu0 %v1426
        %1829 = vmatmul.f32.gmra.mxu0 %v1787
        %v1830 = vpop.f32.mrf.mxu0
        %v1831 = vadd.f32 0.0, %v1830
        %1832 = vdwg.mxu0
        %1833 = vmatpush.msra.mxu0 %v1487
        %1834 = vmatpush.msra.mxu0 %v1483
        %1835 = vmatpush.msra.mxu0 %v1479
        %1836 = vmatpush.msra.mxu0 %v1475
        %1837 = vmatpush.msra.mxu0 %v1471
        %1838 = vmatpush.msra.mxu0 %v1467
        %1839 = vmatpush.msra.mxu0 %v1463
        %1840 = vmatpush.msra.mxu0 %v1459
        %1841 = vmatpush.msra.mxu0 %v1455
        %1842 = vmatpush.msra.mxu0 %v1451
        %1843 = vmatpush.msra.mxu0 %v1447
        %1844 = vmatpush.msra.mxu0 %v1443
        %1845 = vmatpush.msra.mxu0 %v1439
        %1846 = vmatpush.msra.mxu0 %v1435
        %1847 = vmatpush.msra.mxu0 %v1431
        %1848 = vmatpush.msra.mxu0 %v1427
        %1849 = vmatmul.f32.gmra.mxu0 %v1787
        %v1850 = vpop.f32.mrf.mxu0
        %v1851 = vadd.f32 0.0, %v1850
        %1852 = vdwg.mxu0
        %1853 = vmatpush.msra.mxu0 %v1488
        %1854 = vmatpush.msra.mxu0 %v1484
        %1855 = vmatpush.msra.mxu0 %v1480
        %1856 = vmatpush.msra.mxu0 %v1476
        %1857 = vmatpush.msra.mxu0 %v1472
        %1858 = vmatpush.msra.mxu0 %v1468
        %1859 = vmatpush.msra.mxu0 %v1464
        %1860 = vmatpush.msra.mxu0 %v1460
        %1861 = vmatpush.msra.mxu0 %v1456
        %1862 = vmatpush.msra.mxu0 %v1452
        %1863 = vmatpush.msra.mxu0 %v1448
        %1864 = vmatpush.msra.mxu0 %v1444
        %1865 = vmatpush.msra.mxu0 %v1440
        %1866 = vmatpush.msra.mxu0 %v1436
        %1867 = vmatpush.msra.mxu0 %v1432
        %1868 = vmatpush.msra.mxu0 %v1428
        %1869 = vmatmul.f32.gmra.mxu0 %v1787
        %v1870 = vpop.f32.mrf.mxu0
        %v1871 = vadd.f32 0.0, %v1870
        %1872 = vdwg.mxu0
        %v1873 = vadd.f32 %v1789, %v1811
        %v1874 = vadd.f32 %v1790, %v1831
        %v1875 = vadd.f32 %v1791, %v1851
        %v1876 = vadd.f32 %v1792, %v1871
        %v1877 = vxor.u32 %v1873, 2147483648
        %v1878 = vmul.f32 %v1877, 1.442695
        %v1879 = vpow.pop %v1878
        %v1880 = vadd.f32 %v1879, 1.0
        %v1881 = vrcp.pop %v1880
        %v1882 = vmul.f32 %v1880, %v1881
        %v1883 = vsub.f32 1.0, %v1882
        %v1884 = vmul.f32 %v1881, %v1883
        %v1885 = vadd.f32 %v1881, %v1884
        %vm1886 = vweird.f32 %v1880
        %vm1887 = vweird.f32 %v1881
        %vm1888 = vmor %vm1886, %vm1887
        %v1889 = vsel %vm1888, %v1881, %v1885
        %v1890 = vand.u32 2147483647, %v1880
        %vm1891 = vcmp.eq.f32.partialorder %v1890, 8.507059e+37
        %v1892 = vand.u32 %v1880, 2147483648
        %v1893 = vor.u32 1.1754944e-38, %v1892
        %v1894 = vsel %vm1891, %v1893, %v1889
        %v1895 = vmul.f32 1.0, %v1894
        %v1896 = vxor.u32 %v1874, 2147483648
        %v1897 = vmul.f32 %v1896, 1.442695
        %v1898 = vpow.pop %v1897
        %v1899 = vadd.f32 %v1898, 1.0
        %v1900 = vrcp.pop %v1899
        %v1901 = vmul.f32 %v1899, %v1900
        %v1902 = vsub.f32 1.0, %v1901
        %v1903 = vmul.f32 %v1900, %v1902
        %v1904 = vadd.f32 %v1900, %v1903
        %vm1905 = vweird.f32 %v1899
        %vm1906 = vweird.f32 %v1900
        %vm1907 = vmor %vm1905, %vm1906
        %v1908 = vsel %vm1907, %v1900, %v1904
        %v1909 = vand.u32 2147483647, %v1899
        %vm1910 = vcmp.eq.f32.partialorder %v1909, 8.507059e+37
        %v1911 = vand.u32 %v1899, 2147483648
        %v1912 = vor.u32 1.1754944e-38, %v1911
        %v1913 = vsel %vm1910, %v1912, %v1908
        %v1914 = vmul.f32 1.0, %v1913
        %v1915 = vtanh.pop %v1875
        %v1916 = vxor.u32 %v1876, 2147483648
        %v1917 = vmul.f32 %v1916, 1.442695
        %v1918 = vpow.pop %v1917
        %v1919 = vadd.f32 %v1918, 1.0
        %v1920 = vrcp.pop %v1919
        %v1921 = vmul.f32 %v1919, %v1920
        %v1922 = vsub.f32 1.0, %v1921
        %v1923 = vmul.f32 %v1920, %v1922
        %v1924 = vadd.f32 %v1920, %v1923
        %vm1925 = vweird.f32 %v1919
        %vm1926 = vweird.f32 %v1920
        %vm1927 = vmor %vm1925, %vm1926
        %v1928 = vsel %vm1927, %v1920, %v1924
        %v1929 = vand.u32 2147483647, %v1919
        %vm1930 = vcmp.eq.f32.partialorder %v1929, 8.507059e+37
        %v1931 = vand.u32 %v1919, 2147483648
        %v1932 = vor.u32 1.1754944e-38, %v1931
        %v1933 = vsel %vm1930, %v1932, %v1928
        %v1934 = vmul.f32 1.0, %v1933
        %v1935 = vmul.f32 %v1914, %v1785
        %v1936 = vmul.f32 %v1895, %v1915
        %v1937 = vadd.f32 %v1935, %v1936
        %v1938 = vtanh.pop %v1937
        %v1939 = vmul.f32 %v1934, %v1938
        %1940 = vst [vmem:[%s1045] sm:$0xff] %v1939
        %v1941 = vld [vmem:[%s1049] sm:$0xff]
        %v1942 = vld [vmem:[%s1049 + $0x8] sm:$0xff]
        %v1943 = vld [vmem:[%s1049 + $0x10] sm:$0xff]
        %v1944 = vld [vmem:[%s1049 + $0x18] sm:$0xff]
        %1945 = vmatpush.msra.mxu0 %v1485
        %1946 = vmatpush.msra.mxu0 %v1481
        %1947 = vmatpush.msra.mxu0 %v1477
        %1948 = vmatpush.msra.mxu0 %v1473
        %1949 = vmatpush.msra.mxu0 %v1469
        %1950 = vmatpush.msra.mxu0 %v1465
        %1951 = vmatpush.msra.mxu0 %v1461
        %1952 = vmatpush.msra.mxu0 %v1457
        %1953 = vmatpush.msra.mxu0 %v1453
        %1954 = vmatpush.msra.mxu0 %v1449
        %1955 = vmatpush.msra.mxu0 %v1445
        %1956 = vmatpush.msra.mxu0 %v1441
        %1957 = vmatpush.msra.mxu0 %v1437
        %1958 = vmatpush.msra.mxu0 %v1433
        %1959 = vmatpush.msra.mxu0 %v1429
        %1960 = vmatpush.msra.mxu0 %v1425
        %1961 = vmatmul.f32.gmra.mxu0 %v1939
        %v1962 = vpop.f32.mrf.mxu0
        %v1963 = vadd.f32 0.0, %v1962
        %1964 = vdwg.mxu0
        %1965 = vmatpush.msra.mxu0 %v1486
        %1966 = vmatpush.msra.mxu0 %v1482
        %1967 = vmatpush.msra.mxu0 %v1478
        %1968 = vmatpush.msra.mxu0 %v1474
        %1969 = vmatpush.msra.mxu0 %v1470
        %1970 = vmatpush.msra.mxu0 %v1466
        %1971 = vmatpush.msra.mxu0 %v1462
        %1972 = vmatpush.msra.mxu0 %v1458
        %1973 = vmatpush.msra.mxu0 %v1454
        %1974 = vmatpush.msra.mxu0 %v1450
        %1975 = vmatpush.msra.mxu0 %v1446
        %1976 = vmatpush.msra.mxu0 %v1442
        %1977 = vmatpush.msra.mxu0 %v1438
        %1978 = vmatpush.msra.mxu0 %v1434
        %1979 = vmatpush.msra.mxu0 %v1430
        %1980 = vmatpush.msra.mxu0 %v1426
        %1981 = vmatmul.f32.gmra.mxu0 %v1939
        %v1982 = vpop.f32.mrf.mxu0
        %v1983 = vadd.f32 0.0, %v1982
        %1984 = vdwg.mxu0
        %1985 = vmatpush.msra.mxu0 %v1487
        %1986 = vmatpush.msra.mxu0 %v1483
        %1987 = vmatpush.msra.mxu0 %v1479
        %1988 = vmatpush.msra.mxu0 %v1475
        %1989 = vmatpush.msra.mxu0 %v1471
        %1990 = vmatpush.msra.mxu0 %v1467
        %1991 = vmatpush.msra.mxu0 %v1463
        %1992 = vmatpush.msra.mxu0 %v1459
        %1993 = vmatpush.msra.mxu0 %v1455
        %1994 = vmatpush.msra.mxu0 %v1451
        %1995 = vmatpush.msra.mxu0 %v1447
        %1996 = vmatpush.msra.mxu0 %v1443
        %1997 = vmatpush.msra.mxu0 %v1439
        %1998 = vmatpush.msra.mxu0 %v1435
        %1999 = vmatpush.msra.mxu0 %v1431
        %2000 = vmatpush.msra.mxu0 %v1427
        %2001 = vmatmul.f32.gmra.mxu0 %v1939
        %v2002 = vpop.f32.mrf.mxu0
        %v2003 = vadd.f32 0.0, %v2002
        %2004 = vdwg.mxu0
        %2005 = vmatpush.msra.mxu0 %v1488
        %2006 = vmatpush.msra.mxu0 %v1484
        %2007 = vmatpush.msra.mxu0 %v1480
        %2008 = vmatpush.msra.mxu0 %v1476
        %2009 = vmatpush.msra.mxu0 %v1472
        %2010 = vmatpush.msra.mxu0 %v1468
        %2011 = vmatpush.msra.mxu0 %v1464
        %2012 = vmatpush.msra.mxu0 %v1460
        %2013 = vmatpush.msra.mxu0 %v1456
        %2014 = vmatpush.msra.mxu0 %v1452
        %2015 = vmatpush.msra.mxu0 %v1448
        %2016 = vmatpush.msra.mxu0 %v1444
        %2017 = vmatpush.msra.mxu0 %v1440
        %2018 = vmatpush.msra.mxu0 %v1436
        %2019 = vmatpush.msra.mxu0 %v1432
        %2020 = vmatpush.msra.mxu0 %v1428
        %2021 = vmatmul.f32.gmra.mxu0 %v1939
        %v2022 = vpop.f32.mrf.mxu0
        %v2023 = vadd.f32 0.0, %v2022
        %2024 = vdwg.mxu0
        %v2025 = vadd.f32 %v1941, %v1963
        %v2026 = vadd.f32 %v1942, %v1983
        %v2027 = vadd.f32 %v1943, %v2003
        %v2028 = vadd.f32 %v1944, %v2023
        %v2029 = vxor.u32 %v2025, 2147483648
        %v2030 = vmul.f32 %v2029, 1.442695
        %v2031 = vpow.pop %v2030
        %v2032 = vadd.f32 %v2031, 1.0
        %v2033 = vrcp.pop %v2032
        %v2034 = vmul.f32 %v2032, %v2033
        %v2035 = vsub.f32 1.0, %v2034
        %v2036 = vmul.f32 %v2033, %v2035
        %v2037 = vadd.f32 %v2033, %v2036
        %vm2038 = vweird.f32 %v2032
        %vm2039 = vweird.f32 %v2033
        %vm2040 = vmor %vm2038, %vm2039
        %v2041 = vsel %vm2040, %v2033, %v2037
        %v2042 = vand.u32 2147483647, %v2032
        %vm2043 = vcmp.eq.f32.partialorder %v2042, 8.507059e+37
        %v2044 = vand.u32 %v2032, 2147483648
        %v2045 = vor.u32 1.1754944e-38, %v2044
        %v2046 = vsel %vm2043, %v2045, %v2041
        %v2047 = vmul.f32 1.0, %v2046
        %v2048 = vxor.u32 %v2026, 2147483648
        %v2049 = vmul.f32 %v2048, 1.442695
        %v2050 = vpow.pop %v2049
        %v2051 = vadd.f32 %v2050, 1.0
        %v2052 = vrcp.pop %v2051
        %v2053 = vmul.f32 %v2051, %v2052
        %v2054 = vsub.f32 1.0, %v2053
        %v2055 = vmul.f32 %v2052, %v2054
        %v2056 = vadd.f32 %v2052, %v2055
        %vm2057 = vweird.f32 %v2051
        %vm2058 = vweird.f32 %v2052
        %vm2059 = vmor %vm2057, %vm2058
        %v2060 = vsel %vm2059, %v2052, %v2056
        %v2061 = vand.u32 2147483647, %v2051
        %vm2062 = vcmp.eq.f32.partialorder %v2061, 8.507059e+37
        %v2063 = vand.u32 %v2051, 2147483648
        %v2064 = vor.u32 1.1754944e-38, %v2063
        %v2065 = vsel %vm2062, %v2064, %v2060
        %v2066 = vmul.f32 1.0, %v2065
        %v2067 = vtanh.pop %v2027
        %v2068 = vxor.u32 %v2028, 2147483648
        %v2069 = vmul.f32 %v2068, 1.442695
        %v2070 = vpow.pop %v2069
        %v2071 = vadd.f32 %v2070, 1.0
        %v2072 = vrcp.pop %v2071
        %v2073 = vmul.f32 %v2071, %v2072
        %v2074 = vsub.f32 1.0, %v2073
        %v2075 = vmul.f32 %v2072, %v2074
        %v2076 = vadd.f32 %v2072, %v2075
        %vm2077 = vweird.f32 %v2071
        %vm2078 = vweird.f32 %v2072
        %vm2079 = vmor %vm2077, %vm2078
        %v2080 = vsel %vm2079, %v2072, %v2076
        %v2081 = vand.u32 2147483647, %v2071
        %vm2082 = vcmp.eq.f32.partialorder %v2081, 8.507059e+37
        %v2083 = vand.u32 %v2071, 2147483648
        %v2084 = vor.u32 1.1754944e-38, %v2083
        %v2085 = vsel %vm2082, %v2084, %v2080
        %v2086 = vmul.f32 1.0, %v2085
        %v2087 = vmul.f32 %v2066, %v1937
        %v2088 = vmul.f32 %v2047, %v2067
        %v2089 = vadd.f32 %v2087, %v2088
        %v2090 = vtanh.pop %v2089
        %v2091 = vmul.f32 %v2086, %v2090
        %2092 = vst [vmem:[%s1201] sm:$0xff] %v2091
        %v2093 = vld [vmem:[%s1205] sm:$0xff]
        %v2094 = vld [vmem:[%s1205 + $0x8] sm:$0xff]
        %v2095 = vld [vmem:[%s1205 + $0x10] sm:$0xff]
        %v2096 = vld [vmem:[%s1205 + $0x18] sm:$0xff]
        %2097 = vmatpush.msra.mxu0 %v1485
        %2098 = vmatpush.msra.mxu0 %v1481
        %2099 = vmatpush.msra.mxu0 %v1477
        %2100 = vmatpush.msra.mxu0 %v1473
        %2101 = vmatpush.msra.mxu0 %v1469
        %2102 = vmatpush.msra.mxu0 %v1465
        %2103 = vmatpush.msra.mxu0 %v1461
        %2104 = vmatpush.msra.mxu0 %v1457
        %2105 = vmatpush.msra.mxu0 %v1453
        %2106 = vmatpush.msra.mxu0 %v1449
        %2107 = vmatpush.msra.mxu0 %v1445
        %2108 = vmatpush.msra.mxu0 %v1441
        %2109 = vmatpush.msra.mxu0 %v1437
        %2110 = vmatpush.msra.mxu0 %v1433
        %2111 = vmatpush.msra.mxu0 %v1429
        %2112 = vmatpush.msra.mxu0 %v1425
        %2113 = vmatmul.f32.gmra.mxu0 %v2091
        %v2114 = vpop.f32.mrf.mxu0
        %v2115 = vadd.f32 0.0, %v2114
        %2116 = vdwg.mxu0
        %2117 = vmatpush.msra.mxu0 %v1486
        %2118 = vmatpush.msra.mxu0 %v1482
        %2119 = vmatpush.msra.mxu0 %v1478
        %2120 = vmatpush.msra.mxu0 %v1474
        %2121 = vmatpush.msra.mxu0 %v1470
        %2122 = vmatpush.msra.mxu0 %v1466
        %2123 = vmatpush.msra.mxu0 %v1462
        %2124 = vmatpush.msra.mxu0 %v1458
        %2125 = vmatpush.msra.mxu0 %v1454
        %2126 = vmatpush.msra.mxu0 %v1450
        %2127 = vmatpush.msra.mxu0 %v1446
        %2128 = vmatpush.msra.mxu0 %v1442
        %2129 = vmatpush.msra.mxu0 %v1438
        %2130 = vmatpush.msra.mxu0 %v1434
        %2131 = vmatpush.msra.mxu0 %v1430
        %2132 = vmatpush.msra.mxu0 %v1426
        %2133 = vmatmul.f32.gmra.mxu0 %v2091
        %v2134 = vpop.f32.mrf.mxu0
        %v2135 = vadd.f32 0.0, %v2134
        %2136 = vdwg.mxu0
        %2137 = vmatpush.msra.mxu0 %v1487
        %2138 = vmatpush.msra.mxu0 %v1483
        %2139 = vmatpush.msra.mxu0 %v1479
        %2140 = vmatpush.msra.mxu0 %v1475
        %2141 = vmatpush.msra.mxu0 %v1471
        %2142 = vmatpush.msra.mxu0 %v1467
        %2143 = vmatpush.msra.mxu0 %v1463
        %2144 = vmatpush.msra.mxu0 %v1459
        %2145 = vmatpush.msra.mxu0 %v1455
        %2146 = vmatpush.msra.mxu0 %v1451
        %2147 = vmatpush.msra.mxu0 %v1447
        %2148 = vmatpush.msra.mxu0 %v1443
        %2149 = vmatpush.msra.mxu0 %v1439
        %2150 = vmatpush.msra.mxu0 %v1435
        %2151 = vmatpush.msra.mxu0 %v1431
        %2152 = vmatpush.msra.mxu0 %v1427
        %2153 = vmatmul.f32.gmra.mxu0 %v2091
        %v2154 = vpop.f32.mrf.mxu0
        %v2155 = vadd.f32 0.0, %v2154
        %2156 = vdwg.mxu0
        %2157 = vmatpush.msra.mxu0 %v1488
        %2158 = vmatpush.msra.mxu0 %v1484
        %2159 = vmatpush.msra.mxu0 %v1480
        %2160 = vmatpush.msra.mxu0 %v1476
        %2161 = vmatpush.msra.mxu0 %v1472
        %2162 = vmatpush.msra.mxu0 %v1468
        %2163 = vmatpush.msra.mxu0 %v1464
        %2164 = vmatpush.msra.mxu0 %v1460
        %2165 = vmatpush.msra.mxu0 %v1456
        %2166 = vmatpush.msra.mxu0 %v1452
        %2167 = vmatpush.msra.mxu0 %v1448
        %2168 = vmatpush.msra.mxu0 %v1444
        %2169 = vmatpush.msra.mxu0 %v1440
        %2170 = vmatpush.msra.mxu0 %v1436
        %2171 = vmatpush.msra.mxu0 %v1432
        %2172 = vmatpush.msra.mxu0 %v1428
        %2173 = vmatmul.f32.gmra.mxu0 %v2091
        %v2174 = vpop.f32.mrf.mxu0
        %v2175 = vadd.f32 0.0, %v2174
        %2176 = vdwg.mxu0
        %v2177 = vadd.f32 %v2093, %v2115
        %v2178 = vadd.f32 %v2094, %v2135
        %v2179 = vadd.f32 %v2095, %v2155
        %v2180 = vadd.f32 %v2096, %v2175
        %v2181 = vxor.u32 %v2177, 2147483648
        %v2182 = vmul.f32 %v2181, 1.442695
        %v2183 = vpow.pop %v2182
        %v2184 = vadd.f32 %v2183, 1.0
        %v2185 = vrcp.pop %v2184
        %v2186 = vmul.f32 %v2184, %v2185
        %v2187 = vsub.f32 1.0, %v2186
        %v2188 = vmul.f32 %v2185, %v2187
        %v2189 = vadd.f32 %v2185, %v2188
        %vm2190 = vweird.f32 %v2184
        %vm2191 = vweird.f32 %v2185
        %vm2192 = vmor %vm2190, %vm2191
        %v2193 = vsel %vm2192, %v2185, %v2189
        %v2194 = vand.u32 2147483647, %v2184
        %vm2195 = vcmp.eq.f32.partialorder %v2194, 8.507059e+37
        %v2196 = vand.u32 %v2184, 2147483648
        %v2197 = vor.u32 1.1754944e-38, %v2196
        %v2198 = vsel %vm2195, %v2197, %v2193
        %v2199 = vmul.f32 1.0, %v2198
        %v2200 = vxor.u32 %v2178, 2147483648
        %v2201 = vmul.f32 %v2200, 1.442695
        %v2202 = vpow.pop %v2201
        %v2203 = vadd.f32 %v2202, 1.0
        %v2204 = vrcp.pop %v2203
        %v2205 = vmul.f32 %v2203, %v2204
        %v2206 = vsub.f32 1.0, %v2205
        %v2207 = vmul.f32 %v2204, %v2206
        %v2208 = vadd.f32 %v2204, %v2207
        %vm2209 = vweird.f32 %v2203
        %vm2210 = vweird.f32 %v2204
        %vm2211 = vmor %vm2209, %vm2210
        %v2212 = vsel %vm2211, %v2204, %v2208
        %v2213 = vand.u32 2147483647, %v2203
        %vm2214 = vcmp.eq.f32.partialorder %v2213, 8.507059e+37
        %v2215 = vand.u32 %v2203, 2147483648
        %v2216 = vor.u32 1.1754944e-38, %v2215
        %v2217 = vsel %vm2214, %v2216, %v2212
        %v2218 = vmul.f32 1.0, %v2217
        %v2219 = vtanh.pop %v2179
        %v2220 = vxor.u32 %v2180, 2147483648
        %v2221 = vmul.f32 %v2220, 1.442695
        %v2222 = vpow.pop %v2221
        %v2223 = vadd.f32 %v2222, 1.0
        %v2224 = vrcp.pop %v2223
        %v2225 = vmul.f32 %v2223, %v2224
        %v2226 = vsub.f32 1.0, %v2225
        %v2227 = vmul.f32 %v2224, %v2226
        %v2228 = vadd.f32 %v2224, %v2227
        %vm2229 = vweird.f32 %v2223
        %vm2230 = vweird.f32 %v2224
        %vm2231 = vmor %vm2229, %vm2230
        %v2232 = vsel %vm2231, %v2224, %v2228
        %v2233 = vand.u32 2147483647, %v2223
        %vm2234 = vcmp.eq.f32.partialorder %v2233, 8.507059e+37
        %v2235 = vand.u32 %v2223, 2147483648
        %v2236 = vor.u32 1.1754944e-38, %v2235
        %v2237 = vsel %vm2234, %v2236, %v2232
        %v2238 = vmul.f32 1.0, %v2237
        %v2239 = vmul.f32 %v2218, %v2089
        %v2240 = vmul.f32 %v2199, %v2219
        %v2241 = vadd.f32 %v2239, %v2240
        %v2242 = vtanh.pop %v2241
        %v2243 = vmul.f32 %v2238, %v2242
        %2244 = vst [vmem:[%s1357] sm:$0xff] %v2243
        %2245 = vst [vmem:[#allocation4 + $0x8] sm:$0xff] %v2243
        %2246 = vst [vmem:[#allocation5 + $0x8] sm:$0xff] %v2241
        %v2247 = vld [vmem:[#allocation17] sm:$0xff]
        %v2248 = vld [vmem:[#allocation17 + $0x8] sm:$0xff]
        %v2249 = vld [vmem:[#allocation17 + $0x10] sm:$0xff]
        %v2250 = vld [vmem:[#allocation17 + $0x18] sm:$0xff]
        %v2251 = vld [vmem:[#allocation17 + $0x20] sm:$0xff]
        %v2252 = vld [vmem:[#allocation17 + $0x28] sm:$0xff]
        %v2253 = vld [vmem:[#allocation17 + $0x30] sm:$0xff]
        %v2254 = vld [vmem:[#allocation17 + $0x38] sm:$0xff]
        %v2255 = vld [vmem:[#allocation17 + $0x40] sm:$0xff]
        %v2256 = vld [vmem:[#allocation17 + $0x48] sm:$0xff]
        %v2257 = vld [vmem:[#allocation17 + $0x50] sm:$0xff]
        %v2258 = vld [vmem:[#allocation17 + $0x58] sm:$0xff]
        %v2259 = vld [vmem:[#allocation17 + $0x60] sm:$0xff]
        %v2260 = vld [vmem:[#allocation17 + $0x68] sm:$0xff]
        %v2261 = vld [vmem:[#allocation17 + $0x70] sm:$0xff]
        %v2262 = vld [vmem:[#allocation17 + $0x78] sm:$0xff]
        %v2263 = vld [vmem:[#allocation3] sm:$0xff]
        %v2264 = vld [vmem:[#allocation3 + $0x8] sm:$0xff]
        %v2265 = vld [vmem:[#allocation3 + $0x10] sm:$0xff]
        %v2266 = vld [vmem:[#allocation3 + $0x18] sm:$0xff]
        %v2267 = vld [vmem:[%s8] sm:$0x1]
        %v2269 = vperm.slane %v2267, 0
        %2271 = vmatpush.msra.mxu0 %v2262
        %2272 = vmatpush.msra.mxu0 %v2261
        %2273 = vmatpush.msra.mxu0 %v2260
        %2274 = vmatpush.msra.mxu0 %v2259
        %2275 = vmatpush.msra.mxu0 %v2258
        %2276 = vmatpush.msra.mxu0 %v2257
        %2277 = vmatpush.msra.mxu0 %v2256
        %2278 = vmatpush.msra.mxu0 %v2255
        %2279 = vmatpush.msra.mxu0 %v2254
        %2280 = vmatpush.msra.mxu0 %v2253
        %2281 = vmatpush.msra.mxu0 %v2252
        %2282 = vmatpush.msra.mxu0 %v2251
        %2283 = vmatpush.msra.mxu0 %v2250
        %2284 = vmatpush.msra.mxu0 %v2249
        %2285 = vmatpush.msra.mxu0 %v2248
        %2286 = vmatpush.msra.mxu0 %v2247
        %2287 = vmatmul.f32.gmra.mxu0 %v2263
        %v2288 = vpop.f32.mrf.mxu0
        %v2289 = vadd.f32 %v2269, %v2288
        %2290 = vmatmul.f32.gmra.mxu0 %v2264
        %v2291 = vpop.f32.mrf.mxu0
        %v2292 = vadd.f32 %v2269, %v2291
        %2293 = vmatmul.f32.gmra.mxu0 %v2265
        %v2294 = vpop.f32.mrf.mxu0
        %v2295 = vadd.f32 %v2269, %v2294
        %2296 = vmatmul.f32.gmra.mxu0 %v2266
        %v2297 = vpop.f32.mrf.mxu0
        %v2298 = vadd.f32 %v2269, %v2297
        %2299 = vdwg.mxu0
        %v2300 = vlaneseq
        %v2301 = vand.u32 %v2300, 127
        %vm2302 = vcmp.ge.s32.totalorder %v2301, 16
        %v2303 = vxor.u32 %v2289, 2147483648
        %v2304 = vxor.u32 %v2292, 2147483648
        %v2305 = vxor.u32 %v2295, 2147483648
        %v2306 = vxor.u32 %v2298, 2147483648
        %v2307 = vmul.f32 %v2303, 1.442695
        %v2308 = vpow.pop %v2307
        %v2309 = vmul.f32 %v2304, 1.442695
        %v2310 = vpow.pop %v2309
        %v2311 = vmul.f32 %v2305, 1.442695
        %v2312 = vpow.pop %v2311
        %v2313 = vmul.f32 %v2306, 1.442695
        %v2314 = vpow.pop %v2313
        %v2315 = vadd.f32 %v2308, 1.0
        %v2316 = vadd.f32 %v2310, 1.0
        %v2317 = vadd.f32 %v2312, 1.0
        %v2318 = vadd.f32 %v2314, 1.0
        %v2319 = vrcp.pop %v2315
        %v2320 = vmul.f32 %v2315, %v2319
        %v2321 = vsub.f32 1.0, %v2320
        %v2322 = vmul.f32 %v2319, %v2321
        %v2323 = vadd.f32 %v2319, %v2322
        %vm2324 = vweird.f32 %v2315
        %vm2325 = vweird.f32 %v2319
        %vm2326 = vmor %vm2324, %vm2325
        %v2327 = vsel %vm2326, %v2319, %v2323
        %v2328 = vand.u32 2147483647, %v2315
        %vm2329 = vcmp.eq.f32.partialorder %v2328, 8.507059e+37
        %v2330 = vand.u32 %v2315, 2147483648
        %v2331 = vor.u32 1.1754944e-38, %v2330
        %v2332 = vsel %vm2329, %v2331, %v2327
        %v2333 = vmul.f32 1.0, %v2332
        %v2334 = vrcp.pop %v2316
        %v2335 = vmul.f32 %v2316, %v2334
        %v2336 = vsub.f32 1.0, %v2335
        %v2337 = vmul.f32 %v2334, %v2336
        %v2338 = vadd.f32 %v2334, %v2337
        %vm2339 = vweird.f32 %v2316
        %vm2340 = vweird.f32 %v2334
        %vm2341 = vmor %vm2339, %vm2340
        %v2342 = vsel %vm2341, %v2334, %v2338
        %v2343 = vand.u32 2147483647, %v2316
        %vm2344 = vcmp.eq.f32.partialorder %v2343, 8.507059e+37
        %v2345 = vand.u32 %v2316, 2147483648
        %v2346 = vor.u32 1.1754944e-38, %v2345
        %v2347 = vsel %vm2344, %v2346, %v2342
        %v2348 = vmul.f32 1.0, %v2347
        %v2349 = vrcp.pop %v2317
        %v2350 = vmul.f32 %v2317, %v2349
        %v2351 = vsub.f32 1.0, %v2350
        %v2352 = vmul.f32 %v2349, %v2351
        %v2353 = vadd.f32 %v2349, %v2352
        %vm2354 = vweird.f32 %v2317
        %vm2355 = vweird.f32 %v2349
        %vm2356 = vmor %vm2354, %vm2355
        %v2357 = vsel %vm2356, %v2349, %v2353
        %v2358 = vand.u32 2147483647, %v2317
        %vm2359 = vcmp.eq.f32.partialorder %v2358, 8.507059e+37
        %v2360 = vand.u32 %v2317, 2147483648
        %v2361 = vor.u32 1.1754944e-38, %v2360
        %v2362 = vsel %vm2359, %v2361, %v2357
        %v2363 = vmul.f32 1.0, %v2362
        %v2364 = vrcp.pop %v2318
        %v2365 = vmul.f32 %v2318, %v2364
        %v2366 = vsub.f32 1.0, %v2365
        %v2367 = vmul.f32 %v2364, %v2366
        %v2368 = vadd.f32 %v2364, %v2367
        %vm2369 = vweird.f32 %v2318
        %vm2370 = vweird.f32 %v2364
        %vm2371 = vmor %vm2369, %vm2370
        %v2372 = vsel %vm2371, %v2364, %v2368
        %v2373 = vand.u32 2147483647, %v2318
        %vm2374 = vcmp.eq.f32.partialorder %v2373, 8.507059e+37
        %v2375 = vand.u32 %v2318, 2147483648
        %v2376 = vor.u32 1.1754944e-38, %v2375
        %v2377 = vsel %vm2374, %v2376, %v2372
        %v2378 = vmul.f32 1.0, %v2377
        %v2379 = vsel %vm2302, %v2333, %v2289
        %v2380 = vsel %vm2302, %v2348, %v2292
        %v2381 = vsel %vm2302, %v2363, %v2295
        %v2382 = vsel %vm2302, %v2378, %v2298
        %2383 = vst [vmem:[%s449] sm:$0xff] %v2379
        %2384 = vst [vmem:[%s449 + $0x8] sm:$0xff] %v2380
        %2385 = vst [vmem:[%s449 + $0x10] sm:$0xff] %v2381
        %2386 = vst [vmem:[%s449 + $0x18] sm:$0xff] %v2382
        %s2387 = sand.u32 %s231, 1
        %s2388 = scalar_lea.sflag [#allocation8], %s2387
        %s2389 = sand.u32 %s231, 1
        %s2390 = smul.addr %s2389, 32
        %s2391 = scalar_lea.vmem [#allocation18], %s2390
        // Predicated region
        $region89: #{tpu_custom_call.1} parent=55 // pred_check
          %p2392 = pneg %p241
        $region90: #{tpu_custom_call.1} parent=55 // pred_check_branch
          %2394 = sbr.rel (%p2392) target = $region92
        $region91: #{tpu_custom_call.1} parent=55 // pred_region
          %s2395 = smul.u32 4, %s29
          %2397 = vsyncadd %s2388, 0
          %s2398 = smul.addr %s2395, 8
          %s2399 = scalar_lea.hbm %s9, %s2398
          %s2400 = sshll.u32 %s2391, 4
          %s2401 = int_to_ptr.vmem [resolvable:$true] %s2400
          %s2402 = sshll.u32 %s2399, 4
          %s2403 = int_to_ptr.hbm [resolvable:$true] %s2402
          %2408 = dma.vmem_to_hbm [thread:$0]  %s2401, 512, %s2403, %s2388, 128, 128, 8
        $region92: #{tpu_custom_call.1} parent=55 // pred_fallthru
          _
      $region56: #{tpu_custom_call.1} parent=5 // pred_fallthru
        _
      %p2409 = scmp.le.s32.totalorder 2, %s24
      // Predicated region
      $region93: #{tpu_custom_call.1} parent=5 // pred_check
        %p2410 = pneg %p2409
      $region94: #{tpu_custom_call.1} parent=5 // pred_check_branch
        %2412 = sbr.rel (%p2410) target = $region96
      $region95: #{tpu_custom_call.1} parent=5 // pred_region
        %s2413 = ssub.s32 %s24, 2
        // Predicated region
        $region97: #{tpu_custom_call.1} parent=95 // pred_check
          %p2414 = pneg %p247
        $region98: #{tpu_custom_call.1} parent=95 // pred_check_branch
          %2416 = sbr.rel (%p2414) target = $region100
        $region99: #{tpu_custom_call.1} parent=95 // pred_region
          %s2417 = sand.u32 %s232, 1
          %s2418 = scalar_lea.sflag [#allocation8], %s2417
          %s2419 = sand.u32 %s232, 1
          %s2420 = smul.addr %s2419, 32
          %s2421 = scalar_lea.vmem [#allocation18], %s2420
          %2423 = dma.done %s2418, 512
        $region100: #{tpu_custom_call.1} parent=95 // pred_fallthru
          _
      $region96: #{tpu_custom_call.1} parent=5 // pred_fallthru
        _
    $region6: #{tpu_custom_call.1} parent=1 // loop_footer
      %s28 = sadd.s32 1, %s24
    $region7: #{tpu_custom_call.1} parent=1 // loop_footer_branch
      %23 = sbr.rel target = $region3
    $region8: #{tpu_custom_call.1} parent=1 // loop_exit
      _
    %2424 = vsyncpa [#allocation7], 1
    %s2425 = scalar_lea.sflag [#allocation7], 1
    %2426 = vsyncpa %s2425, 1
    %2427 = vsyncpa [#allocation10], 1
    %2428 = vsyncpa [#allocation13], 1
    %2429 = vsyncpa [#allocation16], 1
    %2430 = vsyncpa [#allocation8], 1
    %s2431 = scalar_lea.sflag [#allocation8], 1
    %2432 = vsyncpa %s2431, 1

</llo_original>
